<compile_context>
chip_gen: v6e
topology: v6e:2x2x1
jax: 0.10.0
libtpu: 0.0.40
codegen_flags: <defaults>
</compile_context>

<pallas_src>
import functools

import jax
import jax.numpy as jnp
from jax.experimental import pallas as pl
from jax.experimental.pallas import tpu as pltpu


def _round_up(x, m):
    return (x + m - 1) // m * m


@functools.lru_cache(maxsize=1)
def _vmem_limit_bytes():
    """Half of physical VMEM, capped at 64 MiB (v5e/v6e: 64 MiB, v7x: 32 MiB)."""
    phys = 64 * 1024 * 1024
    try:
        phys = int(pltpu.get_tpu_info().vmem_capacity_bytes)
    except Exception:
        pass
    return min(phys // 2, 64 * 1024 * 1024)


# ----------------------------------------------------------------------------
# Pallas kernel: fused 3x3 stride-2 conv (phase-plane taps) + folded BN + ReLU
# ----------------------------------------------------------------------------
def _conv3x3s2_bn_relu_kernel(x_ref, w_ref, b_ref, o_ref, *, ho, wo):
    # x_ref: (4, Hh, Wh, Cin) bf16 — the four stride-2 phase planes of the
    #        zero-padded input image for one batch element;
    #        plane p = 2*(dy%2) + (dx%2) holds x_pad[2*h + dy%2, 2*w + dx%2, :].
    # w_ref: (3, 3, Cin, tn) bf16 — conv weight (HWIO) with BN scale folded in.
    # b_ref: (1, tn)        f32  — folded BN bias.
    # o_ref: (1, ho*wo, tn) bf16 — flattened output tile for this batch elem.
    cin = x_ref.shape[-1]
    planes = [x_ref[p] for p in range(4)]  # each (Hh, Wh, Cin), VMEM-resident

    acc = None
    for dy in range(3):
        for dx in range(3):
            p = (dy % 2) * 2 + (dx % 2)
            r0, c0 = dy // 2, dx // 2
            xt = planes[p][r0:r0 + ho, c0:c0 + wo, :]       # static slice
            xt = xt.reshape(ho * wo, cin)                   # (M, Cin)
            part = jnp.dot(xt, w_ref[dy, dx],
                           preferred_element_type=jnp.float32)
            acc = part if acc is None else acc + part

    out = jnp.maximum(acc + b_ref[...], 0.0)                # bias + ReLU in f32
    o_ref[0] = out.astype(o_ref.dtype)                      # bf16 writeback


# ----------------------------------------------------------------------------
# One backbone stage: conv3x3 / stride 2 / pad 1 + BatchNorm (folded) + ReLU
# ----------------------------------------------------------------------------
def _conv3x3s2_bn_relu_nhwc(x_nhwc, w_oihw, gamma, beta, mean, var, eps=1e-5):
    N, H, W, Cin = x_nhwc.shape
    Cout = w_oihw.shape[0]
    Ho = (H - 1) // 2 + 1
    Wo = (W - 1) // 2 + 1
    M = Ho * Wo

    # ---- phase-plane rearrangement (one cheap pass, no 9x expansion) -------
    xb = x_nhwc.astype(jnp.bfloat16)      # no-op after stage 1 (already bf16)
    xp = jnp.pad(xb, ((0, 0), (1, 1), (1, 1), (0, 0)))
    Hp, Wp = xp.shape[1], xp.shape[2]
    Hp2, Wp2 = _round_up(Hp, 2), _round_up(Wp, 2)
    xp = jnp.pad(xp, ((0, 0), (0, Hp2 - Hp), (0, Wp2 - Wp), (0, 0)))
    Hh, Wh = Hp2 // 2, Wp2 // 2
    phases = xp.reshape(N, Hh, 2, Wh, 2, Cin).transpose(0, 2, 4, 1, 3, 5)
    phases = phases.reshape(N * 4, Hh, Wh, Cin)             # (N*4, Hh, Wh, Cin)

    # ---- fold BN into the conv weight / bias -------------------------------
    scale = gamma / jnp.sqrt(var + eps)                      # (Cout,)
    bias = (beta - mean * scale).astype(jnp.float32).reshape(1, Cout)
    w_hwio = (jnp.transpose(w_oihw, (2, 3, 1, 0)) * scale).astype(jnp.bfloat16)

    # ---- output-channel tiling: keep the true Cout for narrow layers -------
    if Cout <= 128:
        tn, Cp = Cout, Cout           # masked vst < padded writes + slice copy
    else:
        tn = 128                      # v5e-safe (128-wide MXU); fine elsewhere
        Cp = _round_up(Cout, tn)
        w_hwio = jnp.pad(w_hwio, ((0, 0), (0, 0), (0, 0), (0, Cp - Cout)))
        bias = jnp.pad(bias, ((0, 0), (0, Cp - Cout)))

    grid = (N, Cp // tn)
    kernel = functools.partial(_conv3x3s2_bn_relu_kernel, ho=Ho, wo=Wo)

    cost = pl.CostEstimate(
        flops=2 * N * M * 9 * Cin * Cp,
        transcendentals=0,
        bytes_accessed=(phases.size * 2 + w_hwio.size * 2 + bias.size * 4
                        + N * M * Cp * 2),
    )

    out = pl.pallas_call(
        kernel,
        out_shape=jax.ShapeDtypeStruct((N, M, Cp), jnp.bfloat16),
        grid_spec=pltpu.PrefetchScalarGridSpec(
            num_scalar_prefetch=0,
            grid=grid,
            in_specs=[
                pl.BlockSpec((4, Hh, Wh, Cin), lambda n, j: (n, 0, 0, 0)),
                pl.BlockSpec((3, 3, Cin, tn), lambda n, j: (0, 0, 0, j)),
                pl.BlockSpec((1, tn), lambda n, j: (0, j)),
            ],
            out_specs=pl.BlockSpec((1, M, tn), lambda n, j: (n, 0, j)),
        ),
        compiler_params=pltpu.CompilerParams(
            dimension_semantics=("parallel", "parallel"),
            vmem_limit_bytes=_vmem_limit_bytes(),
            allow_input_fusion=[True, True, True],
        ),
        cost_estimate=cost,
    )(phases, w_hwio, bias)

    if Cp != Cout:
        out = out[:, :, :Cout]
    return out.reshape(N, Ho, Wo, Cout)                      # bf16, NHWC


# ----------------------------------------------------------------------------
# Synthetic backbone + the BaseBackboneWraper equivalent (pure pass-through)
# ----------------------------------------------------------------------------
def _init_backbone_params(key, c_in=4, c1=32, c2=64):
    k = jax.random.split(key, 4)
    return {
        "stem_w": jax.random.normal(k[0], (c1, c_in, 3, 3), jnp.float32) * 0.1,
        "stem_gamma": jnp.ones((c1,), jnp.float32),
        "stem_beta": jnp.zeros((c1,), jnp.float32),
        "stem_mean": jax.random.normal(k[1], (c1,), jnp.float32) * 0.01,
        "stem_var": jnp.ones((c1,), jnp.float32),
        "l1_w": jax.random.normal(k[2], (c2, c1, 3, 3), jnp.float32) * 0.1,
        "l1_gamma": jnp.ones((c2,), jnp.float32),
        "l1_beta": jnp.zeros((c2,), jnp.float32),
        "l1_mean": jax.random.normal(k[3], (c2,), jnp.float32) * 0.01,
        "l1_var": jnp.ones((c2,), jnp.float32),
    }


def backbone_forward(params, x_nchw):
    """Synthetic mmdet-style backbone: returns a tuple of multi-scale feats (NCHW)."""
    # Single NCHW -> NHWC transpose at the top; whole backbone runs NHWC/bf16.
    x_nhwc = jnp.transpose(x_nchw, (0, 2, 3, 1))
    f1 = _conv3x3s2_bn_relu_nhwc(
        x_nhwc, params["stem_w"], params["stem_gamma"], params["stem_beta"],
        params["stem_mean"], params["stem_var"])
    f2 = _conv3x3s2_bn_relu_nhwc(
        f1, params["l1_w"], params["l1_gamma"], params["l1_beta"],
        params["l1_mean"], params["l1_var"])
    # External API stays NCHW / f32 (PyTorch convention) at the boundary only.
    to_nchw = lambda t: jnp.transpose(t, (0, 3, 1, 2)).astype(jnp.float32)
    return (to_nchw(f1), to_nchw(f2))


def base_backbone_wrapper_forward(params, *args, **kwargs):
    # Exact semantics of BaseBackboneWraper.forward: delegate to the module.
    return backbone_forward(params, *args, **kwargs)


# ----------------------------------------------------------------------------
# Reference (plain JAX, f32) for a correctness check
# ----------------------------------------------------------------------------
def _ref_conv_bn_relu_nchw(x, w, gamma, beta, mean, var, stride, pad, eps=1e-5):
    y = jax.lax.conv_general_dilated(
        x, w, window_strides=(stride, stride),
        padding=((pad, pad), (pad, pad)),
        dimension_numbers=("NCHW", "OIHW", "NCHW"))
    scale = (gamma / jnp.sqrt(var + eps))[None, :, None, None]
    bias = (beta - mean * gamma / jnp.sqrt(var + eps))[None, :, None, None]
    return jnp.maximum(y * scale + bias, 0.0)


if __name__ == "__main__":
    key = jax.random.PRNGKey(0)
    pkey, xkey = jax.random.split(key)
    params = _init_backbone_params(pkey)

    # Spatial 32 keeps every in-kernel (Ho, Wo) collapse sublane-aligned.
    x = jax.random.normal(xkey, (2, 4, 32, 32), jnp.float32)  # NCHW

    fwd = jax.jit(base_backbone_wrapper_forward)
    feats = jax.block_until_ready(fwd(params, x))

    assert isinstance(feats, tuple) and len(feats) == 2
    assert feats[0].shape == (2, 32, 16, 16)
    assert feats[1].shape == (2, 64, 8, 8)
    assert all(bool(jnp.isfinite(f).all()) for f in feats)

    # Numerical check against a plain-JAX f32 reference (bf16-operand tolerance).
    ref_f1 = _ref_conv_bn_relu_nchw(
        x, params["stem_w"], params["stem_gamma"], params["stem_beta"],
        params["stem_mean"], params["stem_var"], stride=2, pad=1)
    ref_f2 = _ref_conv_bn_relu_nchw(
        ref_f1, params["l1_w"], params["l1_gamma"], params["l1_beta"],
        params["l1_mean"], params["l1_var"], stride=2, pad=1)
    assert jnp.allclose(feats[0], ref_f1, atol=5e-2, rtol=5e-2)
    assert jnp.allclose(feats[1], ref_f2, atol=5e-2, rtol=5e-2)

    print("KERNEL_OK")
</pallas_src>

<mosaic_0001>
module attributes {stable_mosaic.version = 11 : i64} {
  func.func @_conv3x3s2_bn_relu_kernel(%arg0: i32, %arg1: i32, %arg2: memref<4x17x17x4xbf16, #tpu.memory_space<vmem>>, %arg3: memref<3x3x4x32xbf16, #tpu.memory_space<vmem>>, %arg4: memref<1x32xf32, #tpu.memory_space<vmem>>, %arg5: memref<1x256x32xbf16, #tpu.memory_space<vmem>>) attributes {dimension_semantics = [#tpu.dimension_semantics<parallel>, #tpu.dimension_semantics<parallel>], iteration_bounds = array<i64: 2, 1>, scalar_prefetch = 0 : i64, scratch_operands = 0 : i64, tpu.core_type = #tpu.core_type<tc>, window_params = [{transform_indices = @transform_0, window_bounds = array<i64: 4, 17, 17, 4>}, {transform_indices = @transform_1, window_bounds = array<i64: 3, 3, 4, 32>}, {transform_indices = @transform_2, window_bounds = array<i64: 1, 32>}, {transform_indices = @transform_3, window_bounds = array<i64: 1, 256, 32>}]} {
    %c0 = arith.constant 0 : index
    %c0_0 = arith.constant 0 : index
    %c0_1 = arith.constant 0 : index
    %c0_2 = arith.constant 0 : index
    %0 = vector.load %arg2[%c0, %c0_0, %c0_1, %c0_2] : memref<4x17x17x4xbf16, #tpu.memory_space<vmem>>, vector<1x17x17x4xbf16>
    %1 = vector.shape_cast %0 : vector<1x17x17x4xbf16> to vector<17x17x4xbf16>
    %c1 = arith.constant 1 : index
    %c0_3 = arith.constant 0 : index
    %c0_4 = arith.constant 0 : index
    %c0_5 = arith.constant 0 : index
    %2 = vector.load %arg2[%c1, %c0_3, %c0_4, %c0_5] : memref<4x17x17x4xbf16, #tpu.memory_space<vmem>>, vector<1x17x17x4xbf16>
    %3 = vector.shape_cast %2 : vector<1x17x17x4xbf16> to vector<17x17x4xbf16>
    %c2 = arith.constant 2 : index
    %c0_6 = arith.constant 0 : index
    %c0_7 = arith.constant 0 : index
    %c0_8 = arith.constant 0 : index
    %4 = vector.load %arg2[%c2, %c0_6, %c0_7, %c0_8] : memref<4x17x17x4xbf16, #tpu.memory_space<vmem>>, vector<1x17x17x4xbf16>
    %5 = vector.shape_cast %4 : vector<1x17x17x4xbf16> to vector<17x17x4xbf16>
    %c3 = arith.constant 3 : index
    %c0_9 = arith.constant 0 : index
    %c0_10 = arith.constant 0 : index
    %c0_11 = arith.constant 0 : index
    %6 = vector.load %arg2[%c3, %c0_9, %c0_10, %c0_11] : memref<4x17x17x4xbf16, #tpu.memory_space<vmem>>, vector<1x17x17x4xbf16>
    %7 = vector.shape_cast %6 : vector<1x17x17x4xbf16> to vector<17x17x4xbf16>
    %8 = vector.extract_strided_slice %1 {offsets = [0, 0, 0], sizes = [16, 16, 4], strides = [1, 1, 1]} : vector<17x17x4xbf16> to vector<16x16x4xbf16>
    %9 = vector.shape_cast %8 : vector<16x16x4xbf16> to vector<256x4xbf16>
    %c0_12 = arith.constant 0 : index
    %c0_13 = arith.constant 0 : index
    %c0_14 = arith.constant 0 : index
    %c0_15 = arith.constant 0 : index
    %10 = vector.load %arg3[%c0_12, %c0_13, %c0_14, %c0_15] : memref<3x3x4x32xbf16, #tpu.memory_space<vmem>>, vector<1x1x4x32xbf16>
    %11 = vector.shape_cast %10 : vector<1x1x4x32xbf16> to vector<4x32xbf16>
    %cst = arith.constant dense<0.000000e+00> : vector<256x32xf32>
    %12 = tpu.matmul %9, %11, %cst {dimension_numbers = #tpu.dot_dimension_numbers<[1], [0], [0], [1], [0, 0, 1, 1], [], []>} : vector<256x4xbf16>, vector<4x32xbf16>, vector<256x32xf32> -> vector<256x32xf32>
    %13 = vector.extract_strided_slice %3 {offsets = [0, 0, 0], sizes = [16, 16, 4], strides = [1, 1, 1]} : vector<17x17x4xbf16> to vector<16x16x4xbf16>
    %14 = vector.shape_cast %13 : vector<16x16x4xbf16> to vector<256x4xbf16>
    %c0_16 = arith.constant 0 : index
    %c1_17 = arith.constant 1 : index
    %c0_18 = arith.constant 0 : index
    %c0_19 = arith.constant 0 : index
    %15 = vector.load %arg3[%c0_16, %c1_17, %c0_18, %c0_19] : memref<3x3x4x32xbf16, #tpu.memory_space<vmem>>, vector<1x1x4x32xbf16>
    %16 = vector.shape_cast %15 : vector<1x1x4x32xbf16> to vector<4x32xbf16>
    %cst_20 = arith.constant dense<0.000000e+00> : vector<256x32xf32>
    %17 = tpu.matmul %14, %16, %cst_20 {dimension_numbers = #tpu.dot_dimension_numbers<[1], [0], [0], [1], [0, 0, 1, 1], [], []>} : vector<256x4xbf16>, vector<4x32xbf16>, vector<256x32xf32> -> vector<256x32xf32>
    %18 = arith.addf %12, %17 : vector<256x32xf32>
    %19 = vector.extract_strided_slice %1 {offsets = [0, 1, 0], sizes = [16, 16, 4], strides = [1, 1, 1]} : vector<17x17x4xbf16> to vector<16x16x4xbf16>
    %20 = vector.shape_cast %19 : vector<16x16x4xbf16> to vector<256x4xbf16>
    %c0_21 = arith.constant 0 : index
    %c2_22 = arith.constant 2 : index
    %c0_23 = arith.constant 0 : index
    %c0_24 = arith.constant 0 : index
    %21 = vector.load %arg3[%c0_21, %c2_22, %c0_23, %c0_24] : memref<3x3x4x32xbf16, #tpu.memory_space<vmem>>, vector<1x1x4x32xbf16>
    %22 = vector.shape_cast %21 : vector<1x1x4x32xbf16> to vector<4x32xbf16>
    %cst_25 = arith.constant dense<0.000000e+00> : vector<256x32xf32>
    %23 = tpu.matmul %20, %22, %cst_25 {dimension_numbers = #tpu.dot_dimension_numbers<[1], [0], [0], [1], [0, 0, 1, 1], [], []>} : vector<256x4xbf16>, vector<4x32xbf16>, vector<256x32xf32> -> vector<256x32xf32>
    %24 = arith.addf %18, %23 : vector<256x32xf32>
    %25 = vector.extract_strided_slice %5 {offsets = [0, 0, 0], sizes = [16, 16, 4], strides = [1, 1, 1]} : vector<17x17x4xbf16> to vector<16x16x4xbf16>
    %26 = vector.shape_cast %25 : vector<16x16x4xbf16> to vector<256x4xbf16>
    %c1_26 = arith.constant 1 : index
    %c0_27 = arith.constant 0 : index
    %c0_28 = arith.constant 0 : index
    %c0_29 = arith.constant 0 : index
    %27 = vector.load %arg3[%c1_26, %c0_27, %c0_28, %c0_29] : memref<3x3x4x32xbf16, #tpu.memory_space<vmem>>, vector<1x1x4x32xbf16>
    %28 = vector.shape_cast %27 : vector<1x1x4x32xbf16> to vector<4x32xbf16>
    %cst_30 = arith.constant dense<0.000000e+00> : vector<256x32xf32>
    %29 = tpu.matmul %26, %28, %cst_30 {dimension_numbers = #tpu.dot_dimension_numbers<[1], [0], [0], [1], [0, 0, 1, 1], [], []>} : vector<256x4xbf16>, vector<4x32xbf16>, vector<256x32xf32> -> vector<256x32xf32>
    %30 = arith.addf %24, %29 : vector<256x32xf32>
    %31 = vector.extract_strided_slice %7 {offsets = [0, 0, 0], sizes = [16, 16, 4], strides = [1, 1, 1]} : vector<17x17x4xbf16> to vector<16x16x4xbf16>
    %32 = vector.shape_cast %31 : vector<16x16x4xbf16> to vector<256x4xbf16>
    %c1_31 = arith.constant 1 : index
    %c1_32 = arith.constant 1 : index
    %c0_33 = arith.constant 0 : index
    %c0_34 = arith.constant 0 : index
    %33 = vector.load %arg3[%c1_31, %c1_32, %c0_33, %c0_34] : memref<3x3x4x32xbf16, #tpu.memory_space<vmem>>, vector<1x1x4x32xbf16>
    %34 = vector.shape_cast %33 : vector<1x1x4x32xbf16> to vector<4x32xbf16>
    %cst_35 = arith.constant dense<0.000000e+00> : vector<256x32xf32>
    %35 = tpu.matmul %32, %34, %cst_35 {dimension_numbers = #tpu.dot_dimension_numbers<[1], [0], [0], [1], [0, 0, 1, 1], [], []>} : vector<256x4xbf16>, vector<4x32xbf16>, vector<256x32xf32> -> vector<256x32xf32>
    %36 = arith.addf %30, %35 : vector<256x32xf32>
    %37 = vector.extract_strided_slice %5 {offsets = [0, 1, 0], sizes = [16, 16, 4], strides = [1, 1, 1]} : vector<17x17x4xbf16> to vector<16x16x4xbf16>
    %38 = vector.shape_cast %37 : vector<16x16x4xbf16> to vector<256x4xbf16>
    %c1_36 = arith.constant 1 : index
    %c2_37 = arith.constant 2 : index
    %c0_38 = arith.constant 0 : index
    %c0_39 = arith.constant 0 : index
    %39 = vector.load %arg3[%c1_36, %c2_37, %c0_38, %c0_39] : memref<3x3x4x32xbf16, #tpu.memory_space<vmem>>, vector<1x1x4x32xbf16>
    %40 = vector.shape_cast %39 : vector<1x1x4x32xbf16> to vector<4x32xbf16>
    %cst_40 = arith.constant dense<0.000000e+00> : vector<256x32xf32>
    %41 = tpu.matmul %38, %40, %cst_40 {dimension_numbers = #tpu.dot_dimension_numbers<[1], [0], [0], [1], [0, 0, 1, 1], [], []>} : vector<256x4xbf16>, vector<4x32xbf16>, vector<256x32xf32> -> vector<256x32xf32>
    %42 = arith.addf %36, %41 : vector<256x32xf32>
    %43 = vector.extract_strided_slice %1 {offsets = [1, 0, 0], sizes = [16, 16, 4], strides = [1, 1, 1]} : vector<17x17x4xbf16> to vector<16x16x4xbf16>
    %44 = vector.shape_cast %43 : vector<16x16x4xbf16> to vector<256x4xbf16>
    %c2_41 = arith.constant 2 : index
    %c0_42 = arith.constant 0 : index
    %c0_43 = arith.constant 0 : index
    %c0_44 = arith.constant 0 : index
    %45 = vector.load %arg3[%c2_41, %c0_42, %c0_43, %c0_44] : memref<3x3x4x32xbf16, #tpu.memory_space<vmem>>, vector<1x1x4x32xbf16>
    %46 = vector.shape_cast %45 : vector<1x1x4x32xbf16> to vector<4x32xbf16>
    %cst_45 = arith.constant dense<0.000000e+00> : vector<256x32xf32>
    %47 = tpu.matmul %44, %46, %cst_45 {dimension_numbers = #tpu.dot_dimension_numbers<[1], [0], [0], [1], [0, 0, 1, 1], [], []>} : vector<256x4xbf16>, vector<4x32xbf16>, vector<256x32xf32> -> vector<256x32xf32>
    %48 = arith.addf %42, %47 : vector<256x32xf32>
    %49 = vector.extract_strided_slice %3 {offsets = [1, 0, 0], sizes = [16, 16, 4], strides = [1, 1, 1]} : vector<17x17x4xbf16> to vector<16x16x4xbf16>
    %50 = vector.shape_cast %49 : vector<16x16x4xbf16> to vector<256x4xbf16>
    %c2_46 = arith.constant 2 : index
    %c1_47 = arith.constant 1 : index
    %c0_48 = arith.constant 0 : index
    %c0_49 = arith.constant 0 : index
    %51 = vector.load %arg3[%c2_46, %c1_47, %c0_48, %c0_49] : memref<3x3x4x32xbf16, #tpu.memory_space<vmem>>, vector<1x1x4x32xbf16>
    %52 = vector.shape_cast %51 : vector<1x1x4x32xbf16> to vector<4x32xbf16>
    %cst_50 = arith.constant dense<0.000000e+00> : vector<256x32xf32>
    %53 = tpu.matmul %50, %52, %cst_50 {dimension_numbers = #tpu.dot_dimension_numbers<[1], [0], [0], [1], [0, 0, 1, 1], [], []>} : vector<256x4xbf16>, vector<4x32xbf16>, vector<256x32xf32> -> vector<256x32xf32>
    %54 = arith.addf %48, %53 : vector<256x32xf32>
    %55 = vector.extract_strided_slice %1 {offsets = [1, 1, 0], sizes = [16, 16, 4], strides = [1, 1, 1]} : vector<17x17x4xbf16> to vector<16x16x4xbf16>
    %56 = vector.shape_cast %55 : vector<16x16x4xbf16> to vector<256x4xbf16>
    %c2_51 = arith.constant 2 : index
    %c2_52 = arith.constant 2 : index
    %c0_53 = arith.constant 0 : index
    %c0_54 = arith.constant 0 : index
    %57 = vector.load %arg3[%c2_51, %c2_52, %c0_53, %c0_54] : memref<3x3x4x32xbf16, #tpu.memory_space<vmem>>, vector<1x1x4x32xbf16>
    %58 = vector.shape_cast %57 : vector<1x1x4x32xbf16> to vector<4x32xbf16>
    %cst_55 = arith.constant dense<0.000000e+00> : vector<256x32xf32>
    %59 = tpu.matmul %56, %58, %cst_55 {dimension_numbers = #tpu.dot_dimension_numbers<[1], [0], [0], [1], [0, 0, 1, 1], [], []>} : vector<256x4xbf16>, vector<4x32xbf16>, vector<256x32xf32> -> vector<256x32xf32>
    %60 = arith.addf %54, %59 : vector<256x32xf32>
    %c0_56 = arith.constant 0 : index
    %c0_57 = arith.constant 0 : index
    %61 = vector.load %arg4[%c0_56, %c0_57] : memref<1x32xf32, #tpu.memory_space<vmem>>, vector<1x32xf32>
    %62 = vector.broadcast %61 : vector<1x32xf32> to vector<256x32xf32>
    %63 = arith.addf %60, %62 : vector<256x32xf32>
    %cst_58 = arith.constant 0.000000e+00 : f32
    %64 = vector.broadcast %cst_58 : f32 to vector<256x32xf32>
    %65 = arith.maximumf %63, %64 : vector<256x32xf32>
    %66 = arith.truncf %65 : vector<256x32xf32> to vector<256x32xbf16>
    %c0_59 = arith.constant 0 : index
    %c0_60 = arith.constant 0 : index
    %c0_61 = arith.constant 0 : index
    %67 = vector.load %arg5[%c0_59, %c0_60, %c0_61] : memref<1x256x32xbf16, #tpu.memory_space<vmem>>, vector<1x256x32xbf16>
    %68 = vector.shape_cast %67 : vector<1x256x32xbf16> to vector<256x32xbf16>
    %69 = vector.shape_cast %66 : vector<256x32xbf16> to vector<1x256x32xbf16>
    tpu.vector_store %arg5[%c0_59, %c0_60, %c0_61], %69 {strides = array<i32>} : memref<1x256x32xbf16, #tpu.memory_space<vmem>>, vector<1x256x32xbf16>,
    return
  }
  func.func @transform_0(%arg0: i32, %arg1: i32) -> (i32, i32, i32, i32) {
    %c0_i32 = arith.constant 0 : i32
    %c0_i32_0 = arith.constant 0 : i32
    %c0_i32_1 = arith.constant 0 : i32
    %c0_i32_2 = arith.constant 0 : i32
    return %arg0, %c0_i32, %c0_i32_0, %c0_i32_1 : i32, i32, i32, i32
  }
  func.func @transform_1(%arg0: i32, %arg1: i32) -> (i32, i32, i32, i32) {
    %c0_i32 = arith.constant 0 : i32
    %c0_i32_0 = arith.constant 0 : i32
    %c0_i32_1 = arith.constant 0 : i32
    %c0_i32_2 = arith.constant 0 : i32
    return %c0_i32, %c0_i32_0, %c0_i32_1, %arg1 : i32, i32, i32, i32
  }
  func.func @transform_2(%arg0: i32, %arg1: i32) -> (i32, i32) {
    %c0_i32 = arith.constant 0 : i32
    %c0_i32_0 = arith.constant 0 : i32
    return %c0_i32, %arg1 : i32, i32
  }
  func.func @transform_3(%arg0: i32, %arg1: i32) -> (i32, i32, i32) {
    %c0_i32 = arith.constant 0 : i32
    %c0_i32_0 = arith.constant 0 : i32
    return %arg0, %c0_i32, %arg1 : i32, i32, i32
  }
}

module attributes {stable_mosaic.version = 11 : i64} {
  func.func @_conv3x3s2_bn_relu_kernel(%arg0: i32, %arg1: i32, %arg2: memref<4x9x9x32xbf16, #tpu.memory_space<vmem>>, %arg3: memref<3x3x32x64xbf16, #tpu.memory_space<vmem>>, %arg4: memref<1x64xf32, #tpu.memory_space<vmem>>, %arg5: memref<1x64x64xbf16, #tpu.memory_space<vmem>>) attributes {dimension_semantics = [#tpu.dimension_semantics<parallel>, #tpu.dimension_semantics<parallel>], iteration_bounds = array<i64: 2, 1>, scalar_prefetch = 0 : i64, scratch_operands = 0 : i64, tpu.core_type = #tpu.core_type<tc>, window_params = [{transform_indices = @transform_0, window_bounds = array<i64: 4, 9, 9, 32>}, {transform_indices = @transform_1, window_bounds = array<i64: 3, 3, 32, 64>}, {transform_indices = @transform_2, window_bounds = array<i64: 1, 64>}, {transform_indices = @transform_3, window_bounds = array<i64: 1, 64, 64>}]} {
    %c0 = arith.constant 0 : index
    %c0_0 = arith.constant 0 : index
    %c0_1 = arith.constant 0 : index
    %c0_2 = arith.constant 0 : index
    %0 = vector.load %arg2[%c0, %c0_0, %c0_1, %c0_2] : memref<4x9x9x32xbf16, #tpu.memory_space<vmem>>, vector<1x9x9x32xbf16>
    %1 = vector.shape_cast %0 : vector<1x9x9x32xbf16> to vector<9x9x32xbf16>
    %c1 = arith.constant 1 : index
    %c0_3 = arith.constant 0 : index
    %c0_4 = arith.constant 0 : index
    %c0_5 = arith.constant 0 : index
    %2 = vector.load %arg2[%c1, %c0_3, %c0_4, %c0_5] : memref<4x9x9x32xbf16, #tpu.memory_space<vmem>>, vector<1x9x9x32xbf16>
    %3 = vector.shape_cast %2 : vector<1x9x9x32xbf16> to vector<9x9x32xbf16>
    %c2 = arith.constant 2 : index
    %c0_6 = arith.constant 0 : index
    %c0_7 = arith.constant 0 : index
    %c0_8 = arith.constant 0 : index
    %4 = vector.load %arg2[%c2, %c0_6, %c0_7, %c0_8] : memref<4x9x9x32xbf16, #tpu.memory_space<vmem>>, vector<1x9x9x32xbf16>
    %5 = vector.shape_cast %4 : vector<1x9x9x32xbf16> to vector<9x9x32xbf16>
    %c3 = arith.constant 3 : index
    %c0_9 = arith.constant 0 : index
    %c0_10 = arith.constant 0 : index
    %c0_11 = arith.constant 0 : index
    %6 = vector.load %arg2[%c3, %c0_9, %c0_10, %c0_11] : memref<4x9x9x32xbf16, #tpu.memory_space<vmem>>, vector<1x9x9x32xbf16>
    %7 = vector.shape_cast %6 : vector<1x9x9x32xbf16> to vector<9x9x32xbf16>
    %8 = vector.extract_strided_slice %1 {offsets = [0, 0, 0], sizes = [8, 8, 32], strides = [1, 1, 1]} : vector<9x9x32xbf16> to vector<8x8x32xbf16>
    %9 = vector.shape_cast %8 : vector<8x8x32xbf16> to vector<64x32xbf16>
    %c0_12 = arith.constant 0 : index
    %c0_13 = arith.constant 0 : index
    %c0_14 = arith.constant 0 : index
    %c0_15 = arith.constant 0 : index
    %10 = vector.load %arg3[%c0_12, %c0_13, %c0_14, %c0_15] : memref<3x3x32x64xbf16, #tpu.memory_space<vmem>>, vector<1x1x32x64xbf16>
    %11 = vector.shape_cast %10 : vector<1x1x32x64xbf16> to vector<32x64xbf16>
    %cst = arith.constant dense<0.000000e+00> : vector<64x64xf32>
    %12 = tpu.matmul %9, %11, %cst {dimension_numbers = #tpu.dot_dimension_numbers<[1], [0], [0], [1], [0, 0, 1, 1], [], []>} : vector<64x32xbf16>, vector<32x64xbf16>, vector<64x64xf32> -> vector<64x64xf32>
    %13 = vector.extract_strided_slice %3 {offsets = [0, 0, 0], sizes = [8, 8, 32], strides = [1, 1, 1]} : vector<9x9x32xbf16> to vector<8x8x32xbf16>
    %14 = vector.shape_cast %13 : vector<8x8x32xbf16> to vector<64x32xbf16>
    %c0_16 = arith.constant 0 : index
    %c1_17 = arith.constant 1 : index
    %c0_18 = arith.constant 0 : index
    %c0_19 = arith.constant 0 : index
    %15 = vector.load %arg3[%c0_16, %c1_17, %c0_18, %c0_19] : memref<3x3x32x64xbf16, #tpu.memory_space<vmem>>, vector<1x1x32x64xbf16>
    %16 = vector.shape_cast %15 : vector<1x1x32x64xbf16> to vector<32x64xbf16>
    %cst_20 = arith.constant dense<0.000000e+00> : vector<64x64xf32>
    %17 = tpu.matmul %14, %16, %cst_20 {dimension_numbers = #tpu.dot_dimension_numbers<[1], [0], [0], [1], [0, 0, 1, 1], [], []>} : vector<64x32xbf16>, vector<32x64xbf16>, vector<64x64xf32> -> vector<64x64xf32>
    %18 = arith.addf %12, %17 : vector<64x64xf32>
    %19 = vector.extract_strided_slice %1 {offsets = [0, 1, 0], sizes = [8, 8, 32], strides = [1, 1, 1]} : vector<9x9x32xbf16> to vector<8x8x32xbf16>
    %20 = vector.shape_cast %19 : vector<8x8x32xbf16> to vector<64x32xbf16>
    %c0_21 = arith.constant 0 : index
    %c2_22 = arith.constant 2 : index
    %c0_23 = arith.constant 0 : index
    %c0_24 = arith.constant 0 : index
    %21 = vector.load %arg3[%c0_21, %c2_22, %c0_23, %c0_24] : memref<3x3x32x64xbf16, #tpu.memory_space<vmem>>, vector<1x1x32x64xbf16>
    %22 = vector.shape_cast %21 : vector<1x1x32x64xbf16> to vector<32x64xbf16>
    %cst_25 = arith.constant dense<0.000000e+00> : vector<64x64xf32>
    %23 = tpu.matmul %20, %22, %cst_25 {dimension_numbers = #tpu.dot_dimension_numbers<[1], [0], [0], [1], [0, 0, 1, 1], [], []>} : vector<64x32xbf16>, vector<32x64xbf16>, vector<64x64xf32> -> vector<64x64xf32>
    %24 = arith.addf %18, %23 : vector<64x64xf32>
    %25 = vector.extract_strided_slice %5 {offsets = [0, 0, 0], sizes = [8, 8, 32], strides = [1, 1, 1]} : vector<9x9x32xbf16> to vector<8x8x32xbf16>
    %26 = vector.shape_cast %25 : vector<8x8x32xbf16> to vector<64x32xbf16>
    %c1_26 = arith.constant 1 : index
    %c0_27 = arith.constant 0 : index
    %c0_28 = arith.constant 0 : index
    %c0_29 = arith.constant 0 : index
    %27 = vector.load %arg3[%c1_26, %c0_27, %c0_28, %c0_29] : memref<3x3x32x64xbf16, #tpu.memory_space<vmem>>, vector<1x1x32x64xbf16>
    %28 = vector.shape_cast %27 : vector<1x1x32x64xbf16> to vector<32x64xbf16>
    %cst_30 = arith.constant dense<0.000000e+00> : vector<64x64xf32>
    %29 = tpu.matmul %26, %28, %cst_30 {dimension_numbers = #tpu.dot_dimension_numbers<[1], [0], [0], [1], [0, 0, 1, 1], [], []>} : vector<64x32xbf16>, vector<32x64xbf16>, vector<64x64xf32> -> vector<64x64xf32>
    %30 = arith.addf %24, %29 : vector<64x64xf32>
    %31 = vector.extract_strided_slice %7 {offsets = [0, 0, 0], sizes = [8, 8, 32], strides = [1, 1, 1]} : vector<9x9x32xbf16> to vector<8x8x32xbf16>
    %32 = vector.shape_cast %31 : vector<8x8x32xbf16> to vector<64x32xbf16>
    %c1_31 = arith.constant 1 : index
    %c1_32 = arith.constant 1 : index
    %c0_33 = arith.constant 0 : index
    %c0_34 = arith.constant 0 : index
    %33 = vector.load %arg3[%c1_31, %c1_32, %c0_33, %c0_34] : memref<3x3x32x64xbf16, #tpu.memory_space<vmem>>, vector<1x1x32x64xbf16>
    %34 = vector.shape_cast %33 : vector<1x1x32x64xbf16> to vector<32x64xbf16>
    %cst_35 = arith.constant dense<0.000000e+00> : vector<64x64xf32>
    %35 = tpu.matmul %32, %34, %cst_35 {dimension_numbers = #tpu.dot_dimension_numbers<[1], [0], [0], [1], [0, 0, 1, 1], [], []>} : vector<64x32xbf16>, vector<32x64xbf16>, vector<64x64xf32> -> vector<64x64xf32>
    %36 = arith.addf %30, %35 : vector<64x64xf32>
    %37 = vector.extract_strided_slice %5 {offsets = [0, 1, 0], sizes = [8, 8, 32], strides = [1, 1, 1]} : vector<9x9x32xbf16> to vector<8x8x32xbf16>
    %38 = vector.shape_cast %37 : vector<8x8x32xbf16> to vector<64x32xbf16>
    %c1_36 = arith.constant 1 : index
    %c2_37 = arith.constant 2 : index
    %c0_38 = arith.constant 0 : index
    %c0_39 = arith.constant 0 : index
    %39 = vector.load %arg3[%c1_36, %c2_37, %c0_38, %c0_39] : memref<3x3x32x64xbf16, #tpu.memory_space<vmem>>, vector<1x1x32x64xbf16>
    %40 = vector.shape_cast %39 : vector<1x1x32x64xbf16> to vector<32x64xbf16>
    %cst_40 = arith.constant dense<0.000000e+00> : vector<64x64xf32>
    %41 = tpu.matmul %38, %40, %cst_40 {dimension_numbers = #tpu.dot_dimension_numbers<[1], [0], [0], [1], [0, 0, 1, 1], [], []>} : vector<64x32xbf16>, vector<32x64xbf16>, vector<64x64xf32> -> vector<64x64xf32>
    %42 = arith.addf %36, %41 : vector<64x64xf32>
    %43 = vector.extract_strided_slice %1 {offsets = [1, 0, 0], sizes = [8, 8, 32], strides = [1, 1, 1]} : vector<9x9x32xbf16> to vector<8x8x32xbf16>
    %44 = vector.shape_cast %43 : vector<8x8x32xbf16> to vector<64x32xbf16>
    %c2_41 = arith.constant 2 : index
    %c0_42 = arith.constant 0 : index
    %c0_43 = arith.constant 0 : index
    %c0_44 = arith.constant 0 : index
    %45 = vector.load %arg3[%c2_41, %c0_42, %c0_43, %c0_44] : memref<3x3x32x64xbf16, #tpu.memory_space<vmem>>, vector<1x1x32x64xbf16>
    %46 = vector.shape_cast %45 : vector<1x1x32x64xbf16> to vector<32x64xbf16>
    %cst_45 = arith.constant dense<0.000000e+00> : vector<64x64xf32>
    %47 = tpu.matmul %44, %46, %cst_45 {dimension_numbers = #tpu.dot_dimension_numbers<[1], [0], [0], [1], [0, 0, 1, 1], [], []>} : vector<64x32xbf16>, vector<32x64xbf16>, vector<64x64xf32> -> vector<64x64xf32>
    %48 = arith.addf %42, %47 : vector<64x64xf32>
    %49 = vector.extract_strided_slice %3 {offsets = [1, 0, 0], sizes = [8, 8, 32], strides = [1, 1, 1]} : vector<9x9x32xbf16> to vector<8x8x32xbf16>
    %50 = vector.shape_cast %49 : vector<8x8x32xbf16> to vector<64x32xbf16>
    %c2_46 = arith.constant 2 : index
    %c1_47 = arith.constant 1 : index
    %c0_48 = arith.constant 0 : index
    %c0_49 = arith.constant 0 : index
    %51 = vector.load %arg3[%c2_46, %c1_47, %c0_48, %c0_49] : memref<3x3x32x64xbf16, #tpu.memory_space<vmem>>, vector<1x1x32x64xbf16>
    %52 = vector.shape_cast %51 : vector<1x1x32x64xbf16> to vector<32x64xbf16>
    %cst_50 = arith.constant dense<0.000000e+00> : vector<64x64xf32>
    %53 = tpu.matmul %50, %52, %cst_50 {dimension_numbers = #tpu.dot_dimension_numbers<[1], [0], [0], [1], [0, 0, 1, 1], [], []>} : vector<64x32xbf16>, vector<32x64xbf16>, vector<64x64xf32> -> vector<64x64xf32>
    %54 = arith.addf %48, %53 : vector<64x64xf32>
    %55 = vector.extract_strided_slice %1 {offsets = [1, 1, 0], sizes = [8, 8, 32], strides = [1, 1, 1]} : vector<9x9x32xbf16> to vector<8x8x32xbf16>
    %56 = vector.shape_cast %55 : vector<8x8x32xbf16> to vector<64x32xbf16>
    %c2_51 = arith.constant 2 : index
    %c2_52 = arith.constant 2 : index
    %c0_53 = arith.constant 0 : index
    %c0_54 = arith.constant 0 : index
    %57 = vector.load %arg3[%c2_51, %c2_52, %c0_53, %c0_54] : memref<3x3x32x64xbf16, #tpu.memory_space<vmem>>, vector<1x1x32x64xbf16>
    %58 = vector.shape_cast %57 : vector<1x1x32x64xbf16> to vector<32x64xbf16>
    %cst_55 = arith.constant dense<0.000000e+00> : vector<64x64xf32>
    %59 = tpu.matmul %56, %58, %cst_55 {dimension_numbers = #tpu.dot_dimension_numbers<[1], [0], [0], [1], [0, 0, 1, 1], [], []>} : vector<64x32xbf16>, vector<32x64xbf16>, vector<64x64xf32> -> vector<64x64xf32>
    %60 = arith.addf %54, %59 : vector<64x64xf32>
    %c0_56 = arith.constant 0 : index
    %c0_57 = arith.constant 0 : index
    %61 = vector.load %arg4[%c0_56, %c0_57] : memref<1x64xf32, #tpu.memory_space<vmem>>, vector<1x64xf32>
    %62 = vector.broadcast %61 : vector<1x64xf32> to vector<64x64xf32>
    %63 = arith.addf %60, %62 : vector<64x64xf32>
    %cst_58 = arith.constant 0.000000e+00 : f32
    %64 = vector.broadcast %cst_58 : f32 to vector<64x64xf32>
    %65 = arith.maximumf %63, %64 : vector<64x64xf32>
    %66 = arith.truncf %65 : vector<64x64xf32> to vector<64x64xbf16>
    %c0_59 = arith.constant 0 : index
    %c0_60 = arith.constant 0 : index
    %c0_61 = arith.constant 0 : index
    %67 = vector.load %arg5[%c0_59, %c0_60, %c0_61] : memref<1x64x64xbf16, #tpu.memory_space<vmem>>, vector<1x64x64xbf16>
    %68 = vector.shape_cast %67 : vector<1x64x64xbf16> to vector<64x64xbf16>
    %69 = vector.shape_cast %66 : vector<64x64xbf16> to vector<1x64x64xbf16>
    tpu.vector_store %arg5[%c0_59, %c0_60, %c0_61], %69 {strides = array<i32>} : memref<1x64x64xbf16, #tpu.memory_space<vmem>>, vector<1x64x64xbf16>,
    return
  }
  func.func @transform_0(%arg0: i32, %arg1: i32) -> (i32, i32, i32, i32) {
    %c0_i32 = arith.constant 0 : i32
    %c0_i32_0 = arith.constant 0 : i32
    %c0_i32_1 = arith.constant 0 : i32
    %c0_i32_2 = arith.constant 0 : i32
    return %arg0, %c0_i32, %c0_i32_0, %c0_i32_1 : i32, i32, i32, i32
  }
  func.func @transform_1(%arg0: i32, %arg1: i32) -> (i32, i32, i32, i32) {
    %c0_i32 = arith.constant 0 : i32
    %c0_i32_0 = arith.constant 0 : i32
    %c0_i32_1 = arith.constant 0 : i32
    %c0_i32_2 = arith.constant 0 : i32
    return %c0_i32, %c0_i32_0, %c0_i32_1, %arg1 : i32, i32, i32, i32
  }
  func.func @transform_2(%arg0: i32, %arg1: i32) -> (i32, i32) {
    %c0_i32 = arith.constant 0 : i32
    %c0_i32_0 = arith.constant 0 : i32
    return %c0_i32, %arg1 : i32, i32
  }
  func.func @transform_3(%arg0: i32, %arg1: i32) -> (i32, i32, i32) {
    %c0_i32 = arith.constant 0 : i32
    %c0_i32_0 = arith.constant 0 : i32
    return %arg0, %c0_i32, %arg1 : i32, i32, i32
  }
}

</mosaic_0001>

<llo_original>
// kernel: base_backbone_wrapper_forward.5
$region0: #{base_backbone_wrapper_forward.5}
  #allocation0 [shape = 'u32[]', space=smem, size = 0x4, offset = 0x4, fixed_abs, tag = 'smem constant byte address 0x4 - core index']
  #allocation1 [shape = 'u32[144,128]{1,0:T(1,128)}', space=vmem, size = 0x12000, scoped, tag = 'internal scratch']
  %s0 = inlined_call_operand.vmem [shape: bf16[8,17,17,4], index: 0, kind: input, shape index: {}]
  %s1 = inlined_call_operand.vmem [shape: f32[32,4,3,3], index: 1, kind: input, shape index: {}]
  %s2 = inlined_call_operand.vmem [shape: f32[32], index: 2, kind: input, shape index: {}]
  %s3 = inlined_call_operand.vmem [shape: f32[32], index: 3, kind: input, shape index: {}]
  %s4 = inlined_call_operand.vmem [shape: f32[32], index: 4, kind: input, shape index: {}]
  %s5 = inlined_call_operand.vmem [shape: bf16[2,256,32], index: 5, kind: output, shape index: {}]
  %s6 = sld [smem:[#allocation0]]
  $region57: #{base_backbone_wrapper_forward.5} parent=0
    _
  %s8 = ssub.s32 1, %s6
  %s9 = scalar_select 0, %s8, %s6
  loop: start=0, step=1, limit=4
  $region2: #{base_backbone_wrapper_forward.5} parent=0 // loop_pre_header
    _
  $region3: #{base_backbone_wrapper_forward.5} parent=0 // loop_header
    %s11 = sphi 0, %s15
    %p12 = scmp.ge.s32.totalorder %s11, 4
    %s18 = sphi 0, %s30
    %s19 = sphi 0, %s26
    %s20 = sphi 0, %s18
    %s21 = sphi 0, %s19
    %s22 = sphi 0, %s20
    %s23 = sphi 0, %s21
    %s33 = sphi 0, %s35
    %s36 = sphi 0, %s33
    %s37 = sphi 0, %s36
    %s53 = sphi 0, %s37
    %s59 = sphi 0, %s61
    %s62 = sphi 0, %s59
    %s63 = sphi 0, %s62
    %s79 = sphi 0, %s63
    %s89 = sphi 0, %s91
    %s92 = sphi 0, %s89
    %s93 = sphi 0, %s92
    %s109 = sphi 0, %s93
    %s113 = sphi 0, %s113
    %s115 = sphi 0, %s113
    %s116 = sphi 0, %s115
    %s130 = sphi 0, %s116
    %s134 = sphi 0, %s134
    %s136 = sphi 0, %s134
    %s137 = sphi 0, %s136
    %s151 = sphi 0, %s137
    %s155 = sphi 0, %s155
    %s157 = sphi 0, %s155
    %s158 = sphi 0, %s157
    %s172 = sphi 0, %s158
    %s180 = sphi 0, %s182
    %s183 = sphi 0, %s180
    %s184 = sphi 0, %s183
    %s200 = sphi 0, %s184
  $region4: #{base_backbone_wrapper_forward.5} parent=0 // loop_header_branch
    %14 = sbr.rel (%p12) target = $region8
  $region5: #{base_backbone_wrapper_forward.5} parent=0 // loop_body
    %s16 = ssub.s32 %s11, 1
    %s17 = ssub.s32 %s11, 2
    %s24 = sadd.s32 1, %s19
    %p25 = scmp.ge.s32.totalorder %s24, 1
    %s26 = scalar_select %p25, 0, %s24
    %s27 = sadd.s32 1, %s18
    %s28 = scalar_select %p25, %s27, %s18
    %p29 = scmp.ge.s32.totalorder %s28, 2
    %s30 = scalar_select %p29, 0, %s28
    %s31 = ssub.s32 %s18, %s30
    %p32 = scmp.eq.s32.totalorder %s31, 0
    %s34 = sadd.s32 %s33, 1
    %s35 = scalar_select %p32, %s33, %s34
    %p38 = pneg %p32
    %p39 = scmp.eq.s32.totalorder %s11, 1
    %p40 = por %p38, %p39
    %p41 = scmp.ne.s32.totalorder %s33, %s36
    %p42 = scmp.eq.s32.totalorder %s11, 0
    %p43 = por %p41, %p42
    %p44 = scmp.ne.s32.totalorder %s33, %s36
    %p45 = scmp.eq.s32.totalorder %s16, 1
    %p46 = por %p44, %p45
    %p47 = scmp.ne.s32.totalorder %s36, %s37
    %p48 = scmp.eq.s32.totalorder %s16, 0
    %p49 = por %p47, %p48
    %p50 = scmp.ne.s32.totalorder %s36, %s37
    %p51 = scmp.eq.s32.totalorder %s17, 1
    %p52 = por %p50, %p51
    %p54 = scmp.ne.s32.totalorder %s37, %s53
    %p55 = scmp.eq.s32.totalorder %s17, 0
    %p56 = por %p54, %p55
    %s57 = ssub.s32 %s19, %s26
    %p58 = scmp.eq.s32.totalorder %s57, 0
    %s60 = sadd.s32 %s59, 1
    %s61 = scalar_select %p58, %s59, %s60
    %p64 = pneg %p58
    %p65 = scmp.eq.s32.totalorder %s11, 1
    %p66 = por %p64, %p65
    %p67 = scmp.ne.s32.totalorder %s59, %s62
    %p68 = scmp.eq.s32.totalorder %s11, 0
    %p69 = por %p67, %p68
    %p70 = scmp.ne.s32.totalorder %s59, %s62
    %p71 = scmp.eq.s32.totalorder %s16, 1
    %p72 = por %p70, %p71
    %p73 = scmp.ne.s32.totalorder %s62, %s63
    %p74 = scmp.eq.s32.totalorder %s16, 0
    %p75 = por %p73, %p74
    %p76 = scmp.ne.s32.totalorder %s62, %s63
    %p77 = scmp.eq.s32.totalorder %s17, 1
    %p78 = por %p76, %p77
    %p80 = scmp.ne.s32.totalorder %s63, %s79
    %p81 = scmp.eq.s32.totalorder %s17, 0
    %p82 = por %p80, %p81
    %s83 = smul.addr %s19, 128
    %s84 = sshrl.u32 %s83, 7
    %s85 = smul.addr %s26, 128
    %s86 = sshrl.u32 %s85, 7
    %s87 = ssub.s32 %s84, %s86
    %p88 = scmp.eq.s32.totalorder %s87, 0
    %s90 = sadd.s32 %s89, 1
    %s91 = scalar_select %p88, %s89, %s90
    %p94 = pneg %p88
    %p95 = scmp.eq.s32.totalorder %s11, 1
    %p96 = por %p94, %p95
    %p97 = scmp.ne.s32.totalorder %s89, %s92
    %p98 = scmp.eq.s32.totalorder %s11, 0
    %p99 = por %p97, %p98
    %p100 = scmp.ne.s32.totalorder %s89, %s92
    %p101 = scmp.eq.s32.totalorder %s16, 1
    %p102 = por %p100, %p101
    %p103 = scmp.ne.s32.totalorder %s92, %s93
    %p104 = scmp.eq.s32.totalorder %s16, 0
    %p105 = por %p103, %p104
    %p106 = scmp.ne.s32.totalorder %s92, %s93
    %p107 = scmp.eq.s32.totalorder %s17, 1
    %p108 = por %p106, %p107
    %p110 = scmp.ne.s32.totalorder %s93, %s109
    %p111 = scmp.eq.s32.totalorder %s17, 0
    %p112 = por %p110, %p111
    %s114 = sadd.s32 %s113, 1
    %p117 = scmp.eq.s32.totalorder %s11, 1
    %p118 = scmp.ne.s32.totalorder %s113, %s115
    %p119 = scmp.eq.s32.totalorder %s11, 0
    %p120 = por %p118, %p119
    %p121 = scmp.ne.s32.totalorder %s113, %s115
    %p122 = scmp.eq.s32.totalorder %s16, 1
    %p123 = por %p121, %p122
    %p124 = scmp.ne.s32.totalorder %s115, %s116
    %p125 = scmp.eq.s32.totalorder %s16, 0
    %p126 = por %p124, %p125
    %p127 = scmp.ne.s32.totalorder %s115, %s116
    %p128 = scmp.eq.s32.totalorder %s17, 1
    %p129 = por %p127, %p128
    %p131 = scmp.ne.s32.totalorder %s116, %s130
    %p132 = scmp.eq.s32.totalorder %s17, 0
    %p133 = por %p131, %p132
    %s135 = sadd.s32 %s134, 1
    %p138 = scmp.eq.s32.totalorder %s11, 1
    %p139 = scmp.ne.s32.totalorder %s134, %s136
    %p140 = scmp.eq.s32.totalorder %s11, 0
    %p141 = por %p139, %p140
    %p142 = scmp.ne.s32.totalorder %s134, %s136
    %p143 = scmp.eq.s32.totalorder %s16, 1
    %p144 = por %p142, %p143
    %p145 = scmp.ne.s32.totalorder %s136, %s137
    %p146 = scmp.eq.s32.totalorder %s16, 0
    %p147 = por %p145, %p146
    %p148 = scmp.ne.s32.totalorder %s136, %s137
    %p149 = scmp.eq.s32.totalorder %s17, 1
    %p150 = por %p148, %p149
    %p152 = scmp.ne.s32.totalorder %s137, %s151
    %p153 = scmp.eq.s32.totalorder %s17, 0
    %p154 = por %p152, %p153
    %s156 = sadd.s32 %s155, 1
    %p159 = scmp.eq.s32.totalorder %s11, 1
    %p160 = scmp.ne.s32.totalorder %s155, %s157
    %p161 = scmp.eq.s32.totalorder %s11, 0
    %p162 = por %p160, %p161
    %p163 = scmp.ne.s32.totalorder %s155, %s157
    %p164 = scmp.eq.s32.totalorder %s16, 1
    %p165 = por %p163, %p164
    %p166 = scmp.ne.s32.totalorder %s157, %s158
    %p167 = scmp.eq.s32.totalorder %s16, 0
    %p168 = por %p166, %p167
    %p169 = scmp.ne.s32.totalorder %s157, %s158
    %p170 = scmp.eq.s32.totalorder %s17, 1
    %p171 = por %p169, %p170
    %p173 = scmp.ne.s32.totalorder %s158, %s172
    %p174 = scmp.eq.s32.totalorder %s17, 0
    %p175 = por %p173, %p174
    %s176 = ssub.s32 %s18, %s30
    %s177 = ssub.s32 %s19, %s26
    %s178 = sor.u32 %s176, %s177
    %p179 = scmp.eq.s32.totalorder %s178, 0
    %s181 = sadd.s32 %s180, 1
    %s182 = scalar_select %p179, %s180, %s181
    %p185 = pneg %p179
    %p186 = scmp.eq.s32.totalorder %s11, 1
    %p187 = por %p185, %p186
    %p188 = scmp.ne.s32.totalorder %s180, %s183
    %p189 = scmp.eq.s32.totalorder %s11, 0
    %p190 = por %p188, %p189
    %p191 = scmp.ne.s32.totalorder %s180, %s183
    %p192 = scmp.eq.s32.totalorder %s16, 1
    %p193 = por %p191, %p192
    %p194 = scmp.ne.s32.totalorder %s183, %s184
    %p195 = scmp.eq.s32.totalorder %s16, 0
    %p196 = por %p194, %p195
    %p197 = scmp.ne.s32.totalorder %s183, %s184
    %p198 = scmp.eq.s32.totalorder %s17, 1
    %p199 = por %p197, %p198
    %p201 = scmp.ne.s32.totalorder %s184, %s200
    %p202 = scmp.eq.s32.totalorder %s17, 0
    %p203 = por %p201, %p202
    %p204 = scmp.le.s32.totalorder 1, %s11
    %p205 = scmp.lt.s32.totalorder %s11, 3
    %p206 = pnand %p204, %p205
    %p207 = pneg %p206
    // Predicated region
    $region9: #{base_backbone_wrapper_forward.5} parent=5 // pred_check
      _
    $region10: #{base_backbone_wrapper_forward.5} parent=5 // pred_check_branch
      %209 = sbr.rel (%p206) target = $region12
    $region11: #{base_backbone_wrapper_forward.5} parent=5 // pred_region
      %s210 = ssub.s32 %s11, 1
      // Predicated region
      $region13: #{base_backbone_wrapper_forward.5} parent=11 // pred_check
        %p211 = pneg %p75
      $region14: #{base_backbone_wrapper_forward.5} parent=11 // pred_check_branch
        %213 = sbr.rel (%p211) target = $region16
      $region15: #{base_backbone_wrapper_forward.5} parent=11 // pred_region
        %p214 = scmp.lt.s32.totalorder %s21, 0
        %s215 = scalar_select %p214, %s21, 0
        %s216 = smul.addr %s215, 4
        %s217 = scalar_lea.vmem %s1, %s216
      $region16: #{base_backbone_wrapper_forward.5} parent=11 // pred_fallthru
        _
      // Predicated region
      $region17: #{base_backbone_wrapper_forward.5} parent=11 // pred_check
        %p218 = pneg %p105
      $region18: #{base_backbone_wrapper_forward.5} parent=11 // pred_check_branch
        %220 = sbr.rel (%p218) target = $region20
      $region19: #{base_backbone_wrapper_forward.5} parent=11 // pred_region
        %s221 = smul.addr %s21, 128
        %s222 = sshrl.u32 %s221, 7
        %p223 = scmp.lt.s32.totalorder %s222, 0
        %s224 = scalar_select %p223, %s222, 0
        %s225 = scalar_lea.vmem %s2, %s224
        %s226 = smul.addr %s21, 128
        %s227 = sshrl.u32 %s226, 7
      $region20: #{base_backbone_wrapper_forward.5} parent=11 // pred_fallthru
        _
      // Predicated region
      $region21: #{base_backbone_wrapper_forward.5} parent=11 // pred_check
        %p228 = pneg %p126
      $region22: #{base_backbone_wrapper_forward.5} parent=11 // pred_check_branch
        %230 = sbr.rel (%p228) target = $region24
      $region23: #{base_backbone_wrapper_forward.5} parent=11 // pred_region
        _
      $region24: #{base_backbone_wrapper_forward.5} parent=11 // pred_fallthru
        _
      // Predicated region
      $region25: #{base_backbone_wrapper_forward.5} parent=11 // pred_check
        %p231 = pneg %p147
      $region26: #{base_backbone_wrapper_forward.5} parent=11 // pred_check_branch
        %233 = sbr.rel (%p231) target = $region28
      $region27: #{base_backbone_wrapper_forward.5} parent=11 // pred_region
        _
      $region28: #{base_backbone_wrapper_forward.5} parent=11 // pred_fallthru
        _
      // Predicated region
      $region29: #{base_backbone_wrapper_forward.5} parent=11 // pred_check
        %p234 = pneg %p168
      $region30: #{base_backbone_wrapper_forward.5} parent=11 // pred_check_branch
        %236 = sbr.rel (%p234) target = $region32
      $region31: #{base_backbone_wrapper_forward.5} parent=11 // pred_region
        _
      $region32: #{base_backbone_wrapper_forward.5} parent=11 // pred_fallthru
        _
    $region12: #{base_backbone_wrapper_forward.5} parent=5 // pred_fallthru
      _
    %p237 = scmp.lt.s32.totalorder %s11, 2
    // Predicated region
    $region33: #{base_backbone_wrapper_forward.5} parent=5 // pred_check
      %p238 = pneg %p237
    $region34: #{base_backbone_wrapper_forward.5} parent=5 // pred_check_branch
      %240 = sbr.rel (%p238) target = $region36
    $region35: #{base_backbone_wrapper_forward.5} parent=5 // pred_region
      // Predicated region
      $region37: #{base_backbone_wrapper_forward.5} parent=35 // pred_check
        %p241 = pneg %p43
      $region38: #{base_backbone_wrapper_forward.5} parent=35 // pred_check_branch
        %243 = sbr.rel (%p241) target = $region40
      $region39: #{base_backbone_wrapper_forward.5} parent=35 // pred_region
        %s244 = smul.u32 4, %s18
        %p245 = scmp.lt.s32.totalorder %s244, 7
        %s246 = scalar_select %p245, %s244, 7
        %s247 = smul.addr %s246, 51
        %s248 = smul.addr %s247, 4
        %s249 = scalar_lea.vmem %s0, %s248
        %s250 = smul.u32 4, %s18
      $region40: #{base_backbone_wrapper_forward.5} parent=35 // pred_fallthru
        _
    $region36: #{base_backbone_wrapper_forward.5} parent=5 // pred_fallthru
      _
    %p251 = scmp.le.s32.totalorder 1, %s11
    %p252 = scmp.lt.s32.totalorder %s11, 3
    %p253 = pnand %p251, %p252
    %p254 = pneg %p253
    // Predicated region
    $region41: #{base_backbone_wrapper_forward.5} parent=5 // pred_check
      _
    $region42: #{base_backbone_wrapper_forward.5} parent=5 // pred_check_branch
      %256 = sbr.rel (%p253) target = $region44
    $region43: #{base_backbone_wrapper_forward.5} parent=5 // pred_region
      #allocation2 [shape = 'u8[9216]{0}', space=vmem, size = 0x2400, dematerialized = true, scoped, tag = 'FusionAdapter Buffer %fusion.6 = bf16[3,3,4,32]{3,2,1,0:T(4,128)(2,1)} fusion(%param_1.15, %param_2.5), kind=kLoop, calls=%fused_computation.8.clone.clone, metadata={op_name="jit(base_backbone_wrapper_forward)/convert_element_type" stack_frame_id=26}']
      #allocation3 [shape = 'u8[512]{0}', space=vmem, size = 0x400, dematerialized = true, scoped, tag = 'FusionAdapter Buffer %fusion.9 = f32[1,32]{1,0:T(1,128)} fusion(%param_3.7, %param_4.3, %param_2.5), kind=kLoop, calls=%fused_computation.12.clone, metadata={op_name="jit(base_backbone_wrapper_forward)/reshape" stack_frame_id=24}']
      %s257 = ssub.s32 %s11, 1
      %s258 = smul.u32 4, %s20
      %p259 = scmp.lt.s32.totalorder %s258, 7
      %s260 = scalar_select %p259, %s258, 7
      %s261 = smul.addr %s260, 51
      %s262 = smul.addr %s261, 4
      %s263 = scalar_lea.vmem %s0, %s262
      %p264 = pneg %p49
      %p265 = pneg %p46
      %p266 = scmp.lt.s32.totalorder %s21, 0
      %s267 = scalar_select %p266, %s21, 0
      %s268 = smul.addr %s267, 4
      %s269 = scalar_lea.vmem %s1, %s268
      %p270 = pneg %p75
      %p271 = pneg %p72
      %s272 = smul.addr %s21, 128
      %s273 = sshrl.u32 %s272, 7
      %p274 = scmp.lt.s32.totalorder %s273, 0
      %s275 = scalar_select %p274, %s273, 0
      %s276 = scalar_lea.vmem %s2, %s275
      %p277 = pneg %p105
      %p278 = pneg %p102
      %p279 = pneg %p126
      %p280 = pneg %p123
      %p281 = pneg %p147
      %p282 = pneg %p144
      %p283 = pneg %p168
      %p284 = pneg %p165
      %p285 = pneg %p196
      %p286 = pneg %p193
      %p287 = scmp.lt.s32.totalorder %s20, 1
      %s288 = scalar_select %p287, %s20, 1
      %p289 = scmp.lt.s32.totalorder %s21, 0
      %s290 = scalar_select %p289, %s21, 0
      %s291 = smul.addr %s288, 32
      %s292 = sadd.s32 %s290, %s291
      %s293 = smul.addr %s292, 4
      %s294 = scalar_lea.vmem %s5, %s293
      %s295 = smul.u32 4, %s20
      %p296 = scmp.lt.s32.totalorder %s295, 7
      %s297 = scalar_select %p296, %s295, 7
      %s298 = smul.addr %s297, 51
      %s299 = smul.addr %s298, 4
      %s300 = scalar_lea.vmem %s0, %s299
      %s301 = smul.u32 4, %s20
      %p302 = scmp.lt.s32.totalorder %s21, 0
      %s303 = scalar_select %p302, %s21, 0
      %s304 = smul.addr %s303, 4
      %s305 = scalar_lea.vmem %s1, %s304
      %s306 = smul.addr %s21, 128
      %s307 = sshrl.u32 %s306, 7
      %p308 = scmp.lt.s32.totalorder %s307, 0
      %s309 = scalar_select %p308, %s307, 0
      %s310 = scalar_lea.vmem %s2, %s309
      %s311 = smul.addr %s21, 128
      %s312 = sshrl.u32 %s311, 7
      %p313 = scmp.lt.s32.totalorder %s20, 1
      %s314 = scalar_select %p313, %s20, 1
      %p315 = scmp.lt.s32.totalorder %s21, 0
      %s316 = scalar_select %p315, %s21, 0
      %s317 = smul.addr %s314, 32
      %s318 = sadd.s32 %s316, %s317
      %s319 = smul.addr %s318, 4
      %s320 = scalar_lea.vmem %s5, %s319
      %s321 = smul.addr %s21, 128
      %v322 = vld [vmem:[%s305] sm:$0xf]
      %s323 = scalar_lea.vmem %s2, %s312
      %v324 = vld [vmem:[%s323] ss:$0 sm:$0xff]
      %325 = xla_tuple %v322, %v324
      %326 = xla_tuple %325
      %v327 = vmul.f32 %v322, %v324
      %328 = xla_tuple %v327
      %329 = xla_tuple %v327
      %330 = xla_tuple %329
      %331 = xla_tuple %v327
      %v332 = vpack.c.bf16 0.0, %v327
      %s334 = ssub.s32 4, 1
      %335 = vst [vmem:[#allocation2] sm:%s334] %v332
      %s336 = scalar_lea.vmem %s305, 4
      %v337 = vld [vmem:[%s336] sm:$0xf]
      %338 = xla_tuple %v337, %v324
      %339 = xla_tuple %338
      %v340 = vmul.f32 %v337, %v324
      %341 = xla_tuple %v340
      %342 = xla_tuple %v340
      %343 = xla_tuple %342
      %344 = xla_tuple %v340
      %s345 = scalar_lea.vmem [#allocation2], 2
      %v346 = vpack.c.bf16 0.0, %v340
      %s348 = ssub.s32 4, 1
      %349 = vst [vmem:[%s345] sm:%s348] %v346
      %s350 = scalar_lea.vmem %s305, 8
      %v351 = vld [vmem:[%s350] sm:$0xf]
      %352 = xla_tuple %v351, %v324
      %353 = xla_tuple %352
      %v354 = vmul.f32 %v351, %v324
      %355 = xla_tuple %v354
      %356 = xla_tuple %v354
      %357 = xla_tuple %356
      %358 = xla_tuple %v354
      %s359 = scalar_lea.vmem [#allocation2], 4
      %v360 = vpack.c.bf16 0.0, %v354
      %s362 = ssub.s32 4, 1
      %363 = vst [vmem:[%s359] sm:%s362] %v360
      %s364 = scalar_lea.vmem %s305, 12
      %v365 = vld [vmem:[%s364] sm:$0xf]
      %366 = xla_tuple %v365, %v324
      %367 = xla_tuple %366
      %v368 = vmul.f32 %v365, %v324
      %369 = xla_tuple %v368
      %370 = xla_tuple %v368
      %371 = xla_tuple %370
      %372 = xla_tuple %v368
      %s373 = scalar_lea.vmem [#allocation2], 6
      %v374 = vpack.c.bf16 0.0, %v368
      %s376 = ssub.s32 4, 1
      %377 = vst [vmem:[%s373] sm:%s376] %v374
      %s378 = scalar_lea.vmem %s305, 16
      %v379 = vld [vmem:[%s378] sm:$0xf]
      %380 = xla_tuple %v379, %v324
      %381 = xla_tuple %380
      %v382 = vmul.f32 %v379, %v324
      %383 = xla_tuple %v382
      %384 = xla_tuple %v382
      %385 = xla_tuple %384
      %386 = xla_tuple %v382
      %s387 = scalar_lea.vmem [#allocation2], 8
      %v388 = vpack.c.bf16 0.0, %v382
      %s390 = ssub.s32 4, 1
      %391 = vst [vmem:[%s387] sm:%s390] %v388
      %s392 = scalar_lea.vmem %s305, 20
      %v393 = vld [vmem:[%s392] sm:$0xf]
      %394 = xla_tuple %v393, %v324
      %395 = xla_tuple %394
      %v396 = vmul.f32 %v393, %v324
      %397 = xla_tuple %v396
      %398 = xla_tuple %v396
      %399 = xla_tuple %398
      %400 = xla_tuple %v396
      %s401 = scalar_lea.vmem [#allocation2], 10
      %v402 = vpack.c.bf16 0.0, %v396
      %s404 = ssub.s32 4, 1
      %405 = vst [vmem:[%s401] sm:%s404] %v402
      %s406 = scalar_lea.vmem %s305, 24
      %v407 = vld [vmem:[%s406] sm:$0xf]
      %408 = xla_tuple %v407, %v324
      %409 = xla_tuple %408
      %v410 = vmul.f32 %v407, %v324
      %411 = xla_tuple %v410
      %412 = xla_tuple %v410
      %413 = xla_tuple %412
      %414 = xla_tuple %v410
      %s415 = scalar_lea.vmem [#allocation2], 12
      %v416 = vpack.c.bf16 0.0, %v410
      %s418 = ssub.s32 4, 1
      %419 = vst [vmem:[%s415] sm:%s418] %v416
      %s420 = scalar_lea.vmem %s305, 28
      %v421 = vld [vmem:[%s420] sm:$0xf]
      %422 = xla_tuple %v421, %v324
      %423 = xla_tuple %422
      %v424 = vmul.f32 %v421, %v324
      %425 = xla_tuple %v424
      %426 = xla_tuple %v424
      %427 = xla_tuple %426
      %428 = xla_tuple %v424
      %s429 = scalar_lea.vmem [#allocation2], 14
      %v430 = vpack.c.bf16 0.0, %v424
      %s432 = ssub.s32 4, 1
      %433 = vst [vmem:[%s429] sm:%s432] %v430
      %s434 = scalar_lea.vmem %s305, 32
      %v435 = vld [vmem:[%s434] sm:$0xf]
      %436 = xla_tuple %v435, %v324
      %437 = xla_tuple %436
      %v438 = vmul.f32 %v435, %v324
      %439 = xla_tuple %v438
      %440 = xla_tuple %v438
      %441 = xla_tuple %440
      %442 = xla_tuple %v438
      %s443 = scalar_lea.vmem [#allocation2], 16
      %v444 = vpack.c.bf16 0.0, %v438
      %s446 = ssub.s32 4, 1
      %447 = vst [vmem:[%s443] sm:%s446] %v444
      %v448 = vld [vmem:[%s3] sm:$0x1]
      %v449 = vld [vmem:[%s4] sm:$0x1]
      %v450 = vld [vmem:[%s2] sm:$0x1]
      %451 = xla_tuple %v449, %v450
      %452 = xla_tuple %451
      %v453 = vmul.f32 %v449, %v450
      %454 = xla_tuple %v453
      %455 = xla_tuple %v448, %v453
      %456 = xla_tuple %455
      %v457 = vsub.f32 %v448, %v453
      %458 = xla_tuple %v457
      %s460 = ssub.s32 2, 1
      %461 = vst [vmem:[#allocation3] sm:%s460] %v457
      %v463 = vld [vmem:[%s300] sm:$0xf]
      %v464 = vld [vmem:[%s300 + $0x4] sm:$0xf]
      %v465 = vld [vmem:[%s300 + $0x8] sm:$0x1]
      %v466 = vld [vmem:[%s300 + $0xc] sm:$0xf]
      %v467 = vld [vmem:[%s300 + $0x10] sm:$0xf]
      %v468 = vld [vmem:[%s300 + $0x14] sm:$0x1]
      %v469 = vld [vmem:[%s300 + $0x18] sm:$0xf]
      %v470 = vld [vmem:[%s300 + $0x1c] sm:$0xf]
      %v471 = vld [vmem:[%s300 + $0x20] sm:$0x1]
      %v472 = vld [vmem:[%s300 + $0x24] sm:$0xf]
      %v473 = vld [vmem:[%s300 + $0x28] sm:$0xf]
      %v474 = vld [vmem:[%s300 + $0x2c] sm:$0x1]
      %v475 = vld [vmem:[%s300 + $0x30] sm:$0xf]
      %v476 = vld [vmem:[%s300 + $0x34] sm:$0xf]
      %v477 = vld [vmem:[%s300 + $0x38] sm:$0x1]
      %v478 = vld [vmem:[%s300 + $0x3c] sm:$0xf]
      %v479 = vld [vmem:[%s300 + $0x40] sm:$0xf]
      %v480 = vld [vmem:[%s300 + $0x44] sm:$0x1]
      %v481 = vld [vmem:[%s300 + $0x48] sm:$0xf]
      %v482 = vld [vmem:[%s300 + $0x4c] sm:$0xf]
      %v483 = vld [vmem:[%s300 + $0x50] sm:$0x1]
      %v484 = vld [vmem:[%s300 + $0x54] sm:$0xf]
      %v485 = vld [vmem:[%s300 + $0x58] sm:$0xf]
      %v486 = vld [vmem:[%s300 + $0x5c] sm:$0x1]
      %v487 = vld [vmem:[%s300 + $0x60] sm:$0xf]
      %v488 = vld [vmem:[%s300 + $0x64] sm:$0xf]
      %v489 = vld [vmem:[%s300 + $0x68] sm:$0x1]
      %v490 = vld [vmem:[%s300 + $0x6c] sm:$0xf]
      %v491 = vld [vmem:[%s300 + $0x70] sm:$0xf]
      %v492 = vld [vmem:[%s300 + $0x74] sm:$0x1]
      %v493 = vld [vmem:[%s300 + $0x78] sm:$0xf]
      %v494 = vld [vmem:[%s300 + $0x7c] sm:$0xf]
      %v495 = vld [vmem:[%s300 + $0x80] sm:$0x1]
      %v496 = vld [vmem:[%s300 + $0x84] sm:$0xf]
      %v497 = vld [vmem:[%s300 + $0x88] sm:$0xf]
      %v498 = vld [vmem:[%s300 + $0x8c] sm:$0x1]
      %v499 = vld [vmem:[%s300 + $0x90] sm:$0xf]
      %v500 = vld [vmem:[%s300 + $0x94] sm:$0xf]
      %v501 = vld [vmem:[%s300 + $0x98] sm:$0x1]
      %v502 = vld [vmem:[%s300 + $0x9c] sm:$0xf]
      %v503 = vld [vmem:[%s300 + $0xa0] sm:$0xf]
      %v504 = vld [vmem:[%s300 + $0xa4] sm:$0x1]
      %v505 = vld [vmem:[%s300 + $0xa8] sm:$0xf]
      %v506 = vld [vmem:[%s300 + $0xac] sm:$0xf]
      %v507 = vld [vmem:[%s300 + $0xb0] sm:$0x1]
      %v508 = vld [vmem:[%s300 + $0xb4] sm:$0xf]
      %v509 = vld [vmem:[%s300 + $0xb8] sm:$0xf]
      %v510 = vld [vmem:[%s300 + $0xbc] sm:$0x1]
      %v511 = vld [vmem:[%s300 + $0xc0] sm:$0xf]
      %v512 = vld [vmem:[%s300 + $0xc4] sm:$0xf]
      %v513 = vld [vmem:[%s300 + $0xc8] sm:$0x1]
      %s514 = scalar_lea.vmem %s300, 204
      %v515 = vld [vmem:[%s514] sm:$0xf]
      %v516 = vld [vmem:[%s514 + $0x4] sm:$0xf]
      %v517 = vld [vmem:[%s514 + $0xc] sm:$0xf]
      %v518 = vld [vmem:[%s514 + $0x10] sm:$0xf]
      %v519 = vld [vmem:[%s514 + $0x18] sm:$0xf]
      %v520 = vld [vmem:[%s514 + $0x1c] sm:$0xf]
      %v521 = vld [vmem:[%s514 + $0x24] sm:$0xf]
      %v522 = vld [vmem:[%s514 + $0x28] sm:$0xf]
      %v523 = vld [vmem:[%s514 + $0x30] sm:$0xf]
      %v524 = vld [vmem:[%s514 + $0x34] sm:$0xf]
      %v525 = vld [vmem:[%s514 + $0x3c] sm:$0xf]
      %v526 = vld [vmem:[%s514 + $0x40] sm:$0xf]
      %v527 = vld [vmem:[%s514 + $0x48] sm:$0xf]
      %v528 = vld [vmem:[%s514 + $0x4c] sm:$0xf]
      %v529 = vld [vmem:[%s514 + $0x54] sm:$0xf]
      %v530 = vld [vmem:[%s514 + $0x58] sm:$0xf]
      %v531 = vld [vmem:[%s514 + $0x60] sm:$0xf]
      %v532 = vld [vmem:[%s514 + $0x64] sm:$0xf]
      %v533 = vld [vmem:[%s514 + $0x6c] sm:$0xf]
      %v534 = vld [vmem:[%s514 + $0x70] sm:$0xf]
      %v535 = vld [vmem:[%s514 + $0x78] sm:$0xf]
      %v536 = vld [vmem:[%s514 + $0x7c] sm:$0xf]
      %v537 = vld [vmem:[%s514 + $0x84] sm:$0xf]
      %v538 = vld [vmem:[%s514 + $0x88] sm:$0xf]
      %v539 = vld [vmem:[%s514 + $0x90] sm:$0xf]
      %v540 = vld [vmem:[%s514 + $0x94] sm:$0xf]
      %v541 = vld [vmem:[%s514 + $0x9c] sm:$0xf]
      %v542 = vld [vmem:[%s514 + $0xa0] sm:$0xf]
      %v543 = vld [vmem:[%s514 + $0xa8] sm:$0xf]
      %v544 = vld [vmem:[%s514 + $0xac] sm:$0xf]
      %v545 = vld [vmem:[%s514 + $0xb4] sm:$0xf]
      %v546 = vld [vmem:[%s514 + $0xb8] sm:$0xf]
      %v547 = vld [vmem:[%s514 + $0xc0] sm:$0xf]
      %v548 = vld [vmem:[%s514 + $0xc4] sm:$0xf]
      %s549 = scalar_lea.vmem %s300, 408
      %v550 = vld [vmem:[%s549] sm:$0xf]
      %v551 = vld [vmem:[%s549 + $0x4] sm:$0xf]
      %v552 = vld [vmem:[%s549 + $0x8] sm:$0x1]
      %v553 = vld [vmem:[%s549 + $0xc] sm:$0xf]
      %v554 = vld [vmem:[%s549 + $0x10] sm:$0xf]
      %v555 = vld [vmem:[%s549 + $0x14] sm:$0x1]
      %v556 = vld [vmem:[%s549 + $0x18] sm:$0xf]
      %v557 = vld [vmem:[%s549 + $0x1c] sm:$0xf]
      %v558 = vld [vmem:[%s549 + $0x20] sm:$0x1]
      %v559 = vld [vmem:[%s549 + $0x24] sm:$0xf]
      %v560 = vld [vmem:[%s549 + $0x28] sm:$0xf]
      %v561 = vld [vmem:[%s549 + $0x2c] sm:$0x1]
      %v562 = vld [vmem:[%s549 + $0x30] sm:$0xf]
      %v563 = vld [vmem:[%s549 + $0x34] sm:$0xf]
      %v564 = vld [vmem:[%s549 + $0x38] sm:$0x1]
      %v565 = vld [vmem:[%s549 + $0x3c] sm:$0xf]
      %v566 = vld [vmem:[%s549 + $0x40] sm:$0xf]
      %v567 = vld [vmem:[%s549 + $0x44] sm:$0x1]
      %v568 = vld [vmem:[%s549 + $0x48] sm:$0xf]
      %v569 = vld [vmem:[%s549 + $0x4c] sm:$0xf]
      %v570 = vld [vmem:[%s549 + $0x50] sm:$0x1]
      %v571 = vld [vmem:[%s549 + $0x54] sm:$0xf]
      %v572 = vld [vmem:[%s549 + $0x58] sm:$0xf]
      %v573 = vld [vmem:[%s549 + $0x5c] sm:$0x1]
      %v574 = vld [vmem:[%s549 + $0x60] sm:$0xf]
      %v575 = vld [vmem:[%s549 + $0x64] sm:$0xf]
      %v576 = vld [vmem:[%s549 + $0x68] sm:$0x1]
      %v577 = vld [vmem:[%s549 + $0x6c] sm:$0xf]
      %v578 = vld [vmem:[%s549 + $0x70] sm:$0xf]
      %v579 = vld [vmem:[%s549 + $0x74] sm:$0x1]
      %v580 = vld [vmem:[%s549 + $0x78] sm:$0xf]
      %v581 = vld [vmem:[%s549 + $0x7c] sm:$0xf]
      %v582 = vld [vmem:[%s549 + $0x80] sm:$0x1]
      %v583 = vld [vmem:[%s549 + $0x84] sm:$0xf]
      %v584 = vld [vmem:[%s549 + $0x88] sm:$0xf]
      %v585 = vld [vmem:[%s549 + $0x8c] sm:$0x1]
      %v586 = vld [vmem:[%s549 + $0x90] sm:$0xf]
      %v587 = vld [vmem:[%s549 + $0x94] sm:$0xf]
      %v588 = vld [vmem:[%s549 + $0x98] sm:$0x1]
      %v589 = vld [vmem:[%s549 + $0x9c] sm:$0xf]
      %v590 = vld [vmem:[%s549 + $0xa0] sm:$0xf]
      %v591 = vld [vmem:[%s549 + $0xa4] sm:$0x1]
      %v592 = vld [vmem:[%s549 + $0xa8] sm:$0xf]
      %v593 = vld [vmem:[%s549 + $0xac] sm:$0xf]
      %v594 = vld [vmem:[%s549 + $0xb0] sm:$0x1]
      %v595 = vld [vmem:[%s549 + $0xb4] sm:$0xf]
      %v596 = vld [vmem:[%s549 + $0xb8] sm:$0xf]
      %v597 = vld [vmem:[%s549 + $0xbc] sm:$0x1]
      %s598 = scalar_lea.vmem %s300, 612
      %v599 = vld [vmem:[%s598] sm:$0xf]
      %v600 = vld [vmem:[%s598 + $0x4] sm:$0xf]
      %v601 = vld [vmem:[%s598 + $0xc] sm:$0xf]
      %v602 = vld [vmem:[%s598 + $0x10] sm:$0xf]
      %v603 = vld [vmem:[%s598 + $0x18] sm:$0xf]
      %v604 = vld [vmem:[%s598 + $0x1c] sm:$0xf]
      %v605 = vld [vmem:[%s598 + $0x24] sm:$0xf]
      %v606 = vld [vmem:[%s598 + $0x28] sm:$0xf]
      %v607 = vld [vmem:[%s598 + $0x30] sm:$0xf]
      %v608 = vld [vmem:[%s598 + $0x34] sm:$0xf]
      %v609 = vld [vmem:[%s598 + $0x3c] sm:$0xf]
      %v610 = vld [vmem:[%s598 + $0x40] sm:$0xf]
      %v611 = vld [vmem:[%s598 + $0x48] sm:$0xf]
      %v612 = vld [vmem:[%s598 + $0x4c] sm:$0xf]
      %v613 = vld [vmem:[%s598 + $0x54] sm:$0xf]
      %v614 = vld [vmem:[%s598 + $0x58] sm:$0xf]
      %v615 = vld [vmem:[%s598 + $0x60] sm:$0xf]
      %v616 = vld [vmem:[%s598 + $0x64] sm:$0xf]
      %v617 = vld [vmem:[%s598 + $0x6c] sm:$0xf]
      %v618 = vld [vmem:[%s598 + $0x70] sm:$0xf]
      %v619 = vld [vmem:[%s598 + $0x78] sm:$0xf]
      %v620 = vld [vmem:[%s598 + $0x7c] sm:$0xf]
      %v621 = vld [vmem:[%s598 + $0x84] sm:$0xf]
      %v622 = vld [vmem:[%s598 + $0x88] sm:$0xf]
      %v623 = vld [vmem:[%s598 + $0x90] sm:$0xf]
      %v624 = vld [vmem:[%s598 + $0x94] sm:$0xf]
      %v625 = vld [vmem:[%s598 + $0x9c] sm:$0xf]
      %v626 = vld [vmem:[%s598 + $0xa0] sm:$0xf]
      %v627 = vld [vmem:[%s598 + $0xa8] sm:$0xf]
      %v628 = vld [vmem:[%s598 + $0xac] sm:$0xf]
      %v629 = vld [vmem:[%s598 + $0xb4] sm:$0xf]
      %v630 = vld [vmem:[%s598 + $0xb8] sm:$0xf]
      %v631 = vld [vmem:[#allocation2] sm:$0x3]
      %s632 = scalar_lea.vmem [#allocation2], 2
      %v633 = vld [vmem:[%s632] sm:$0x3]
      %v666 = vunpack.c.l.b16 %v515
      %v667 = vunpack.c.l.b16 %v516
      %v668 = vunpack.c.l.b16 %v517
      %v669 = vunpack.c.l.b16 %v518
      %v670 = vunpack.c.l.b16 %v519
      %v671 = vunpack.c.l.b16 %v520
      %v672 = vunpack.c.l.b16 %v521
      %v673 = vunpack.c.l.b16 %v522
      %v674 = vunpack.c.l.b16 %v523
      %v675 = vunpack.c.l.b16 %v524
      %v676 = vunpack.c.l.b16 %v525
      %v677 = vunpack.c.l.b16 %v526
      %v678 = vunpack.c.l.b16 %v527
      %v679 = vunpack.c.l.b16 %v528
      %v680 = vunpack.c.l.b16 %v529
      %v681 = vunpack.c.l.b16 %v530
      %v682 = vunpack.c.l.b16 %v531
      %v683 = vunpack.c.l.b16 %v532
      %v684 = vunpack.c.l.b16 %v533
      %v685 = vunpack.c.l.b16 %v534
      %v686 = vunpack.c.l.b16 %v535
      %v687 = vunpack.c.l.b16 %v536
      %v688 = vunpack.c.l.b16 %v537
      %v689 = vunpack.c.l.b16 %v538
      %v690 = vunpack.c.l.b16 %v539
      %v691 = vunpack.c.l.b16 %v540
      %v692 = vunpack.c.l.b16 %v541
      %v693 = vunpack.c.l.b16 %v542
      %v694 = vunpack.c.l.b16 %v543
      %v695 = vunpack.c.l.b16 %v544
      %v696 = vunpack.c.l.b16 %v545
      %v697 = vunpack.c.l.b16 %v546
      %v698 = vpack.c.b16 %v667, %v666
      %v699 = vpack.c.b16 %v669, %v668
      %v700 = vpack.c.b16 %v671, %v670
      %v701 = vpack.c.b16 %v673, %v672
      %v702 = vpack.c.b16 %v675, %v674
      %v703 = vpack.c.b16 %v677, %v676
      %v704 = vpack.c.b16 %v679, %v678
      %v705 = vpack.c.b16 %v681, %v680
      %v706 = vpack.c.b16 %v683, %v682
      %v707 = vpack.c.b16 %v685, %v684
      %v708 = vpack.c.b16 %v687, %v686
      %v709 = vpack.c.b16 %v689, %v688
      %v710 = vpack.c.b16 %v691, %v690
      %v711 = vpack.c.b16 %v693, %v692
      %v712 = vpack.c.b16 %v695, %v694
      %v713 = vpack.c.b16 %v697, %v696
      %vm714 = vcmask 31744
      %v716 = vsel %vm714, %v698, 0
      %v719 = vsel %vm714, %v699, 0
      %v722 = vsel %vm714, %v700, 0
      %v725 = vsel %vm714, %v701, 0
      %v728 = vsel %vm714, %v702, 0
      %v731 = vsel %vm714, %v703, 0
      %v734 = vsel %vm714, %v704, 0
      %v737 = vsel %vm714, %v705, 0
      %v740 = vsel %vm714, %v706, 0
      %v743 = vsel %vm714, %v707, 0
      %v746 = vsel %vm714, %v708, 0
      %v749 = vsel %vm714, %v709, 0
      %v752 = vsel %vm714, %v710, 0
      %v755 = vsel %vm714, %v711, 0
      %v758 = vsel %vm714, %v712, 0
      %v761 = vsel %vm714, %v713, 0
      %vm763 = vcmask 1041408
      %v765 = vsel %vm763, %v633, 0
      %767 = vmatprep.subr.bf16.mxu0 0
      %768 = vmatpush1.bf16.msra.mxu0 0
      %769 = vmatprep.subr.bf16.mxu0 0
      %770 = vmatpush1.bf16.msra.mxu0 0
      %771 = vmatprep.subr.bf16.mxu0 0
      %772 = vmatpush1.bf16.msra.mxu0 0
      %773 = vmatprep.subr.bf16.mxu0 0
      %774 = vmatpush1.bf16.msra.mxu0 0
      %775 = vmatprep.subr.bf16.mxu0 0
      %776 = vmatpush1.bf16.msra.mxu0 0
      %777 = vmatprep.subr.bf16.mxu0 0
      %778 = vmatpush1.bf16.msra.mxu0 0
      %779 = vmatprep.subr.bf16.mxu0 0
      %780 = vmatpush1.bf16.msra.mxu0 0
      %781 = vmatprep.subr.bf16.mxu0 0
      %782 = vmatpush1.bf16.msra.mxu0 %v765
      %783 = vmatprep.subr.bf16.mxu0 0
      %784 = vmatpush2.bf16.msra.mxu0 0
      %785 = vmatprep.subr.bf16.mxu0 0
      %786 = vmatpush2.bf16.msra.mxu0 0
      %787 = vmatprep.subr.bf16.mxu0 0
      %788 = vmatpush2.bf16.msra.mxu0 0
      %789 = vmatprep.subr.bf16.mxu0 0
      %790 = vmatpush2.bf16.msra.mxu0 0
      %791 = vmatprep.subr.bf16.mxu0 0
      %792 = vmatpush2.bf16.msra.mxu0 0
      %793 = vmatprep.subr.bf16.mxu0 0
      %794 = vmatpush2.bf16.msra.mxu0 0
      %795 = vmatprep.subr.bf16.mxu0 0
      %796 = vmatpush2.bf16.msra.mxu0 0
      %797 = vmatprep.subr.bf16.mxu0 0
      %798 = vmatpush2.bf16.msra.mxu0 0
      %799 = vmatprep.mubr.bf16.mxu0 0
      %800 = vmatmul.mubr.bf16.gmra.mxu0 %v716
      %v801 = vpop.f32.mrf.mxu0
      %v802 = vadd.f32 0.0, %v801
      %v803 = vpop.f32.mrf.mxu0
      %v804 = vpop.f32.mrf.mxu0
      %v805 = vadd.f32 0.0, %v804
      %v806 = vpop.f32.mrf.mxu0
      %807 = vmatprep.mubr.bf16.mxu0 0
      %808 = vmatmul.mubr.bf16.gmra.mxu0 %v719
      %v809 = vpop.f32.mrf.mxu0
      %v810 = vadd.f32 0.0, %v809
      %v811 = vpop.f32.mrf.mxu0
      %v812 = vpop.f32.mrf.mxu0
      %v813 = vadd.f32 0.0, %v812
      %v814 = vpop.f32.mrf.mxu0
      %815 = vmatprep.mubr.bf16.mxu0 0
      %816 = vmatmul.mubr.bf16.gmra.mxu0 %v722
      %v817 = vpop.f32.mrf.mxu0
      %v818 = vadd.f32 0.0, %v817
      %v819 = vpop.f32.mrf.mxu0
      %v820 = vpop.f32.mrf.mxu0
      %v821 = vadd.f32 0.0, %v820
      %v822 = vpop.f32.mrf.mxu0
      %823 = vmatprep.mubr.bf16.mxu0 0
      %824 = vmatmul.mubr.bf16.gmra.mxu0 %v725
      %v825 = vpop.f32.mrf.mxu0
      %v826 = vadd.f32 0.0, %v825
      %v827 = vpop.f32.mrf.mxu0
      %v828 = vpop.f32.mrf.mxu0
      %v829 = vadd.f32 0.0, %v828
      %v830 = vpop.f32.mrf.mxu0
      %831 = vmatprep.mubr.bf16.mxu0 0
      %832 = vmatmul.mubr.bf16.gmra.mxu0 %v728
      %v833 = vpop.f32.mrf.mxu0
      %v834 = vadd.f32 0.0, %v833
      %v835 = vpop.f32.mrf.mxu0
      %v836 = vpop.f32.mrf.mxu0
      %v837 = vadd.f32 0.0, %v836
      %v838 = vpop.f32.mrf.mxu0
      %839 = vmatprep.mubr.bf16.mxu0 0
      %840 = vmatmul.mubr.bf16.gmra.mxu0 %v731
      %v841 = vpop.f32.mrf.mxu0
      %v842 = vadd.f32 0.0, %v841
      %v843 = vpop.f32.mrf.mxu0
      %v844 = vpop.f32.mrf.mxu0
      %v845 = vadd.f32 0.0, %v844
      %v846 = vpop.f32.mrf.mxu0
      %847 = vmatprep.mubr.bf16.mxu0 0
      %848 = vmatmul.mubr.bf16.gmra.mxu0 %v734
      %v849 = vpop.f32.mrf.mxu0
      %v850 = vadd.f32 0.0, %v849
      %v851 = vpop.f32.mrf.mxu0
      %v852 = vpop.f32.mrf.mxu0
      %v853 = vadd.f32 0.0, %v852
      %v854 = vpop.f32.mrf.mxu0
      %855 = vmatprep.mubr.bf16.mxu0 0
      %856 = vmatmul.mubr.bf16.gmra.mxu0 %v737
      %v857 = vpop.f32.mrf.mxu0
      %v858 = vadd.f32 0.0, %v857
      %v859 = vpop.f32.mrf.mxu0
      %v860 = vpop.f32.mrf.mxu0
      %v861 = vadd.f32 0.0, %v860
      %v862 = vpop.f32.mrf.mxu0
      %863 = vmatprep.mubr.bf16.mxu0 0
      %864 = vmatmul.mubr.bf16.gmra.mxu0 %v740
      %v865 = vpop.f32.mrf.mxu0
      %v866 = vadd.f32 0.0, %v865
      %v867 = vpop.f32.mrf.mxu0
      %v868 = vpop.f32.mrf.mxu0
      %v869 = vadd.f32 0.0, %v868
      %v870 = vpop.f32.mrf.mxu0
      %871 = vmatprep.mubr.bf16.mxu0 0
      %872 = vmatmul.mubr.bf16.gmra.mxu0 %v743
      %v873 = vpop.f32.mrf.mxu0
      %v874 = vadd.f32 0.0, %v873
      %v875 = vpop.f32.mrf.mxu0
      %v876 = vpop.f32.mrf.mxu0
      %v877 = vadd.f32 0.0, %v876
      %v878 = vpop.f32.mrf.mxu0
      %879 = vmatprep.mubr.bf16.mxu0 0
      %880 = vmatmul.mubr.bf16.gmra.mxu0 %v746
      %v881 = vpop.f32.mrf.mxu0
      %v882 = vadd.f32 0.0, %v881
      %v883 = vpop.f32.mrf.mxu0
      %v884 = vpop.f32.mrf.mxu0
      %v885 = vadd.f32 0.0, %v884
      %v886 = vpop.f32.mrf.mxu0
      %887 = vmatprep.mubr.bf16.mxu0 0
      %888 = vmatmul.mubr.bf16.gmra.mxu0 %v749
      %v889 = vpop.f32.mrf.mxu0
      %v890 = vadd.f32 0.0, %v889
      %v891 = vpop.f32.mrf.mxu0
      %v892 = vpop.f32.mrf.mxu0
      %v893 = vadd.f32 0.0, %v892
      %v894 = vpop.f32.mrf.mxu0
      %895 = vmatprep.mubr.bf16.mxu0 0
      %896 = vmatmul.mubr.bf16.gmra.mxu0 %v752
      %v897 = vpop.f32.mrf.mxu0
      %v898 = vadd.f32 0.0, %v897
      %v899 = vpop.f32.mrf.mxu0
      %v900 = vpop.f32.mrf.mxu0
      %v901 = vadd.f32 0.0, %v900
      %v902 = vpop.f32.mrf.mxu0
      %903 = vmatprep.mubr.bf16.mxu0 0
      %904 = vmatmul.mubr.bf16.gmra.mxu0 %v755
      %v905 = vpop.f32.mrf.mxu0
      %v906 = vadd.f32 0.0, %v905
      %v907 = vpop.f32.mrf.mxu0
      %v908 = vpop.f32.mrf.mxu0
      %v909 = vadd.f32 0.0, %v908
      %v910 = vpop.f32.mrf.mxu0
      %911 = vmatprep.mubr.bf16.mxu0 0
      %912 = vmatmul.mubr.bf16.gmra.mxu0 %v758
      %v913 = vpop.f32.mrf.mxu0
      %v914 = vadd.f32 0.0, %v913
      %v915 = vpop.f32.mrf.mxu0
      %v916 = vpop.f32.mrf.mxu0
      %v917 = vadd.f32 0.0, %v916
      %v918 = vpop.f32.mrf.mxu0
      %919 = vmatprep.mubr.bf16.mxu0 0
      %920 = vmatmul.mubr.bf16.gmra.mxu0 %v761
      %v921 = vpop.f32.mrf.mxu0
      %v922 = vadd.f32 0.0, %v921
      %v923 = vpop.f32.mrf.mxu0
      %v924 = vpop.f32.mrf.mxu0
      %v925 = vadd.f32 0.0, %v924
      %v926 = vpop.f32.mrf.mxu0
      %927 = vdwg.mxu0
      %v960 = vunpack.c.l.b16 %v463
      %v961 = vunpack.c.l.b16 %v464
      %v962 = vunpack.c.l.b16 %v466
      %v963 = vunpack.c.l.b16 %v467
      %v964 = vunpack.c.l.b16 %v469
      %v965 = vunpack.c.l.b16 %v470
      %v966 = vunpack.c.l.b16 %v472
      %v967 = vunpack.c.l.b16 %v473
      %v968 = vunpack.c.l.b16 %v475
      %v969 = vunpack.c.l.b16 %v476
      %v970 = vunpack.c.l.b16 %v478
      %v971 = vunpack.c.l.b16 %v479
      %v972 = vunpack.c.l.b16 %v481
      %v973 = vunpack.c.l.b16 %v482
      %v974 = vunpack.c.l.b16 %v484
      %v975 = vunpack.c.l.b16 %v485
      %v976 = vunpack.c.l.b16 %v487
      %v977 = vunpack.c.l.b16 %v488
      %v978 = vunpack.c.l.b16 %v490
      %v979 = vunpack.c.l.b16 %v491
      %v980 = vunpack.c.l.b16 %v493
      %v981 = vunpack.c.l.b16 %v494
      %v982 = vunpack.c.l.b16 %v496
      %v983 = vunpack.c.l.b16 %v497
      %v984 = vunpack.c.l.b16 %v499
      %v985 = vunpack.c.l.b16 %v500
      %v986 = vunpack.c.l.b16 %v502
      %v987 = vunpack.c.l.b16 %v503
      %v988 = vunpack.c.l.b16 %v505
      %v989 = vunpack.c.l.b16 %v506
      %v990 = vunpack.c.l.b16 %v508
      %v991 = vunpack.c.l.b16 %v509
      %v992 = vpack.c.b16 %v961, %v960
      %v993 = vpack.c.b16 %v963, %v962
      %v994 = vpack.c.b16 %v965, %v964
      %v995 = vpack.c.b16 %v967, %v966
      %v996 = vpack.c.b16 %v969, %v968
      %v997 = vpack.c.b16 %v971, %v970
      %v998 = vpack.c.b16 %v973, %v972
      %v999 = vpack.c.b16 %v975, %v974
      %v1000 = vpack.c.b16 %v977, %v976
      %v1001 = vpack.c.b16 %v979, %v978
      %v1002 = vpack.c.b16 %v981, %v980
      %v1003 = vpack.c.b16 %v983, %v982
      %v1004 = vpack.c.b16 %v985, %v984
      %v1005 = vpack.c.b16 %v987, %v986
      %v1006 = vpack.c.b16 %v989, %v988
      %v1007 = vpack.c.b16 %v991, %v990
      %v1009 = vsel %vm714, %v992, 0
      %v1012 = vsel %vm714, %v993, 0
      %v1015 = vsel %vm714, %v994, 0
      %v1018 = vsel %vm714, %v995, 0
      %v1021 = vsel %vm714, %v996, 0
      %v1024 = vsel %vm714, %v997, 0
      %v1027 = vsel %vm714, %v998, 0
      %v1030 = vsel %vm714, %v999, 0
      %v1033 = vsel %vm714, %v1000, 0
      %v1036 = vsel %vm714, %v1001, 0
      %v1039 = vsel %vm714, %v1002, 0
      %v1042 = vsel %vm714, %v1003, 0
      %v1045 = vsel %vm714, %v1004, 0
      %v1048 = vsel %vm714, %v1005, 0
      %v1051 = vsel %vm714, %v1006, 0
      %v1054 = vsel %vm714, %v1007, 0
      %v1057 = vsel %vm763, %v631, 0
      %1059 = vmatprep.subr.bf16.mxu0 0
      %1060 = vmatpush1.bf16.msra.mxu0 0
      %1061 = vmatprep.subr.bf16.mxu0 0
      %1062 = vmatpush1.bf16.msra.mxu0 0
      %1063 = vmatprep.subr.bf16.mxu0 0
      %1064 = vmatpush1.bf16.msra.mxu0 0
      %1065 = vmatprep.subr.bf16.mxu0 0
      %1066 = vmatpush1.bf16.msra.mxu0 0
      %1067 = vmatprep.subr.bf16.mxu0 0
      %1068 = vmatpush1.bf16.msra.mxu0 0
      %1069 = vmatprep.subr.bf16.mxu0 0
      %1070 = vmatpush1.bf16.msra.mxu0 0
      %1071 = vmatprep.subr.bf16.mxu0 0
      %1072 = vmatpush1.bf16.msra.mxu0 0
      %1073 = vmatprep.subr.bf16.mxu0 0
      %1074 = vmatpush1.bf16.msra.mxu0 %v1057
      %1075 = vmatprep.subr.bf16.mxu0 0
      %1076 = vmatpush2.bf16.msra.mxu0 0
      %1077 = vmatprep.subr.bf16.mxu0 0
      %1078 = vmatpush2.bf16.msra.mxu0 0
      %1079 = vmatprep.subr.bf16.mxu0 0
      %1080 = vmatpush2.bf16.msra.mxu0 0
      %1081 = vmatprep.subr.bf16.mxu0 0
      %1082 = vmatpush2.bf16.msra.mxu0 0
      %1083 = vmatprep.subr.bf16.mxu0 0
      %1084 = vmatpush2.bf16.msra.mxu0 0
      %1085 = vmatprep.subr.bf16.mxu0 0
      %1086 = vmatpush2.bf16.msra.mxu0 0
      %1087 = vmatprep.subr.bf16.mxu0 0
      %1088 = vmatpush2.bf16.msra.mxu0 0
      %1089 = vmatprep.subr.bf16.mxu0 0
      %1090 = vmatpush2.bf16.msra.mxu0 0
      %1091 = vmatprep.mubr.bf16.mxu0 0
      %1092 = vmatmul.mubr.bf16.gmra.mxu0 %v1009
      %v1093 = vpop.f32.mrf.mxu0
      %v1094 = vadd.f32 %v802, %v1093
      %v1095 = vpop.f32.mrf.mxu0
      %v1096 = vpop.f32.mrf.mxu0
      %v1097 = vadd.f32 %v805, %v1096
      %v1098 = vpop.f32.mrf.mxu0
      %1099 = vmatprep.mubr.bf16.mxu0 0
      %1100 = vmatmul.mubr.bf16.gmra.mxu0 %v1012
      %v1101 = vpop.f32.mrf.mxu0
      %v1102 = vadd.f32 %v810, %v1101
      %v1103 = vpop.f32.mrf.mxu0
      %v1104 = vpop.f32.mrf.mxu0
      %v1105 = vadd.f32 %v813, %v1104
      %v1106 = vpop.f32.mrf.mxu0
      %1107 = vmatprep.mubr.bf16.mxu0 0
      %1108 = vmatmul.mubr.bf16.gmra.mxu0 %v1015
      %v1109 = vpop.f32.mrf.mxu0
      %v1110 = vadd.f32 %v818, %v1109
      %v1111 = vpop.f32.mrf.mxu0
      %v1112 = vpop.f32.mrf.mxu0
      %v1113 = vadd.f32 %v821, %v1112
      %v1114 = vpop.f32.mrf.mxu0
      %1115 = vmatprep.mubr.bf16.mxu0 0
      %1116 = vmatmul.mubr.bf16.gmra.mxu0 %v1018
      %v1117 = vpop.f32.mrf.mxu0
      %v1118 = vadd.f32 %v826, %v1117
      %v1119 = vpop.f32.mrf.mxu0
      %v1120 = vpop.f32.mrf.mxu0
      %v1121 = vadd.f32 %v829, %v1120
      %v1122 = vpop.f32.mrf.mxu0
      %1123 = vmatprep.mubr.bf16.mxu0 0
      %1124 = vmatmul.mubr.bf16.gmra.mxu0 %v1021
      %v1125 = vpop.f32.mrf.mxu0
      %v1126 = vadd.f32 %v834, %v1125
      %v1127 = vpop.f32.mrf.mxu0
      %v1128 = vpop.f32.mrf.mxu0
      %v1129 = vadd.f32 %v837, %v1128
      %v1130 = vpop.f32.mrf.mxu0
      %1131 = vmatprep.mubr.bf16.mxu0 0
      %1132 = vmatmul.mubr.bf16.gmra.mxu0 %v1024
      %v1133 = vpop.f32.mrf.mxu0
      %v1134 = vadd.f32 %v842, %v1133
      %v1135 = vpop.f32.mrf.mxu0
      %v1136 = vpop.f32.mrf.mxu0
      %v1137 = vadd.f32 %v845, %v1136
      %v1138 = vpop.f32.mrf.mxu0
      %1139 = vmatprep.mubr.bf16.mxu0 0
      %1140 = vmatmul.mubr.bf16.gmra.mxu0 %v1027
      %v1141 = vpop.f32.mrf.mxu0
      %v1142 = vadd.f32 %v850, %v1141
      %v1143 = vpop.f32.mrf.mxu0
      %v1144 = vpop.f32.mrf.mxu0
      %v1145 = vadd.f32 %v853, %v1144
      %v1146 = vpop.f32.mrf.mxu0
      %1147 = vmatprep.mubr.bf16.mxu0 0
      %1148 = vmatmul.mubr.bf16.gmra.mxu0 %v1030
      %v1149 = vpop.f32.mrf.mxu0
      %v1150 = vadd.f32 %v858, %v1149
      %v1151 = vpop.f32.mrf.mxu0
      %v1152 = vpop.f32.mrf.mxu0
      %v1153 = vadd.f32 %v861, %v1152
      %v1154 = vpop.f32.mrf.mxu0
      %1155 = vmatprep.mubr.bf16.mxu0 0
      %1156 = vmatmul.mubr.bf16.gmra.mxu0 %v1033
      %v1157 = vpop.f32.mrf.mxu0
      %v1158 = vadd.f32 %v866, %v1157
      %v1159 = vpop.f32.mrf.mxu0
      %v1160 = vpop.f32.mrf.mxu0
      %v1161 = vadd.f32 %v869, %v1160
      %v1162 = vpop.f32.mrf.mxu0
      %1163 = vmatprep.mubr.bf16.mxu0 0
      %1164 = vmatmul.mubr.bf16.gmra.mxu0 %v1036
      %v1165 = vpop.f32.mrf.mxu0
      %v1166 = vadd.f32 %v874, %v1165
      %v1167 = vpop.f32.mrf.mxu0
      %v1168 = vpop.f32.mrf.mxu0
      %v1169 = vadd.f32 %v877, %v1168
      %v1170 = vpop.f32.mrf.mxu0
      %1171 = vmatprep.mubr.bf16.mxu0 0
      %1172 = vmatmul.mubr.bf16.gmra.mxu0 %v1039
      %v1173 = vpop.f32.mrf.mxu0
      %v1174 = vadd.f32 %v882, %v1173
      %v1175 = vpop.f32.mrf.mxu0
      %v1176 = vpop.f32.mrf.mxu0
      %v1177 = vadd.f32 %v885, %v1176
      %v1178 = vpop.f32.mrf.mxu0
      %1179 = vmatprep.mubr.bf16.mxu0 0
      %1180 = vmatmul.mubr.bf16.gmra.mxu0 %v1042
      %v1181 = vpop.f32.mrf.mxu0
      %v1182 = vadd.f32 %v890, %v1181
      %v1183 = vpop.f32.mrf.mxu0
      %v1184 = vpop.f32.mrf.mxu0
      %v1185 = vadd.f32 %v893, %v1184
      %v1186 = vpop.f32.mrf.mxu0
      %1187 = vmatprep.mubr.bf16.mxu0 0
      %1188 = vmatmul.mubr.bf16.gmra.mxu0 %v1045
      %v1189 = vpop.f32.mrf.mxu0
      %v1190 = vadd.f32 %v898, %v1189
      %v1191 = vpop.f32.mrf.mxu0
      %v1192 = vpop.f32.mrf.mxu0
      %v1193 = vadd.f32 %v901, %v1192
      %v1194 = vpop.f32.mrf.mxu0
      %1195 = vmatprep.mubr.bf16.mxu0 0
      %1196 = vmatmul.mubr.bf16.gmra.mxu0 %v1048
      %v1197 = vpop.f32.mrf.mxu0
      %v1198 = vadd.f32 %v906, %v1197
      %v1199 = vpop.f32.mrf.mxu0
      %v1200 = vpop.f32.mrf.mxu0
      %v1201 = vadd.f32 %v909, %v1200
      %v1202 = vpop.f32.mrf.mxu0
      %1203 = vmatprep.mubr.bf16.mxu0 0
      %1204 = vmatmul.mubr.bf16.gmra.mxu0 %v1051
      %v1205 = vpop.f32.mrf.mxu0
      %v1206 = vadd.f32 %v914, %v1205
      %v1207 = vpop.f32.mrf.mxu0
      %v1208 = vpop.f32.mrf.mxu0
      %v1209 = vadd.f32 %v917, %v1208
      %v1210 = vpop.f32.mrf.mxu0
      %1211 = vmatprep.mubr.bf16.mxu0 0
      %1212 = vmatmul.mubr.bf16.gmra.mxu0 %v1054
      %v1213 = vpop.f32.mrf.mxu0
      %v1214 = vadd.f32 %v922, %v1213
      %v1215 = vpop.f32.mrf.mxu0
      %v1216 = vpop.f32.mrf.mxu0
      %v1217 = vadd.f32 %v925, %v1216
      %v1218 = vpop.f32.mrf.mxu0
      %1219 = vdwg.mxu0
      %vm1220 = vsmask.f32 3328
      %vm1221 = vsmask.f32 7440
      %vm1222 = vmor %vm1220, %vm1221
      %v1224 = vshrl.u32 %v463, 16
      %v1226 = vrot.slane %v1224, 4
      %v1227 = vshll.u32 %v463, 16
      %v1229 = vrot.slane %v1227, 5
      %v1230 = vor.u32 %v1226, %v1229
      %v1231 = vrot.slane %v1230, 4
      %v1233 = vshll.u32 %v464, 16
      %v1235 = vrot.slane %v1233, 5
      %v1236 = vsel %vm1222, %v1231, %v1235
      %v1237 = vshrl.u32 %v464, 16
      %v1239 = vrot.slane %v1237, 4
      %v1240 = vor.u32 %v1239, %v1235
      %v1241 = vrot.slane %v1240, 4
      %v1243 = vshll.u32 %v465, 16
      %v1245 = vrot.slane %v1243, 5
      %v1246 = vsel %vm1222, %v1241, %v1245
      %v1248 = vshrl.u32 %v466, 16
      %v1250 = vrot.slane %v1248, 4
      %v1251 = vshll.u32 %v466, 16
      %v1253 = vrot.slane %v1251, 5
      %v1254 = vor.u32 %v1250, %v1253
      %v1255 = vrot.slane %v1254, 4
      %v1257 = vshll.u32 %v467, 16
      %v1259 = vrot.slane %v1257, 5
      %v1260 = vsel %vm1222, %v1255, %v1259
      %v1261 = vshrl.u32 %v467, 16
      %v1263 = vrot.slane %v1261, 4
      %v1264 = vor.u32 %v1263, %v1259
      %v1265 = vrot.slane %v1264, 4
      %v1267 = vshll.u32 %v468, 16
      %v1269 = vrot.slane %v1267, 5
      %v1270 = vsel %vm1222, %v1265, %v1269
      %v1272 = vshrl.u32 %v469, 16
      %v1274 = vrot.slane %v1272, 4
      %v1275 = vshll.u32 %v469, 16
      %v1277 = vrot.slane %v1275, 5
      %v1278 = vor.u32 %v1274, %v1277
      %v1279 = vrot.slane %v1278, 4
      %v1281 = vshll.u32 %v470, 16
      %v1283 = vrot.slane %v1281, 5
      %v1284 = vsel %vm1222, %v1279, %v1283
      %v1285 = vshrl.u32 %v470, 16
      %v1287 = vrot.slane %v1285, 4
      %v1288 = vor.u32 %v1287, %v1283
      %v1289 = vrot.slane %v1288, 4
      %v1291 = vshll.u32 %v471, 16
      %v1293 = vrot.slane %v1291, 5
      %v1294 = vsel %vm1222, %v1289, %v1293
      %v1296 = vshrl.u32 %v472, 16
      %v1298 = vrot.slane %v1296, 4
      %v1299 = vshll.u32 %v472, 16
      %v1301 = vrot.slane %v1299, 5
      %v1302 = vor.u32 %v1298, %v1301
      %v1303 = vrot.slane %v1302, 4
      %v1305 = vshll.u32 %v473, 16
      %v1307 = vrot.slane %v1305, 5
      %v1308 = vsel %vm1222, %v1303, %v1307
      %v1309 = vshrl.u32 %v473, 16
      %v1311 = vrot.slane %v1309, 4
      %v1312 = vor.u32 %v1311, %v1307
      %v1313 = vrot.slane %v1312, 4
      %v1315 = vshll.u32 %v474, 16
      %v1317 = vrot.slane %v1315, 5
      %v1318 = vsel %vm1222, %v1313, %v1317
      %v1320 = vshrl.u32 %v475, 16
      %v1322 = vrot.slane %v1320, 4
      %v1323 = vshll.u32 %v475, 16
      %v1325 = vrot.slane %v1323, 5
      %v1326 = vor.u32 %v1322, %v1325
      %v1327 = vrot.slane %v1326, 4
      %v1329 = vshll.u32 %v476, 16
      %v1331 = vrot.slane %v1329, 5
      %v1332 = vsel %vm1222, %v1327, %v1331
      %v1333 = vshrl.u32 %v476, 16
      %v1335 = vrot.slane %v1333, 4
      %v1336 = vor.u32 %v1335, %v1331
      %v1337 = vrot.slane %v1336, 4
      %v1339 = vshll.u32 %v477, 16
      %v1341 = vrot.slane %v1339, 5
      %v1342 = vsel %vm1222, %v1337, %v1341
      %v1344 = vshrl.u32 %v478, 16
      %v1346 = vrot.slane %v1344, 4
      %v1347 = vshll.u32 %v478, 16
      %v1349 = vrot.slane %v1347, 5
      %v1350 = vor.u32 %v1346, %v1349
      %v1351 = vrot.slane %v1350, 4
      %v1353 = vshll.u32 %v479, 16
      %v1355 = vrot.slane %v1353, 5
      %v1356 = vsel %vm1222, %v1351, %v1355
      %v1357 = vshrl.u32 %v479, 16
      %v1359 = vrot.slane %v1357, 4
      %v1360 = vor.u32 %v1359, %v1355
      %v1361 = vrot.slane %v1360, 4
      %v1363 = vshll.u32 %v480, 16
      %v1365 = vrot.slane %v1363, 5
      %v1366 = vsel %vm1222, %v1361, %v1365
      %v1368 = vshrl.u32 %v481, 16
      %v1370 = vrot.slane %v1368, 4
      %v1371 = vshll.u32 %v481, 16
      %v1373 = vrot.slane %v1371, 5
      %v1374 = vor.u32 %v1370, %v1373
      %v1375 = vrot.slane %v1374, 4
      %v1377 = vshll.u32 %v482, 16
      %v1379 = vrot.slane %v1377, 5
      %v1380 = vsel %vm1222, %v1375, %v1379
      %v1381 = vshrl.u32 %v482, 16
      %v1383 = vrot.slane %v1381, 4
      %v1384 = vor.u32 %v1383, %v1379
      %v1385 = vrot.slane %v1384, 4
      %v1387 = vshll.u32 %v483, 16
      %v1389 = vrot.slane %v1387, 5
      %v1390 = vsel %vm1222, %v1385, %v1389
      %v1392 = vshrl.u32 %v484, 16
      %v1394 = vrot.slane %v1392, 4
      %v1395 = vshll.u32 %v484, 16
      %v1397 = vrot.slane %v1395, 5
      %v1398 = vor.u32 %v1394, %v1397
      %v1399 = vrot.slane %v1398, 4
      %v1401 = vshll.u32 %v485, 16
      %v1403 = vrot.slane %v1401, 5
      %v1404 = vsel %vm1222, %v1399, %v1403
      %v1405 = vshrl.u32 %v485, 16
      %v1407 = vrot.slane %v1405, 4
      %v1408 = vor.u32 %v1407, %v1403
      %v1409 = vrot.slane %v1408, 4
      %v1411 = vshll.u32 %v486, 16
      %v1413 = vrot.slane %v1411, 5
      %v1414 = vsel %vm1222, %v1409, %v1413
      %v1416 = vshrl.u32 %v487, 16
      %v1418 = vrot.slane %v1416, 4
      %v1419 = vshll.u32 %v487, 16
      %v1421 = vrot.slane %v1419, 5
      %v1422 = vor.u32 %v1418, %v1421
      %v1423 = vrot.slane %v1422, 4
      %v1425 = vshll.u32 %v488, 16
      %v1427 = vrot.slane %v1425, 5
      %v1428 = vsel %vm1222, %v1423, %v1427
      %v1429 = vshrl.u32 %v488, 16
      %v1431 = vrot.slane %v1429, 4
      %v1432 = vor.u32 %v1431, %v1427
      %v1433 = vrot.slane %v1432, 4
      %v1435 = vshll.u32 %v489, 16
      %v1437 = vrot.slane %v1435, 5
      %v1438 = vsel %vm1222, %v1433, %v1437
      %v1440 = vshrl.u32 %v490, 16
      %v1442 = vrot.slane %v1440, 4
      %v1443 = vshll.u32 %v490, 16
      %v1445 = vrot.slane %v1443, 5
      %v1446 = vor.u32 %v1442, %v1445
      %v1447 = vrot.slane %v1446, 4
      %v1449 = vshll.u32 %v491, 16
      %v1451 = vrot.slane %v1449, 5
      %v1452 = vsel %vm1222, %v1447, %v1451
      %v1453 = vshrl.u32 %v491, 16
      %v1455 = vrot.slane %v1453, 4
      %v1456 = vor.u32 %v1455, %v1451
      %v1457 = vrot.slane %v1456, 4
      %v1459 = vshll.u32 %v492, 16
      %v1461 = vrot.slane %v1459, 5
      %v1462 = vsel %vm1222, %v1457, %v1461
      %v1464 = vshrl.u32 %v493, 16
      %v1466 = vrot.slane %v1464, 4
      %v1467 = vshll.u32 %v493, 16
      %v1469 = vrot.slane %v1467, 5
      %v1470 = vor.u32 %v1466, %v1469
      %v1471 = vrot.slane %v1470, 4
      %v1473 = vshll.u32 %v494, 16
      %v1475 = vrot.slane %v1473, 5
      %v1476 = vsel %vm1222, %v1471, %v1475
      %v1477 = vshrl.u32 %v494, 16
      %v1479 = vrot.slane %v1477, 4
      %v1480 = vor.u32 %v1479, %v1475
      %v1481 = vrot.slane %v1480, 4
      %v1483 = vshll.u32 %v495, 16
      %v1485 = vrot.slane %v1483, 5
      %v1486 = vsel %vm1222, %v1481, %v1485
      %v1488 = vshrl.u32 %v496, 16
      %v1490 = vrot.slane %v1488, 4
      %v1491 = vshll.u32 %v496, 16
      %v1493 = vrot.slane %v1491, 5
      %v1494 = vor.u32 %v1490, %v1493
      %v1495 = vrot.slane %v1494, 4
      %v1497 = vshll.u32 %v497, 16
      %v1499 = vrot.slane %v1497, 5
      %v1500 = vsel %vm1222, %v1495, %v1499
      %v1501 = vshrl.u32 %v497, 16
      %v1503 = vrot.slane %v1501, 4
      %v1504 = vor.u32 %v1503, %v1499
      %v1505 = vrot.slane %v1504, 4
      %v1507 = vshll.u32 %v498, 16
      %v1509 = vrot.slane %v1507, 5
      %v1510 = vsel %vm1222, %v1505, %v1509
      %v1512 = vshrl.u32 %v499, 16
      %v1514 = vrot.slane %v1512, 4
      %v1515 = vshll.u32 %v499, 16
      %v1517 = vrot.slane %v1515, 5
      %v1518 = vor.u32 %v1514, %v1517
      %v1519 = vrot.slane %v1518, 4
      %v1521 = vshll.u32 %v500, 16
      %v1523 = vrot.slane %v1521, 5
      %v1524 = vsel %vm1222, %v1519, %v1523
      %v1525 = vshrl.u32 %v500, 16
      %v1527 = vrot.slane %v1525, 4
      %v1528 = vor.u32 %v1527, %v1523
      %v1529 = vrot.slane %v1528, 4
      %v1531 = vshll.u32 %v501, 16
      %v1533 = vrot.slane %v1531, 5
      %v1534 = vsel %vm1222, %v1529, %v1533
      %v1536 = vshrl.u32 %v502, 16
      %v1538 = vrot.slane %v1536, 4
      %v1539 = vshll.u32 %v502, 16
      %v1541 = vrot.slane %v1539, 5
      %v1542 = vor.u32 %v1538, %v1541
      %v1543 = vrot.slane %v1542, 4
      %v1545 = vshll.u32 %v503, 16
      %v1547 = vrot.slane %v1545, 5
      %v1548 = vsel %vm1222, %v1543, %v1547
      %v1549 = vshrl.u32 %v503, 16
      %v1551 = vrot.slane %v1549, 4
      %v1552 = vor.u32 %v1551, %v1547
      %v1553 = vrot.slane %v1552, 4
      %v1555 = vshll.u32 %v504, 16
      %v1557 = vrot.slane %v1555, 5
      %v1558 = vsel %vm1222, %v1553, %v1557
      %v1560 = vshrl.u32 %v505, 16
      %v1562 = vrot.slane %v1560, 4
      %v1563 = vshll.u32 %v505, 16
      %v1565 = vrot.slane %v1563, 5
      %v1566 = vor.u32 %v1562, %v1565
      %v1567 = vrot.slane %v1566, 4
      %v1569 = vshll.u32 %v506, 16
      %v1571 = vrot.slane %v1569, 5
      %v1572 = vsel %vm1222, %v1567, %v1571
      %v1573 = vshrl.u32 %v506, 16
      %v1575 = vrot.slane %v1573, 4
      %v1576 = vor.u32 %v1575, %v1571
      %v1577 = vrot.slane %v1576, 4
      %v1579 = vshll.u32 %v507, 16
      %v1581 = vrot.slane %v1579, 5
      %v1582 = vsel %vm1222, %v1577, %v1581
      %v1584 = vshrl.u32 %v508, 16
      %v1586 = vrot.slane %v1584, 4
      %v1587 = vshll.u32 %v508, 16
      %v1589 = vrot.slane %v1587, 5
      %v1590 = vor.u32 %v1586, %v1589
      %v1591 = vrot.slane %v1590, 4
      %v1593 = vshll.u32 %v509, 16
      %v1595 = vrot.slane %v1593, 5
      %v1596 = vsel %vm1222, %v1591, %v1595
      %v1597 = vshrl.u32 %v509, 16
      %v1599 = vrot.slane %v1597, 4
      %v1600 = vor.u32 %v1599, %v1595
      %v1601 = vrot.slane %v1600, 4
      %v1603 = vshll.u32 %v510, 16
      %v1605 = vrot.slane %v1603, 5
      %v1606 = vsel %vm1222, %v1601, %v1605
      %s1607 = scalar_lea.vmem [#allocation2], 4
      %v1608 = vld [vmem:[%s1607] sm:$0x3]
      %v1609 = vunpack.c.l.b16 %v1236
      %v1610 = vunpack.c.l.b16 %v1246
      %v1611 = vunpack.c.l.b16 %v1260
      %v1612 = vunpack.c.l.b16 %v1270
      %v1613 = vunpack.c.l.b16 %v1284
      %v1614 = vunpack.c.l.b16 %v1294
      %v1615 = vunpack.c.l.b16 %v1308
      %v1616 = vunpack.c.l.b16 %v1318
      %v1617 = vunpack.c.l.b16 %v1332
      %v1618 = vunpack.c.l.b16 %v1342
      %v1619 = vunpack.c.l.b16 %v1356
      %v1620 = vunpack.c.l.b16 %v1366
      %v1621 = vunpack.c.l.b16 %v1380
      %v1622 = vunpack.c.l.b16 %v1390
      %v1623 = vunpack.c.l.b16 %v1404
      %v1624 = vunpack.c.l.b16 %v1414
      %v1625 = vunpack.c.l.b16 %v1428
      %v1626 = vunpack.c.l.b16 %v1438
      %v1627 = vunpack.c.l.b16 %v1452
      %v1628 = vunpack.c.l.b16 %v1462
      %v1629 = vunpack.c.l.b16 %v1476
      %v1630 = vunpack.c.l.b16 %v1486
      %v1631 = vunpack.c.l.b16 %v1500
      %v1632 = vunpack.c.l.b16 %v1510
      %v1633 = vunpack.c.l.b16 %v1524
      %v1634 = vunpack.c.l.b16 %v1534
      %v1635 = vunpack.c.l.b16 %v1548
      %v1636 = vunpack.c.l.b16 %v1558
      %v1637 = vunpack.c.l.b16 %v1572
      %v1638 = vunpack.c.l.b16 %v1582
      %v1639 = vunpack.c.l.b16 %v1596
      %v1640 = vunpack.c.l.b16 %v1606
      %v1641 = vpack.c.b16 %v1610, %v1609
      %v1642 = vpack.c.b16 %v1612, %v1611
      %v1643 = vpack.c.b16 %v1614, %v1613
      %v1644 = vpack.c.b16 %v1616, %v1615
      %v1645 = vpack.c.b16 %v1618, %v1617
      %v1646 = vpack.c.b16 %v1620, %v1619
      %v1647 = vpack.c.b16 %v1622, %v1621
      %v1648 = vpack.c.b16 %v1624, %v1623
      %v1649 = vpack.c.b16 %v1626, %v1625
      %v1650 = vpack.c.b16 %v1628, %v1627
      %v1651 = vpack.c.b16 %v1630, %v1629
      %v1652 = vpack.c.b16 %v1632, %v1631
      %v1653 = vpack.c.b16 %v1634, %v1633
      %v1654 = vpack.c.b16 %v1636, %v1635
      %v1655 = vpack.c.b16 %v1638, %v1637
      %v1656 = vpack.c.b16 %v1640, %v1639
      %v1658 = vsel %vm714, %v1641, 0
      %v1661 = vsel %vm714, %v1642, 0
      %v1664 = vsel %vm714, %v1643, 0
      %v1667 = vsel %vm714, %v1644, 0
      %v1670 = vsel %vm714, %v1645, 0
      %v1673 = vsel %vm714, %v1646, 0
      %v1676 = vsel %vm714, %v1647, 0
      %v1679 = vsel %vm714, %v1648, 0
      %v1682 = vsel %vm714, %v1649, 0
      %v1685 = vsel %vm714, %v1650, 0
      %v1688 = vsel %vm714, %v1651, 0
      %v1691 = vsel %vm714, %v1652, 0
      %v1694 = vsel %vm714, %v1653, 0
      %v1697 = vsel %vm714, %v1654, 0
      %v1700 = vsel %vm714, %v1655, 0
      %v1703 = vsel %vm714, %v1656, 0
      %v1706 = vsel %vm763, %v1608, 0
      %1708 = vmatprep.subr.bf16.mxu0 0
      %1709 = vmatpush1.bf16.msra.mxu0 0
      %1710 = vmatprep.subr.bf16.mxu0 0
      %1711 = vmatpush1.bf16.msra.mxu0 0
      %1712 = vmatprep.subr.bf16.mxu0 0
      %1713 = vmatpush1.bf16.msra.mxu0 0
      %1714 = vmatprep.subr.bf16.mxu0 0
      %1715 = vmatpush1.bf16.msra.mxu0 0
      %1716 = vmatprep.subr.bf16.mxu0 0
      %1717 = vmatpush1.bf16.msra.mxu0 0
      %1718 = vmatprep.subr.bf16.mxu0 0
      %1719 = vmatpush1.bf16.msra.mxu0 0
      %1720 = vmatprep.subr.bf16.mxu0 0
      %1721 = vmatpush1.bf16.msra.mxu0 0
      %1722 = vmatprep.subr.bf16.mxu0 0
      %1723 = vmatpush1.bf16.msra.mxu0 %v1706
      %1724 = vmatprep.subr.bf16.mxu0 0
      %1725 = vmatpush2.bf16.msra.mxu0 0
      %1726 = vmatprep.subr.bf16.mxu0 0
      %1727 = vmatpush2.bf16.msra.mxu0 0
      %1728 = vmatprep.subr.bf16.mxu0 0
      %1729 = vmatpush2.bf16.msra.mxu0 0
      %1730 = vmatprep.subr.bf16.mxu0 0
      %1731 = vmatpush2.bf16.msra.mxu0 0
      %1732 = vmatprep.subr.bf16.mxu0 0
      %1733 = vmatpush2.bf16.msra.mxu0 0
      %1734 = vmatprep.subr.bf16.mxu0 0
      %1735 = vmatpush2.bf16.msra.mxu0 0
      %1736 = vmatprep.subr.bf16.mxu0 0
      %1737 = vmatpush2.bf16.msra.mxu0 0
      %1738 = vmatprep.subr.bf16.mxu0 0
      %1739 = vmatpush2.bf16.msra.mxu0 0
      %1740 = vmatprep.mubr.bf16.mxu0 0
      %1741 = vmatmul.mubr.bf16.gmra.mxu0 %v1658
      %v1742 = vpop.f32.mrf.mxu0
      %v1743 = vadd.f32 0.0, %v1742
      %v1744 = vpop.f32.mrf.mxu0
      %v1745 = vpop.f32.mrf.mxu0
      %v1746 = vadd.f32 0.0, %v1745
      %v1747 = vpop.f32.mrf.mxu0
      %1748 = vmatprep.mubr.bf16.mxu0 0
      %1749 = vmatmul.mubr.bf16.gmra.mxu0 %v1661
      %v1750 = vpop.f32.mrf.mxu0
      %v1751 = vadd.f32 0.0, %v1750
      %v1752 = vpop.f32.mrf.mxu0
      %v1753 = vpop.f32.mrf.mxu0
      %v1754 = vadd.f32 0.0, %v1753
      %v1755 = vpop.f32.mrf.mxu0
      %1756 = vmatprep.mubr.bf16.mxu0 0
      %1757 = vmatmul.mubr.bf16.gmra.mxu0 %v1664
      %v1758 = vpop.f32.mrf.mxu0
      %v1759 = vadd.f32 0.0, %v1758
      %v1760 = vpop.f32.mrf.mxu0
      %v1761 = vpop.f32.mrf.mxu0
      %v1762 = vadd.f32 0.0, %v1761
      %v1763 = vpop.f32.mrf.mxu0
      %1764 = vmatprep.mubr.bf16.mxu0 0
      %1765 = vmatmul.mubr.bf16.gmra.mxu0 %v1667
      %v1766 = vpop.f32.mrf.mxu0
      %v1767 = vadd.f32 0.0, %v1766
      %v1768 = vpop.f32.mrf.mxu0
      %v1769 = vpop.f32.mrf.mxu0
      %v1770 = vadd.f32 0.0, %v1769
      %v1771 = vpop.f32.mrf.mxu0
      %1772 = vmatprep.mubr.bf16.mxu0 0
      %1773 = vmatmul.mubr.bf16.gmra.mxu0 %v1670
      %v1774 = vpop.f32.mrf.mxu0
      %v1775 = vadd.f32 0.0, %v1774
      %v1776 = vpop.f32.mrf.mxu0
      %v1777 = vpop.f32.mrf.mxu0
      %v1778 = vadd.f32 0.0, %v1777
      %v1779 = vpop.f32.mrf.mxu0
      %1780 = vmatprep.mubr.bf16.mxu0 0
      %1781 = vmatmul.mubr.bf16.gmra.mxu0 %v1673
      %v1782 = vpop.f32.mrf.mxu0
      %v1783 = vadd.f32 0.0, %v1782
      %v1784 = vpop.f32.mrf.mxu0
      %v1785 = vpop.f32.mrf.mxu0
      %v1786 = vadd.f32 0.0, %v1785
      %v1787 = vpop.f32.mrf.mxu0
      %1788 = vmatprep.mubr.bf16.mxu0 0
      %1789 = vmatmul.mubr.bf16.gmra.mxu0 %v1676
      %v1790 = vpop.f32.mrf.mxu0
      %v1791 = vadd.f32 0.0, %v1790
      %v1792 = vpop.f32.mrf.mxu0
      %v1793 = vpop.f32.mrf.mxu0
      %v1794 = vadd.f32 0.0, %v1793
      %v1795 = vpop.f32.mrf.mxu0
      %1796 = vmatprep.mubr.bf16.mxu0 0
      %1797 = vmatmul.mubr.bf16.gmra.mxu0 %v1679
      %v1798 = vpop.f32.mrf.mxu0
      %v1799 = vadd.f32 0.0, %v1798
      %v1800 = vpop.f32.mrf.mxu0
      %v1801 = vpop.f32.mrf.mxu0
      %v1802 = vadd.f32 0.0, %v1801
      %v1803 = vpop.f32.mrf.mxu0
      %1804 = vmatprep.mubr.bf16.mxu0 0
      %1805 = vmatmul.mubr.bf16.gmra.mxu0 %v1682
      %v1806 = vpop.f32.mrf.mxu0
      %v1807 = vadd.f32 0.0, %v1806
      %v1808 = vpop.f32.mrf.mxu0
      %v1809 = vpop.f32.mrf.mxu0
      %v1810 = vadd.f32 0.0, %v1809
      %v1811 = vpop.f32.mrf.mxu0
      %1812 = vmatprep.mubr.bf16.mxu0 0
      %1813 = vmatmul.mubr.bf16.gmra.mxu0 %v1685
      %v1814 = vpop.f32.mrf.mxu0
      %v1815 = vadd.f32 0.0, %v1814
      %v1816 = vpop.f32.mrf.mxu0
      %v1817 = vpop.f32.mrf.mxu0
      %v1818 = vadd.f32 0.0, %v1817
      %v1819 = vpop.f32.mrf.mxu0
      %1820 = vmatprep.mubr.bf16.mxu0 0
      %1821 = vmatmul.mubr.bf16.gmra.mxu0 %v1688
      %v1822 = vpop.f32.mrf.mxu0
      %v1823 = vadd.f32 0.0, %v1822
      %v1824 = vpop.f32.mrf.mxu0
      %v1825 = vpop.f32.mrf.mxu0
      %v1826 = vadd.f32 0.0, %v1825
      %v1827 = vpop.f32.mrf.mxu0
      %1828 = vmatprep.mubr.bf16.mxu0 0
      %1829 = vmatmul.mubr.bf16.gmra.mxu0 %v1691
      %v1830 = vpop.f32.mrf.mxu0
      %v1831 = vadd.f32 0.0, %v1830
      %v1832 = vpop.f32.mrf.mxu0
      %v1833 = vpop.f32.mrf.mxu0
      %v1834 = vadd.f32 0.0, %v1833
      %v1835 = vpop.f32.mrf.mxu0
      %1836 = vmatprep.mubr.bf16.mxu0 0
      %1837 = vmatmul.mubr.bf16.gmra.mxu0 %v1694
      %v1838 = vpop.f32.mrf.mxu0
      %v1839 = vadd.f32 0.0, %v1838
      %v1840 = vpop.f32.mrf.mxu0
      %v1841 = vpop.f32.mrf.mxu0
      %v1842 = vadd.f32 0.0, %v1841
      %v1843 = vpop.f32.mrf.mxu0
      %1844 = vmatprep.mubr.bf16.mxu0 0
      %1845 = vmatmul.mubr.bf16.gmra.mxu0 %v1697
      %v1846 = vpop.f32.mrf.mxu0
      %v1847 = vadd.f32 0.0, %v1846
      %v1848 = vpop.f32.mrf.mxu0
      %v1849 = vpop.f32.mrf.mxu0
      %v1850 = vadd.f32 0.0, %v1849
      %v1851 = vpop.f32.mrf.mxu0
      %1852 = vmatprep.mubr.bf16.mxu0 0
      %1853 = vmatmul.mubr.bf16.gmra.mxu0 %v1700
      %v1854 = vpop.f32.mrf.mxu0
      %v1855 = vadd.f32 0.0, %v1854
      %v1856 = vpop.f32.mrf.mxu0
      %v1857 = vpop.f32.mrf.mxu0
      %v1858 = vadd.f32 0.0, %v1857
      %v1859 = vpop.f32.mrf.mxu0
      %1860 = vmatprep.mubr.bf16.mxu0 0
      %1861 = vmatmul.mubr.bf16.gmra.mxu0 %v1703
      %v1862 = vpop.f32.mrf.mxu0
      %v1863 = vadd.f32 0.0, %v1862
      %v1864 = vpop.f32.mrf.mxu0
      %v1865 = vpop.f32.mrf.mxu0
      %v1866 = vadd.f32 0.0, %v1865
      %v1867 = vpop.f32.mrf.mxu0
      %1868 = vdwg.mxu0
      %v1869 = vadd.f32 %v1094, %v1743
      %v1870 = vadd.f32 %v1097, %v1746
      %v1871 = vadd.f32 %v1102, %v1751
      %v1872 = vadd.f32 %v1105, %v1754
      %v1873 = vadd.f32 %v1110, %v1759
      %v1874 = vadd.f32 %v1113, %v1762
      %v1875 = vadd.f32 %v1118, %v1767
      %v1876 = vadd.f32 %v1121, %v1770
      %v1877 = vadd.f32 %v1126, %v1775
      %v1878 = vadd.f32 %v1129, %v1778
      %v1879 = vadd.f32 %v1134, %v1783
      %v1880 = vadd.f32 %v1137, %v1786
      %v1881 = vadd.f32 %v1142, %v1791
      %v1882 = vadd.f32 %v1145, %v1794
      %v1883 = vadd.f32 %v1150, %v1799
      %v1884 = vadd.f32 %v1153, %v1802
      %v1885 = vadd.f32 %v1158, %v1807
      %v1886 = vadd.f32 %v1161, %v1810
      %v1887 = vadd.f32 %v1166, %v1815
      %v1888 = vadd.f32 %v1169, %v1818
      %v1889 = vadd.f32 %v1174, %v1823
      %v1890 = vadd.f32 %v1177, %v1826
      %v1891 = vadd.f32 %v1182, %v1831
      %v1892 = vadd.f32 %v1185, %v1834
      %v1893 = vadd.f32 %v1190, %v1839
      %v1894 = vadd.f32 %v1193, %v1842
      %v1895 = vadd.f32 %v1198, %v1847
      %v1896 = vadd.f32 %v1201, %v1850
      %v1897 = vadd.f32 %v1206, %v1855
      %v1898 = vadd.f32 %v1209, %v1858
      %v1899 = vadd.f32 %v1214, %v1863
      %v1900 = vadd.f32 %v1217, %v1866
      %s1901 = scalar_lea.vmem [#allocation2], 6
      %v1902 = vld [vmem:[%s1901] sm:$0x3]
      %v1935 = vunpack.c.l.b16 %v550
      %v1936 = vunpack.c.l.b16 %v551
      %v1937 = vunpack.c.l.b16 %v553
      %v1938 = vunpack.c.l.b16 %v554
      %v1939 = vunpack.c.l.b16 %v556
      %v1940 = vunpack.c.l.b16 %v557
      %v1941 = vunpack.c.l.b16 %v559
      %v1942 = vunpack.c.l.b16 %v560
      %v1943 = vunpack.c.l.b16 %v562
      %v1944 = vunpack.c.l.b16 %v563
      %v1945 = vunpack.c.l.b16 %v565
      %v1946 = vunpack.c.l.b16 %v566
      %v1947 = vunpack.c.l.b16 %v568
      %v1948 = vunpack.c.l.b16 %v569
      %v1949 = vunpack.c.l.b16 %v571
      %v1950 = vunpack.c.l.b16 %v572
      %v1951 = vunpack.c.l.b16 %v574
      %v1952 = vunpack.c.l.b16 %v575
      %v1953 = vunpack.c.l.b16 %v577
      %v1954 = vunpack.c.l.b16 %v578
      %v1955 = vunpack.c.l.b16 %v580
      %v1956 = vunpack.c.l.b16 %v581
      %v1957 = vunpack.c.l.b16 %v583
      %v1958 = vunpack.c.l.b16 %v584
      %v1959 = vunpack.c.l.b16 %v586
      %v1960 = vunpack.c.l.b16 %v587
      %v1961 = vunpack.c.l.b16 %v589
      %v1962 = vunpack.c.l.b16 %v590
      %v1963 = vunpack.c.l.b16 %v592
      %v1964 = vunpack.c.l.b16 %v593
      %v1965 = vunpack.c.l.b16 %v595
      %v1966 = vunpack.c.l.b16 %v596
      %v1967 = vpack.c.b16 %v1936, %v1935
      %v1968 = vpack.c.b16 %v1938, %v1937
      %v1969 = vpack.c.b16 %v1940, %v1939
      %v1970 = vpack.c.b16 %v1942, %v1941
      %v1971 = vpack.c.b16 %v1944, %v1943
      %v1972 = vpack.c.b16 %v1946, %v1945
      %v1973 = vpack.c.b16 %v1948, %v1947
      %v1974 = vpack.c.b16 %v1950, %v1949
      %v1975 = vpack.c.b16 %v1952, %v1951
      %v1976 = vpack.c.b16 %v1954, %v1953
      %v1977 = vpack.c.b16 %v1956, %v1955
      %v1978 = vpack.c.b16 %v1958, %v1957
      %v1979 = vpack.c.b16 %v1960, %v1959
      %v1980 = vpack.c.b16 %v1962, %v1961
      %v1981 = vpack.c.b16 %v1964, %v1963
      %v1982 = vpack.c.b16 %v1966, %v1965
      %v1984 = vsel %vm714, %v1967, 0
      %v1987 = vsel %vm714, %v1968, 0
      %v1990 = vsel %vm714, %v1969, 0
      %v1993 = vsel %vm714, %v1970, 0
      %v1996 = vsel %vm714, %v1971, 0
      %v1999 = vsel %vm714, %v1972, 0
      %v2002 = vsel %vm714, %v1973, 0
      %v2005 = vsel %vm714, %v1974, 0
      %v2008 = vsel %vm714, %v1975, 0
      %v2011 = vsel %vm714, %v1976, 0
      %v2014 = vsel %vm714, %v1977, 0
      %v2017 = vsel %vm714, %v1978, 0
      %v2020 = vsel %vm714, %v1979, 0
      %v2023 = vsel %vm714, %v1980, 0
      %v2026 = vsel %vm714, %v1981, 0
      %v2029 = vsel %vm714, %v1982, 0
      %v2032 = vsel %vm763, %v1902, 0
      %2034 = vmatprep.subr.bf16.mxu0 0
      %2035 = vmatpush1.bf16.msra.mxu0 0
      %2036 = vmatprep.subr.bf16.mxu0 0
      %2037 = vmatpush1.bf16.msra.mxu0 0
      %2038 = vmatprep.subr.bf16.mxu0 0
      %2039 = vmatpush1.bf16.msra.mxu0 0
      %2040 = vmatprep.subr.bf16.mxu0 0
      %2041 = vmatpush1.bf16.msra.mxu0 0
      %2042 = vmatprep.subr.bf16.mxu0 0
      %2043 = vmatpush1.bf16.msra.mxu0 0
      %2044 = vmatprep.subr.bf16.mxu0 0
      %2045 = vmatpush1.bf16.msra.mxu0 0
      %2046 = vmatprep.subr.bf16.mxu0 0
      %2047 = vmatpush1.bf16.msra.mxu0 0
      %2048 = vmatprep.subr.bf16.mxu0 0
      %2049 = vmatpush1.bf16.msra.mxu0 %v2032
      %2050 = vmatprep.subr.bf16.mxu0 0
      %2051 = vmatpush2.bf16.msra.mxu0 0
      %2052 = vmatprep.subr.bf16.mxu0 0
      %2053 = vmatpush2.bf16.msra.mxu0 0
      %2054 = vmatprep.subr.bf16.mxu0 0
      %2055 = vmatpush2.bf16.msra.mxu0 0
      %2056 = vmatprep.subr.bf16.mxu0 0
      %2057 = vmatpush2.bf16.msra.mxu0 0
      %2058 = vmatprep.subr.bf16.mxu0 0
      %2059 = vmatpush2.bf16.msra.mxu0 0
      %2060 = vmatprep.subr.bf16.mxu0 0
      %2061 = vmatpush2.bf16.msra.mxu0 0
      %2062 = vmatprep.subr.bf16.mxu0 0
      %2063 = vmatpush2.bf16.msra.mxu0 0
      %2064 = vmatprep.subr.bf16.mxu0 0
      %2065 = vmatpush2.bf16.msra.mxu0 0
      %2066 = vmatprep.mubr.bf16.mxu0 0
      %2067 = vmatmul.mubr.bf16.gmra.mxu0 %v1984
      %v2068 = vpop.f32.mrf.mxu0
      %v2069 = vadd.f32 0.0, %v2068
      %v2070 = vpop.f32.mrf.mxu0
      %v2071 = vpop.f32.mrf.mxu0
      %v2072 = vadd.f32 0.0, %v2071
      %v2073 = vpop.f32.mrf.mxu0
      %2074 = vmatprep.mubr.bf16.mxu0 0
      %2075 = vmatmul.mubr.bf16.gmra.mxu0 %v1987
      %v2076 = vpop.f32.mrf.mxu0
      %v2077 = vadd.f32 0.0, %v2076
      %v2078 = vpop.f32.mrf.mxu0
      %v2079 = vpop.f32.mrf.mxu0
      %v2080 = vadd.f32 0.0, %v2079
      %v2081 = vpop.f32.mrf.mxu0
      %2082 = vmatprep.mubr.bf16.mxu0 0
      %2083 = vmatmul.mubr.bf16.gmra.mxu0 %v1990
      %v2084 = vpop.f32.mrf.mxu0
      %v2085 = vadd.f32 0.0, %v2084
      %v2086 = vpop.f32.mrf.mxu0
      %v2087 = vpop.f32.mrf.mxu0
      %v2088 = vadd.f32 0.0, %v2087
      %v2089 = vpop.f32.mrf.mxu0
      %2090 = vmatprep.mubr.bf16.mxu0 0
      %2091 = vmatmul.mubr.bf16.gmra.mxu0 %v1993
      %v2092 = vpop.f32.mrf.mxu0
      %v2093 = vadd.f32 0.0, %v2092
      %v2094 = vpop.f32.mrf.mxu0
      %v2095 = vpop.f32.mrf.mxu0
      %v2096 = vadd.f32 0.0, %v2095
      %v2097 = vpop.f32.mrf.mxu0
      %2098 = vmatprep.mubr.bf16.mxu0 0
      %2099 = vmatmul.mubr.bf16.gmra.mxu0 %v1996
      %v2100 = vpop.f32.mrf.mxu0
      %v2101 = vadd.f32 0.0, %v2100
      %v2102 = vpop.f32.mrf.mxu0
      %v2103 = vpop.f32.mrf.mxu0
      %v2104 = vadd.f32 0.0, %v2103
      %v2105 = vpop.f32.mrf.mxu0
      %2106 = vmatprep.mubr.bf16.mxu0 0
      %2107 = vmatmul.mubr.bf16.gmra.mxu0 %v1999
      %v2108 = vpop.f32.mrf.mxu0
      %v2109 = vadd.f32 0.0, %v2108
      %v2110 = vpop.f32.mrf.mxu0
      %v2111 = vpop.f32.mrf.mxu0
      %v2112 = vadd.f32 0.0, %v2111
      %v2113 = vpop.f32.mrf.mxu0
      %2114 = vmatprep.mubr.bf16.mxu0 0
      %2115 = vmatmul.mubr.bf16.gmra.mxu0 %v2002
      %v2116 = vpop.f32.mrf.mxu0
      %v2117 = vadd.f32 0.0, %v2116
      %v2118 = vpop.f32.mrf.mxu0
      %v2119 = vpop.f32.mrf.mxu0
      %v2120 = vadd.f32 0.0, %v2119
      %v2121 = vpop.f32.mrf.mxu0
      %2122 = vmatprep.mubr.bf16.mxu0 0
      %2123 = vmatmul.mubr.bf16.gmra.mxu0 %v2005
      %v2124 = vpop.f32.mrf.mxu0
      %v2125 = vadd.f32 0.0, %v2124
      %v2126 = vpop.f32.mrf.mxu0
      %v2127 = vpop.f32.mrf.mxu0
      %v2128 = vadd.f32 0.0, %v2127
      %v2129 = vpop.f32.mrf.mxu0
      %2130 = vmatprep.mubr.bf16.mxu0 0
      %2131 = vmatmul.mubr.bf16.gmra.mxu0 %v2008
      %v2132 = vpop.f32.mrf.mxu0
      %v2133 = vadd.f32 0.0, %v2132
      %v2134 = vpop.f32.mrf.mxu0
      %v2135 = vpop.f32.mrf.mxu0
      %v2136 = vadd.f32 0.0, %v2135
      %v2137 = vpop.f32.mrf.mxu0
      %2138 = vmatprep.mubr.bf16.mxu0 0
      %2139 = vmatmul.mubr.bf16.gmra.mxu0 %v2011
      %v2140 = vpop.f32.mrf.mxu0
      %v2141 = vadd.f32 0.0, %v2140
      %v2142 = vpop.f32.mrf.mxu0
      %v2143 = vpop.f32.mrf.mxu0
      %v2144 = vadd.f32 0.0, %v2143
      %v2145 = vpop.f32.mrf.mxu0
      %2146 = vmatprep.mubr.bf16.mxu0 0
      %2147 = vmatmul.mubr.bf16.gmra.mxu0 %v2014
      %v2148 = vpop.f32.mrf.mxu0
      %v2149 = vadd.f32 0.0, %v2148
      %v2150 = vpop.f32.mrf.mxu0
      %v2151 = vpop.f32.mrf.mxu0
      %v2152 = vadd.f32 0.0, %v2151
      %v2153 = vpop.f32.mrf.mxu0
      %2154 = vmatprep.mubr.bf16.mxu0 0
      %2155 = vmatmul.mubr.bf16.gmra.mxu0 %v2017
      %v2156 = vpop.f32.mrf.mxu0
      %v2157 = vadd.f32 0.0, %v2156
      %v2158 = vpop.f32.mrf.mxu0
      %v2159 = vpop.f32.mrf.mxu0
      %v2160 = vadd.f32 0.0, %v2159
      %v2161 = vpop.f32.mrf.mxu0
      %2162 = vmatprep.mubr.bf16.mxu0 0
      %2163 = vmatmul.mubr.bf16.gmra.mxu0 %v2020
      %v2164 = vpop.f32.mrf.mxu0
      %v2165 = vadd.f32 0.0, %v2164
      %v2166 = vpop.f32.mrf.mxu0
      %v2167 = vpop.f32.mrf.mxu0
      %v2168 = vadd.f32 0.0, %v2167
      %v2169 = vpop.f32.mrf.mxu0
      %2170 = vmatprep.mubr.bf16.mxu0 0
      %2171 = vmatmul.mubr.bf16.gmra.mxu0 %v2023
      %v2172 = vpop.f32.mrf.mxu0
      %v2173 = vadd.f32 0.0, %v2172
      %v2174 = vpop.f32.mrf.mxu0
      %v2175 = vpop.f32.mrf.mxu0
      %v2176 = vadd.f32 0.0, %v2175
      %v2177 = vpop.f32.mrf.mxu0
      %2178 = vmatprep.mubr.bf16.mxu0 0
      %2179 = vmatmul.mubr.bf16.gmra.mxu0 %v2026
      %v2180 = vpop.f32.mrf.mxu0
      %v2181 = vadd.f32 0.0, %v2180
      %v2182 = vpop.f32.mrf.mxu0
      %v2183 = vpop.f32.mrf.mxu0
      %v2184 = vadd.f32 0.0, %v2183
      %v2185 = vpop.f32.mrf.mxu0
      %2186 = vmatprep.mubr.bf16.mxu0 0
      %2187 = vmatmul.mubr.bf16.gmra.mxu0 %v2029
      %v2188 = vpop.f32.mrf.mxu0
      %v2189 = vadd.f32 0.0, %v2188
      %v2190 = vpop.f32.mrf.mxu0
      %v2191 = vpop.f32.mrf.mxu0
      %v2192 = vadd.f32 0.0, %v2191
      %v2193 = vpop.f32.mrf.mxu0
      %2194 = vdwg.mxu0
      %v2195 = vadd.f32 %v1869, %v2069
      %v2196 = vadd.f32 %v1870, %v2072
      %v2197 = vadd.f32 %v1871, %v2077
      %v2198 = vadd.f32 %v1872, %v2080
      %v2199 = vadd.f32 %v1873, %v2085
      %v2200 = vadd.f32 %v1874, %v2088
      %v2201 = vadd.f32 %v1875, %v2093
      %v2202 = vadd.f32 %v1876, %v2096
      %v2203 = vadd.f32 %v1877, %v2101
      %v2204 = vadd.f32 %v1878, %v2104
      %v2205 = vadd.f32 %v1879, %v2109
      %v2206 = vadd.f32 %v1880, %v2112
      %v2207 = vadd.f32 %v1881, %v2117
      %v2208 = vadd.f32 %v1882, %v2120
      %v2209 = vadd.f32 %v1883, %v2125
      %v2210 = vadd.f32 %v1884, %v2128
      %v2211 = vadd.f32 %v1885, %v2133
      %v2212 = vadd.f32 %v1886, %v2136
      %v2213 = vadd.f32 %v1887, %v2141
      %v2214 = vadd.f32 %v1888, %v2144
      %v2215 = vadd.f32 %v1889, %v2149
      %v2216 = vadd.f32 %v1890, %v2152
      %v2217 = vadd.f32 %v1891, %v2157
      %v2218 = vadd.f32 %v1892, %v2160
      %v2219 = vadd.f32 %v1893, %v2165
      %v2220 = vadd.f32 %v1894, %v2168
      %v2221 = vadd.f32 %v1895, %v2173
      %v2222 = vadd.f32 %v1896, %v2176
      %v2223 = vadd.f32 %v1897, %v2181
      %v2224 = vadd.f32 %v1898, %v2184
      %v2225 = vadd.f32 %v1899, %v2189
      %v2226 = vadd.f32 %v1900, %v2192
      %s2227 = scalar_lea.vmem [#allocation2], 8
      %v2228 = vld [vmem:[%s2227] sm:$0x3]
      %v2261 = vunpack.c.l.b16 %v599
      %v2262 = vunpack.c.l.b16 %v600
      %v2263 = vunpack.c.l.b16 %v601
      %v2264 = vunpack.c.l.b16 %v602
      %v2265 = vunpack.c.l.b16 %v603
      %v2266 = vunpack.c.l.b16 %v604
      %v2267 = vunpack.c.l.b16 %v605
      %v2268 = vunpack.c.l.b16 %v606
      %v2269 = vunpack.c.l.b16 %v607
      %v2270 = vunpack.c.l.b16 %v608
      %v2271 = vunpack.c.l.b16 %v609
      %v2272 = vunpack.c.l.b16 %v610
      %v2273 = vunpack.c.l.b16 %v611
      %v2274 = vunpack.c.l.b16 %v612
      %v2275 = vunpack.c.l.b16 %v613
      %v2276 = vunpack.c.l.b16 %v614
      %v2277 = vunpack.c.l.b16 %v615
      %v2278 = vunpack.c.l.b16 %v616
      %v2279 = vunpack.c.l.b16 %v617
      %v2280 = vunpack.c.l.b16 %v618
      %v2281 = vunpack.c.l.b16 %v619
      %v2282 = vunpack.c.l.b16 %v620
      %v2283 = vunpack.c.l.b16 %v621
      %v2284 = vunpack.c.l.b16 %v622
      %v2285 = vunpack.c.l.b16 %v623
      %v2286 = vunpack.c.l.b16 %v624
      %v2287 = vunpack.c.l.b16 %v625
      %v2288 = vunpack.c.l.b16 %v626
      %v2289 = vunpack.c.l.b16 %v627
      %v2290 = vunpack.c.l.b16 %v628
      %v2291 = vunpack.c.l.b16 %v629
      %v2292 = vunpack.c.l.b16 %v630
      %v2293 = vpack.c.b16 %v2262, %v2261
      %v2294 = vpack.c.b16 %v2264, %v2263
      %v2295 = vpack.c.b16 %v2266, %v2265
      %v2296 = vpack.c.b16 %v2268, %v2267
      %v2297 = vpack.c.b16 %v2270, %v2269
      %v2298 = vpack.c.b16 %v2272, %v2271
      %v2299 = vpack.c.b16 %v2274, %v2273
      %v2300 = vpack.c.b16 %v2276, %v2275
      %v2301 = vpack.c.b16 %v2278, %v2277
      %v2302 = vpack.c.b16 %v2280, %v2279
      %v2303 = vpack.c.b16 %v2282, %v2281
      %v2304 = vpack.c.b16 %v2284, %v2283
      %v2305 = vpack.c.b16 %v2286, %v2285
      %v2306 = vpack.c.b16 %v2288, %v2287
      %v2307 = vpack.c.b16 %v2290, %v2289
      %v2308 = vpack.c.b16 %v2292, %v2291
      %v2310 = vsel %vm714, %v2293, 0
      %v2313 = vsel %vm714, %v2294, 0
      %v2316 = vsel %vm714, %v2295, 0
      %v2319 = vsel %vm714, %v2296, 0
      %v2322 = vsel %vm714, %v2297, 0
      %v2325 = vsel %vm714, %v2298, 0
      %v2328 = vsel %vm714, %v2299, 0
      %v2331 = vsel %vm714, %v2300, 0
      %v2334 = vsel %vm714, %v2301, 0
      %v2337 = vsel %vm714, %v2302, 0
      %v2340 = vsel %vm714, %v2303, 0
      %v2343 = vsel %vm714, %v2304, 0
      %v2346 = vsel %vm714, %v2305, 0
      %v2349 = vsel %vm714, %v2306, 0
      %v2352 = vsel %vm714, %v2307, 0
      %v2355 = vsel %vm714, %v2308, 0
      %v2358 = vsel %vm763, %v2228, 0
      %2360 = vmatprep.subr.bf16.mxu0 0
      %2361 = vmatpush1.bf16.msra.mxu0 0
      %2362 = vmatprep.subr.bf16.mxu0 0
      %2363 = vmatpush1.bf16.msra.mxu0 0
      %2364 = vmatprep.subr.bf16.mxu0 0
      %2365 = vmatpush1.bf16.msra.mxu0 0
      %2366 = vmatprep.subr.bf16.mxu0 0
      %2367 = vmatpush1.bf16.msra.mxu0 0
      %2368 = vmatprep.subr.bf16.mxu0 0
      %2369 = vmatpush1.bf16.msra.mxu0 0
      %2370 = vmatprep.subr.bf16.mxu0 0
      %2371 = vmatpush1.bf16.msra.mxu0 0
      %2372 = vmatprep.subr.bf16.mxu0 0
      %2373 = vmatpush1.bf16.msra.mxu0 0
      %2374 = vmatprep.subr.bf16.mxu0 0
      %2375 = vmatpush1.bf16.msra.mxu0 %v2358
      %2376 = vmatprep.subr.bf16.mxu0 0
      %2377 = vmatpush2.bf16.msra.mxu0 0
      %2378 = vmatprep.subr.bf16.mxu0 0
      %2379 = vmatpush2.bf16.msra.mxu0 0
      %2380 = vmatprep.subr.bf16.mxu0 0
      %2381 = vmatpush2.bf16.msra.mxu0 0
      %2382 = vmatprep.subr.bf16.mxu0 0
      %2383 = vmatpush2.bf16.msra.mxu0 0
      %2384 = vmatprep.subr.bf16.mxu0 0
      %2385 = vmatpush2.bf16.msra.mxu0 0
      %2386 = vmatprep.subr.bf16.mxu0 0
      %2387 = vmatpush2.bf16.msra.mxu0 0
      %2388 = vmatprep.subr.bf16.mxu0 0
      %2389 = vmatpush2.bf16.msra.mxu0 0
      %2390 = vmatprep.subr.bf16.mxu0 0
      %2391 = vmatpush2.bf16.msra.mxu0 0
      %2392 = vmatprep.mubr.bf16.mxu0 0
      %2393 = vmatmul.mubr.bf16.gmra.mxu0 %v2310
      %v2394 = vpop.f32.mrf.mxu0
      %v2395 = vadd.f32 0.0, %v2394
      %v2396 = vpop.f32.mrf.mxu0
      %v2397 = vpop.f32.mrf.mxu0
      %v2398 = vadd.f32 0.0, %v2397
      %v2399 = vpop.f32.mrf.mxu0
      %2400 = vmatprep.mubr.bf16.mxu0 0
      %2401 = vmatmul.mubr.bf16.gmra.mxu0 %v2313
      %v2402 = vpop.f32.mrf.mxu0
      %v2403 = vadd.f32 0.0, %v2402
      %v2404 = vpop.f32.mrf.mxu0
      %v2405 = vpop.f32.mrf.mxu0
      %v2406 = vadd.f32 0.0, %v2405
      %v2407 = vpop.f32.mrf.mxu0
      %2408 = vmatprep.mubr.bf16.mxu0 0
      %2409 = vmatmul.mubr.bf16.gmra.mxu0 %v2316
      %v2410 = vpop.f32.mrf.mxu0
      %v2411 = vadd.f32 0.0, %v2410
      %v2412 = vpop.f32.mrf.mxu0
      %v2413 = vpop.f32.mrf.mxu0
      %v2414 = vadd.f32 0.0, %v2413
      %v2415 = vpop.f32.mrf.mxu0
      %2416 = vmatprep.mubr.bf16.mxu0 0
      %2417 = vmatmul.mubr.bf16.gmra.mxu0 %v2319
      %v2418 = vpop.f32.mrf.mxu0
      %v2419 = vadd.f32 0.0, %v2418
      %v2420 = vpop.f32.mrf.mxu0
      %v2421 = vpop.f32.mrf.mxu0
      %v2422 = vadd.f32 0.0, %v2421
      %v2423 = vpop.f32.mrf.mxu0
      %2424 = vmatprep.mubr.bf16.mxu0 0
      %2425 = vmatmul.mubr.bf16.gmra.mxu0 %v2322
      %v2426 = vpop.f32.mrf.mxu0
      %v2427 = vadd.f32 0.0, %v2426
      %v2428 = vpop.f32.mrf.mxu0
      %v2429 = vpop.f32.mrf.mxu0
      %v2430 = vadd.f32 0.0, %v2429
      %v2431 = vpop.f32.mrf.mxu0
      %2432 = vmatprep.mubr.bf16.mxu0 0
      %2433 = vmatmul.mubr.bf16.gmra.mxu0 %v2325
      %v2434 = vpop.f32.mrf.mxu0
      %v2435 = vadd.f32 0.0, %v2434
      %v2436 = vpop.f32.mrf.mxu0
      %v2437 = vpop.f32.mrf.mxu0
      %v2438 = vadd.f32 0.0, %v2437
      %v2439 = vpop.f32.mrf.mxu0
      %2440 = vmatprep.mubr.bf16.mxu0 0
      %2441 = vmatmul.mubr.bf16.gmra.mxu0 %v2328
      %v2442 = vpop.f32.mrf.mxu0
      %v2443 = vadd.f32 0.0, %v2442
      %v2444 = vpop.f32.mrf.mxu0
      %v2445 = vpop.f32.mrf.mxu0
      %v2446 = vadd.f32 0.0, %v2445
      %v2447 = vpop.f32.mrf.mxu0
      %2448 = vmatprep.mubr.bf16.mxu0 0
      %2449 = vmatmul.mubr.bf16.gmra.mxu0 %v2331
      %v2450 = vpop.f32.mrf.mxu0
      %v2451 = vadd.f32 0.0, %v2450
      %v2452 = vpop.f32.mrf.mxu0
      %v2453 = vpop.f32.mrf.mxu0
      %v2454 = vadd.f32 0.0, %v2453
      %v2455 = vpop.f32.mrf.mxu0
      %2456 = vmatprep.mubr.bf16.mxu0 0
      %2457 = vmatmul.mubr.bf16.gmra.mxu0 %v2334
      %v2458 = vpop.f32.mrf.mxu0
      %v2459 = vadd.f32 0.0, %v2458
      %v2460 = vpop.f32.mrf.mxu0
      %v2461 = vpop.f32.mrf.mxu0
      %v2462 = vadd.f32 0.0, %v2461
      %v2463 = vpop.f32.mrf.mxu0
      %2464 = vmatprep.mubr.bf16.mxu0 0
      %2465 = vmatmul.mubr.bf16.gmra.mxu0 %v2337
      %v2466 = vpop.f32.mrf.mxu0
      %v2467 = vadd.f32 0.0, %v2466
      %v2468 = vpop.f32.mrf.mxu0
      %v2469 = vpop.f32.mrf.mxu0
      %v2470 = vadd.f32 0.0, %v2469
      %v2471 = vpop.f32.mrf.mxu0
      %2472 = vmatprep.mubr.bf16.mxu0 0
      %2473 = vmatmul.mubr.bf16.gmra.mxu0 %v2340
      %v2474 = vpop.f32.mrf.mxu0
      %v2475 = vadd.f32 0.0, %v2474
      %v2476 = vpop.f32.mrf.mxu0
      %v2477 = vpop.f32.mrf.mxu0
      %v2478 = vadd.f32 0.0, %v2477
      %v2479 = vpop.f32.mrf.mxu0
      %2480 = vmatprep.mubr.bf16.mxu0 0
      %2481 = vmatmul.mubr.bf16.gmra.mxu0 %v2343
      %v2482 = vpop.f32.mrf.mxu0
      %v2483 = vadd.f32 0.0, %v2482
      %v2484 = vpop.f32.mrf.mxu0
      %v2485 = vpop.f32.mrf.mxu0
      %v2486 = vadd.f32 0.0, %v2485
      %v2487 = vpop.f32.mrf.mxu0
      %2488 = vmatprep.mubr.bf16.mxu0 0
      %2489 = vmatmul.mubr.bf16.gmra.mxu0 %v2346
      %v2490 = vpop.f32.mrf.mxu0
      %v2491 = vadd.f32 0.0, %v2490
      %v2492 = vpop.f32.mrf.mxu0
      %v2493 = vpop.f32.mrf.mxu0
      %v2494 = vadd.f32 0.0, %v2493
      %v2495 = vpop.f32.mrf.mxu0
      %2496 = vmatprep.mubr.bf16.mxu0 0
      %2497 = vmatmul.mubr.bf16.gmra.mxu0 %v2349
      %v2498 = vpop.f32.mrf.mxu0
      %v2499 = vadd.f32 0.0, %v2498
      %v2500 = vpop.f32.mrf.mxu0
      %v2501 = vpop.f32.mrf.mxu0
      %v2502 = vadd.f32 0.0, %v2501
      %v2503 = vpop.f32.mrf.mxu0
      %2504 = vmatprep.mubr.bf16.mxu0 0
      %2505 = vmatmul.mubr.bf16.gmra.mxu0 %v2352
      %v2506 = vpop.f32.mrf.mxu0
      %v2507 = vadd.f32 0.0, %v2506
      %v2508 = vpop.f32.mrf.mxu0
      %v2509 = vpop.f32.mrf.mxu0
      %v2510 = vadd.f32 0.0, %v2509
      %v2511 = vpop.f32.mrf.mxu0
      %2512 = vmatprep.mubr.bf16.mxu0 0
      %2513 = vmatmul.mubr.bf16.gmra.mxu0 %v2355
      %v2514 = vpop.f32.mrf.mxu0
      %v2515 = vadd.f32 0.0, %v2514
      %v2516 = vpop.f32.mrf.mxu0
      %v2517 = vpop.f32.mrf.mxu0
      %v2518 = vadd.f32 0.0, %v2517
      %v2519 = vpop.f32.mrf.mxu0
      %2520 = vdwg.mxu0
      %v2521 = vadd.f32 %v2195, %v2395
      %v2522 = vadd.f32 %v2196, %v2398
      %v2523 = vadd.f32 %v2197, %v2403
      %v2524 = vadd.f32 %v2198, %v2406
      %v2525 = vadd.f32 %v2199, %v2411
      %v2526 = vadd.f32 %v2200, %v2414
      %v2527 = vadd.f32 %v2201, %v2419
      %v2528 = vadd.f32 %v2202, %v2422
      %v2529 = vadd.f32 %v2203, %v2427
      %v2530 = vadd.f32 %v2204, %v2430
      %v2531 = vadd.f32 %v2205, %v2435
      %v2532 = vadd.f32 %v2206, %v2438
      %v2533 = vadd.f32 %v2207, %v2443
      %v2534 = vadd.f32 %v2208, %v2446
      %v2535 = vadd.f32 %v2209, %v2451
      %v2536 = vadd.f32 %v2210, %v2454
      %v2537 = vadd.f32 %v2211, %v2459
      %v2538 = vadd.f32 %v2212, %v2462
      %v2539 = vadd.f32 %v2213, %v2467
      %v2540 = vadd.f32 %v2214, %v2470
      %v2541 = vadd.f32 %v2215, %v2475
      %v2542 = vadd.f32 %v2216, %v2478
      %v2543 = vadd.f32 %v2217, %v2483
      %v2544 = vadd.f32 %v2218, %v2486
      %v2545 = vadd.f32 %v2219, %v2491
      %v2546 = vadd.f32 %v2220, %v2494
      %v2547 = vadd.f32 %v2221, %v2499
      %v2548 = vadd.f32 %v2222, %v2502
      %v2549 = vadd.f32 %v2223, %v2507
      %v2550 = vadd.f32 %v2224, %v2510
      %v2551 = vadd.f32 %v2225, %v2515
      %v2552 = vadd.f32 %v2226, %v2518
      %v2554 = vshrl.u32 %v550, 16
      %v2556 = vrot.slane %v2554, 4
      %v2557 = vshll.u32 %v550, 16
      %v2559 = vrot.slane %v2557, 5
      %v2560 = vor.u32 %v2556, %v2559
      %v2561 = vrot.slane %v2560, 4
      %v2563 = vshll.u32 %v551, 16
      %v2565 = vrot.slane %v2563, 5
      %v2566 = vsel %vm1222, %v2561, %v2565
      %v2567 = vshrl.u32 %v551, 16
      %v2569 = vrot.slane %v2567, 4
      %v2570 = vor.u32 %v2569, %v2565
      %v2571 = vrot.slane %v2570, 4
      %v2573 = vshll.u32 %v552, 16
      %v2575 = vrot.slane %v2573, 5
      %v2576 = vsel %vm1222, %v2571, %v2575
      %v2578 = vshrl.u32 %v553, 16
      %v2580 = vrot.slane %v2578, 4
      %v2581 = vshll.u32 %v553, 16
      %v2583 = vrot.slane %v2581, 5
      %v2584 = vor.u32 %v2580, %v2583
      %v2585 = vrot.slane %v2584, 4
      %v2587 = vshll.u32 %v554, 16
      %v2589 = vrot.slane %v2587, 5
      %v2590 = vsel %vm1222, %v2585, %v2589
      %v2591 = vshrl.u32 %v554, 16
      %v2593 = vrot.slane %v2591, 4
      %v2594 = vor.u32 %v2593, %v2589
      %v2595 = vrot.slane %v2594, 4
      %v2597 = vshll.u32 %v555, 16
      %v2599 = vrot.slane %v2597, 5
      %v2600 = vsel %vm1222, %v2595, %v2599
      %v2602 = vshrl.u32 %v556, 16
      %v2604 = vrot.slane %v2602, 4
      %v2605 = vshll.u32 %v556, 16
      %v2607 = vrot.slane %v2605, 5
      %v2608 = vor.u32 %v2604, %v2607
      %v2609 = vrot.slane %v2608, 4
      %v2611 = vshll.u32 %v557, 16
      %v2613 = vrot.slane %v2611, 5
      %v2614 = vsel %vm1222, %v2609, %v2613
      %v2615 = vshrl.u32 %v557, 16
      %v2617 = vrot.slane %v2615, 4
      %v2618 = vor.u32 %v2617, %v2613
      %v2619 = vrot.slane %v2618, 4
      %v2621 = vshll.u32 %v558, 16
      %v2623 = vrot.slane %v2621, 5
      %v2624 = vsel %vm1222, %v2619, %v2623
      %v2626 = vshrl.u32 %v559, 16
      %v2628 = vrot.slane %v2626, 4
      %v2629 = vshll.u32 %v559, 16
      %v2631 = vrot.slane %v2629, 5
      %v2632 = vor.u32 %v2628, %v2631
      %v2633 = vrot.slane %v2632, 4
      %v2635 = vshll.u32 %v560, 16
      %v2637 = vrot.slane %v2635, 5
      %v2638 = vsel %vm1222, %v2633, %v2637
      %v2639 = vshrl.u32 %v560, 16
      %v2641 = vrot.slane %v2639, 4
      %v2642 = vor.u32 %v2641, %v2637
      %v2643 = vrot.slane %v2642, 4
      %v2645 = vshll.u32 %v561, 16
      %v2647 = vrot.slane %v2645, 5
      %v2648 = vsel %vm1222, %v2643, %v2647
      %v2650 = vshrl.u32 %v562, 16
      %v2652 = vrot.slane %v2650, 4
      %v2653 = vshll.u32 %v562, 16
      %v2655 = vrot.slane %v2653, 5
      %v2656 = vor.u32 %v2652, %v2655
      %v2657 = vrot.slane %v2656, 4
      %v2659 = vshll.u32 %v563, 16
      %v2661 = vrot.slane %v2659, 5
      %v2662 = vsel %vm1222, %v2657, %v2661
      %v2663 = vshrl.u32 %v563, 16
      %v2665 = vrot.slane %v2663, 4
      %v2666 = vor.u32 %v2665, %v2661
      %v2667 = vrot.slane %v2666, 4
      %v2669 = vshll.u32 %v564, 16
      %v2671 = vrot.slane %v2669, 5
      %v2672 = vsel %vm1222, %v2667, %v2671
      %v2674 = vshrl.u32 %v565, 16
      %v2676 = vrot.slane %v2674, 4
      %v2677 = vshll.u32 %v565, 16
      %v2679 = vrot.slane %v2677, 5
      %v2680 = vor.u32 %v2676, %v2679
      %v2681 = vrot.slane %v2680, 4
      %v2683 = vshll.u32 %v566, 16
      %v2685 = vrot.slane %v2683, 5
      %v2686 = vsel %vm1222, %v2681, %v2685
      %v2687 = vshrl.u32 %v566, 16
      %v2689 = vrot.slane %v2687, 4
      %v2690 = vor.u32 %v2689, %v2685
      %v2691 = vrot.slane %v2690, 4
      %v2693 = vshll.u32 %v567, 16
      %v2695 = vrot.slane %v2693, 5
      %v2696 = vsel %vm1222, %v2691, %v2695
      %v2698 = vshrl.u32 %v568, 16
      %v2700 = vrot.slane %v2698, 4
      %v2701 = vshll.u32 %v568, 16
      %v2703 = vrot.slane %v2701, 5
      %v2704 = vor.u32 %v2700, %v2703
      %v2705 = vrot.slane %v2704, 4
      %v2707 = vshll.u32 %v569, 16
      %v2709 = vrot.slane %v2707, 5
      %v2710 = vsel %vm1222, %v2705, %v2709
      %v2711 = vshrl.u32 %v569, 16
      %v2713 = vrot.slane %v2711, 4
      %v2714 = vor.u32 %v2713, %v2709
      %v2715 = vrot.slane %v2714, 4
      %v2717 = vshll.u32 %v570, 16
      %v2719 = vrot.slane %v2717, 5
      %v2720 = vsel %vm1222, %v2715, %v2719
      %v2722 = vshrl.u32 %v571, 16
      %v2724 = vrot.slane %v2722, 4
      %v2725 = vshll.u32 %v571, 16
      %v2727 = vrot.slane %v2725, 5
      %v2728 = vor.u32 %v2724, %v2727
      %v2729 = vrot.slane %v2728, 4
      %v2731 = vshll.u32 %v572, 16
      %v2733 = vrot.slane %v2731, 5
      %v2734 = vsel %vm1222, %v2729, %v2733
      %v2735 = vshrl.u32 %v572, 16
      %v2737 = vrot.slane %v2735, 4
      %v2738 = vor.u32 %v2737, %v2733
      %v2739 = vrot.slane %v2738, 4
      %v2741 = vshll.u32 %v573, 16
      %v2743 = vrot.slane %v2741, 5
      %v2744 = vsel %vm1222, %v2739, %v2743
      %v2746 = vshrl.u32 %v574, 16
      %v2748 = vrot.slane %v2746, 4
      %v2749 = vshll.u32 %v574, 16
      %v2751 = vrot.slane %v2749, 5
      %v2752 = vor.u32 %v2748, %v2751
      %v2753 = vrot.slane %v2752, 4
      %v2755 = vshll.u32 %v575, 16
      %v2757 = vrot.slane %v2755, 5
      %v2758 = vsel %vm1222, %v2753, %v2757
      %v2759 = vshrl.u32 %v575, 16
      %v2761 = vrot.slane %v2759, 4
      %v2762 = vor.u32 %v2761, %v2757
      %v2763 = vrot.slane %v2762, 4
      %v2765 = vshll.u32 %v576, 16
      %v2767 = vrot.slane %v2765, 5
      %v2768 = vsel %vm1222, %v2763, %v2767
      %v2770 = vshrl.u32 %v577, 16
      %v2772 = vrot.slane %v2770, 4
      %v2773 = vshll.u32 %v577, 16
      %v2775 = vrot.slane %v2773, 5
      %v2776 = vor.u32 %v2772, %v2775
      %v2777 = vrot.slane %v2776, 4
      %v2779 = vshll.u32 %v578, 16
      %v2781 = vrot.slane %v2779, 5
      %v2782 = vsel %vm1222, %v2777, %v2781
      %v2783 = vshrl.u32 %v578, 16
      %v2785 = vrot.slane %v2783, 4
      %v2786 = vor.u32 %v2785, %v2781
      %v2787 = vrot.slane %v2786, 4
      %v2789 = vshll.u32 %v579, 16
      %v2791 = vrot.slane %v2789, 5
      %v2792 = vsel %vm1222, %v2787, %v2791
      %v2794 = vshrl.u32 %v580, 16
      %v2796 = vrot.slane %v2794, 4
      %v2797 = vshll.u32 %v580, 16
      %v2799 = vrot.slane %v2797, 5
      %v2800 = vor.u32 %v2796, %v2799
      %v2801 = vrot.slane %v2800, 4
      %v2803 = vshll.u32 %v581, 16
      %v2805 = vrot.slane %v2803, 5
      %v2806 = vsel %vm1222, %v2801, %v2805
      %v2807 = vshrl.u32 %v581, 16
      %v2809 = vrot.slane %v2807, 4
      %v2810 = vor.u32 %v2809, %v2805
      %v2811 = vrot.slane %v2810, 4
      %v2813 = vshll.u32 %v582, 16
      %v2815 = vrot.slane %v2813, 5
      %v2816 = vsel %vm1222, %v2811, %v2815
      %v2818 = vshrl.u32 %v583, 16
      %v2820 = vrot.slane %v2818, 4
      %v2821 = vshll.u32 %v583, 16
      %v2823 = vrot.slane %v2821, 5
      %v2824 = vor.u32 %v2820, %v2823
      %v2825 = vrot.slane %v2824, 4
      %v2827 = vshll.u32 %v584, 16
      %v2829 = vrot.slane %v2827, 5
      %v2830 = vsel %vm1222, %v2825, %v2829
      %v2831 = vshrl.u32 %v584, 16
      %v2833 = vrot.slane %v2831, 4
      %v2834 = vor.u32 %v2833, %v2829
      %v2835 = vrot.slane %v2834, 4
      %v2837 = vshll.u32 %v585, 16
      %v2839 = vrot.slane %v2837, 5
      %v2840 = vsel %vm1222, %v2835, %v2839
      %v2842 = vshrl.u32 %v586, 16
      %v2844 = vrot.slane %v2842, 4
      %v2845 = vshll.u32 %v586, 16
      %v2847 = vrot.slane %v2845, 5
      %v2848 = vor.u32 %v2844, %v2847
      %v2849 = vrot.slane %v2848, 4
      %v2851 = vshll.u32 %v587, 16
      %v2853 = vrot.slane %v2851, 5
      %v2854 = vsel %vm1222, %v2849, %v2853
      %v2855 = vshrl.u32 %v587, 16
      %v2857 = vrot.slane %v2855, 4
      %v2858 = vor.u32 %v2857, %v2853
      %v2859 = vrot.slane %v2858, 4
      %v2861 = vshll.u32 %v588, 16
      %v2863 = vrot.slane %v2861, 5
      %v2864 = vsel %vm1222, %v2859, %v2863
      %v2866 = vshrl.u32 %v589, 16
      %v2868 = vrot.slane %v2866, 4
      %v2869 = vshll.u32 %v589, 16
      %v2871 = vrot.slane %v2869, 5
      %v2872 = vor.u32 %v2868, %v2871
      %v2873 = vrot.slane %v2872, 4
      %v2875 = vshll.u32 %v590, 16
      %v2877 = vrot.slane %v2875, 5
      %v2878 = vsel %vm1222, %v2873, %v2877
      %v2879 = vshrl.u32 %v590, 16
      %v2881 = vrot.slane %v2879, 4
      %v2882 = vor.u32 %v2881, %v2877
      %v2883 = vrot.slane %v2882, 4
      %v2885 = vshll.u32 %v591, 16
      %v2887 = vrot.slane %v2885, 5
      %v2888 = vsel %vm1222, %v2883, %v2887
      %v2890 = vshrl.u32 %v592, 16
      %v2892 = vrot.slane %v2890, 4
      %v2893 = vshll.u32 %v592, 16
      %v2895 = vrot.slane %v2893, 5
      %v2896 = vor.u32 %v2892, %v2895
      %v2897 = vrot.slane %v2896, 4
      %v2899 = vshll.u32 %v593, 16
      %v2901 = vrot.slane %v2899, 5
      %v2902 = vsel %vm1222, %v2897, %v2901
      %v2903 = vshrl.u32 %v593, 16
      %v2905 = vrot.slane %v2903, 4
      %v2906 = vor.u32 %v2905, %v2901
      %v2907 = vrot.slane %v2906, 4
      %v2909 = vshll.u32 %v594, 16
      %v2911 = vrot.slane %v2909, 5
      %v2912 = vsel %vm1222, %v2907, %v2911
      %v2914 = vshrl.u32 %v595, 16
      %v2916 = vrot.slane %v2914, 4
      %v2917 = vshll.u32 %v595, 16
      %v2919 = vrot.slane %v2917, 5
      %v2920 = vor.u32 %v2916, %v2919
      %v2921 = vrot.slane %v2920, 4
      %v2923 = vshll.u32 %v596, 16
      %v2925 = vrot.slane %v2923, 5
      %v2926 = vsel %vm1222, %v2921, %v2925
      %v2927 = vshrl.u32 %v596, 16
      %v2929 = vrot.slane %v2927, 4
      %v2930 = vor.u32 %v2929, %v2925
      %v2931 = vrot.slane %v2930, 4
      %v2933 = vshll.u32 %v597, 16
      %v2935 = vrot.slane %v2933, 5
      %v2936 = vsel %vm1222, %v2931, %v2935
      %s2937 = scalar_lea.vmem [#allocation2], 10
      %v2938 = vld [vmem:[%s2937] sm:$0x3]
      %v2939 = vunpack.c.l.b16 %v2566
      %v2940 = vunpack.c.l.b16 %v2576
      %v2941 = vunpack.c.l.b16 %v2590
      %v2942 = vunpack.c.l.b16 %v2600
      %v2943 = vunpack.c.l.b16 %v2614
      %v2944 = vunpack.c.l.b16 %v2624
      %v2945 = vunpack.c.l.b16 %v2638
      %v2946 = vunpack.c.l.b16 %v2648
      %v2947 = vunpack.c.l.b16 %v2662
      %v2948 = vunpack.c.l.b16 %v2672
      %v2949 = vunpack.c.l.b16 %v2686
      %v2950 = vunpack.c.l.b16 %v2696
      %v2951 = vunpack.c.l.b16 %v2710
      %v2952 = vunpack.c.l.b16 %v2720
      %v2953 = vunpack.c.l.b16 %v2734
      %v2954 = vunpack.c.l.b16 %v2744
      %v2955 = vunpack.c.l.b16 %v2758
      %v2956 = vunpack.c.l.b16 %v2768
      %v2957 = vunpack.c.l.b16 %v2782
      %v2958 = vunpack.c.l.b16 %v2792
      %v2959 = vunpack.c.l.b16 %v2806
      %v2960 = vunpack.c.l.b16 %v2816
      %v2961 = vunpack.c.l.b16 %v2830
      %v2962 = vunpack.c.l.b16 %v2840
      %v2963 = vunpack.c.l.b16 %v2854
      %v2964 = vunpack.c.l.b16 %v2864
      %v2965 = vunpack.c.l.b16 %v2878
      %v2966 = vunpack.c.l.b16 %v2888
      %v2967 = vunpack.c.l.b16 %v2902
      %v2968 = vunpack.c.l.b16 %v2912
      %v2969 = vunpack.c.l.b16 %v2926
      %v2970 = vunpack.c.l.b16 %v2936
      %v2971 = vpack.c.b16 %v2940, %v2939
      %v2972 = vpack.c.b16 %v2942, %v2941
      %v2973 = vpack.c.b16 %v2944, %v2943
      %v2974 = vpack.c.b16 %v2946, %v2945
      %v2975 = vpack.c.b16 %v2948, %v2947
      %v2976 = vpack.c.b16 %v2950, %v2949
      %v2977 = vpack.c.b16 %v2952, %v2951
      %v2978 = vpack.c.b16 %v2954, %v2953
      %v2979 = vpack.c.b16 %v2956, %v2955
      %v2980 = vpack.c.b16 %v2958, %v2957
      %v2981 = vpack.c.b16 %v2960, %v2959
      %v2982 = vpack.c.b16 %v2962, %v2961
      %v2983 = vpack.c.b16 %v2964, %v2963
      %v2984 = vpack.c.b16 %v2966, %v2965
      %v2985 = vpack.c.b16 %v2968, %v2967
      %v2986 = vpack.c.b16 %v2970, %v2969
      %v2988 = vsel %vm714, %v2971, 0
      %v2991 = vsel %vm714, %v2972, 0
      %v2994 = vsel %vm714, %v2973, 0
      %v2997 = vsel %vm714, %v2974, 0
      %v3000 = vsel %vm714, %v2975, 0
      %v3003 = vsel %vm714, %v2976, 0
      %v3006 = vsel %vm714, %v2977, 0
      %v3009 = vsel %vm714, %v2978, 0
      %v3012 = vsel %vm714, %v2979, 0
      %v3015 = vsel %vm714, %v2980, 0
      %v3018 = vsel %vm714, %v2981, 0
      %v3021 = vsel %vm714, %v2982, 0
      %v3024 = vsel %vm714, %v2983, 0
      %v3027 = vsel %vm714, %v2984, 0
      %v3030 = vsel %vm714, %v2985, 0
      %v3033 = vsel %vm714, %v2986, 0
      %v3036 = vsel %vm763, %v2938, 0
      %3038 = vmatprep.subr.bf16.mxu0 0
      %3039 = vmatpush1.bf16.msra.mxu0 0
      %3040 = vmatprep.subr.bf16.mxu0 0
      %3041 = vmatpush1.bf16.msra.mxu0 0
      %3042 = vmatprep.subr.bf16.mxu0 0
      %3043 = vmatpush1.bf16.msra.mxu0 0
      %3044 = vmatprep.subr.bf16.mxu0 0
      %3045 = vmatpush1.bf16.msra.mxu0 0
      %3046 = vmatprep.subr.bf16.mxu0 0
      %3047 = vmatpush1.bf16.msra.mxu0 0
      %3048 = vmatprep.subr.bf16.mxu0 0
      %3049 = vmatpush1.bf16.msra.mxu0 0
      %3050 = vmatprep.subr.bf16.mxu0 0
      %3051 = vmatpush1.bf16.msra.mxu0 0
      %3052 = vmatprep.subr.bf16.mxu0 0
      %3053 = vmatpush1.bf16.msra.mxu0 %v3036
      %3054 = vmatprep.subr.bf16.mxu0 0
      %3055 = vmatpush2.bf16.msra.mxu0 0
      %3056 = vmatprep.subr.bf16.mxu0 0
      %3057 = vmatpush2.bf16.msra.mxu0 0
      %3058 = vmatprep.subr.bf16.mxu0 0
      %3059 = vmatpush2.bf16.msra.mxu0 0
      %3060 = vmatprep.subr.bf16.mxu0 0
      %3061 = vmatpush2.bf16.msra.mxu0 0
      %3062 = vmatprep.subr.bf16.mxu0 0
      %3063 = vmatpush2.bf16.msra.mxu0 0
      %3064 = vmatprep.subr.bf16.mxu0 0
      %3065 = vmatpush2.bf16.msra.mxu0 0
      %3066 = vmatprep.subr.bf16.mxu0 0
      %3067 = vmatpush2.bf16.msra.mxu0 0
      %3068 = vmatprep.subr.bf16.mxu0 0
      %3069 = vmatpush2.bf16.msra.mxu0 0
      %3070 = vmatprep.mubr.bf16.mxu0 0
      %3071 = vmatmul.mubr.bf16.gmra.mxu0 %v2988
      %v3072 = vpop.f32.mrf.mxu0
      %v3073 = vadd.f32 0.0, %v3072
      %v3074 = vpop.f32.mrf.mxu0
      %v3075 = vpop.f32.mrf.mxu0
      %v3076 = vadd.f32 0.0, %v3075
      %v3077 = vpop.f32.mrf.mxu0
      %3078 = vmatprep.mubr.bf16.mxu0 0
      %3079 = vmatmul.mubr.bf16.gmra.mxu0 %v2991
      %v3080 = vpop.f32.mrf.mxu0
      %v3081 = vadd.f32 0.0, %v3080
      %v3082 = vpop.f32.mrf.mxu0
      %v3083 = vpop.f32.mrf.mxu0
      %v3084 = vadd.f32 0.0, %v3083
      %v3085 = vpop.f32.mrf.mxu0
      %3086 = vmatprep.mubr.bf16.mxu0 0
      %3087 = vmatmul.mubr.bf16.gmra.mxu0 %v2994
      %v3088 = vpop.f32.mrf.mxu0
      %v3089 = vadd.f32 0.0, %v3088
      %v3090 = vpop.f32.mrf.mxu0
      %v3091 = vpop.f32.mrf.mxu0
      %v3092 = vadd.f32 0.0, %v3091
      %v3093 = vpop.f32.mrf.mxu0
      %3094 = vmatprep.mubr.bf16.mxu0 0
      %3095 = vmatmul.mubr.bf16.gmra.mxu0 %v2997
      %v3096 = vpop.f32.mrf.mxu0
      %v3097 = vadd.f32 0.0, %v3096
      %v3098 = vpop.f32.mrf.mxu0
      %v3099 = vpop.f32.mrf.mxu0
      %v3100 = vadd.f32 0.0, %v3099
      %v3101 = vpop.f32.mrf.mxu0
      %3102 = vmatprep.mubr.bf16.mxu0 0
      %3103 = vmatmul.mubr.bf16.gmra.mxu0 %v3000
      %v3104 = vpop.f32.mrf.mxu0
      %v3105 = vadd.f32 0.0, %v3104
      %v3106 = vpop.f32.mrf.mxu0
      %v3107 = vpop.f32.mrf.mxu0
      %v3108 = vadd.f32 0.0, %v3107
      %v3109 = vpop.f32.mrf.mxu0
      %3110 = vmatprep.mubr.bf16.mxu0 0
      %3111 = vmatmul.mubr.bf16.gmra.mxu0 %v3003
      %v3112 = vpop.f32.mrf.mxu0
      %v3113 = vadd.f32 0.0, %v3112
      %v3114 = vpop.f32.mrf.mxu0
      %v3115 = vpop.f32.mrf.mxu0
      %v3116 = vadd.f32 0.0, %v3115
      %v3117 = vpop.f32.mrf.mxu0
      %3118 = vmatprep.mubr.bf16.mxu0 0
      %3119 = vmatmul.mubr.bf16.gmra.mxu0 %v3006
      %v3120 = vpop.f32.mrf.mxu0
      %v3121 = vadd.f32 0.0, %v3120
      %v3122 = vpop.f32.mrf.mxu0
      %v3123 = vpop.f32.mrf.mxu0
      %v3124 = vadd.f32 0.0, %v3123
      %v3125 = vpop.f32.mrf.mxu0
      %3126 = vmatprep.mubr.bf16.mxu0 0
      %3127 = vmatmul.mubr.bf16.gmra.mxu0 %v3009
      %v3128 = vpop.f32.mrf.mxu0
      %v3129 = vadd.f32 0.0, %v3128
      %v3130 = vpop.f32.mrf.mxu0
      %v3131 = vpop.f32.mrf.mxu0
      %v3132 = vadd.f32 0.0, %v3131
      %v3133 = vpop.f32.mrf.mxu0
      %3134 = vmatprep.mubr.bf16.mxu0 0
      %3135 = vmatmul.mubr.bf16.gmra.mxu0 %v3012
      %v3136 = vpop.f32.mrf.mxu0
      %v3137 = vadd.f32 0.0, %v3136
      %v3138 = vpop.f32.mrf.mxu0
      %v3139 = vpop.f32.mrf.mxu0
      %v3140 = vadd.f32 0.0, %v3139
      %v3141 = vpop.f32.mrf.mxu0
      %3142 = vmatprep.mubr.bf16.mxu0 0
      %3143 = vmatmul.mubr.bf16.gmra.mxu0 %v3015
      %v3144 = vpop.f32.mrf.mxu0
      %v3145 = vadd.f32 0.0, %v3144
      %v3146 = vpop.f32.mrf.mxu0
      %v3147 = vpop.f32.mrf.mxu0
      %v3148 = vadd.f32 0.0, %v3147
      %v3149 = vpop.f32.mrf.mxu0
      %3150 = vmatprep.mubr.bf16.mxu0 0
      %3151 = vmatmul.mubr.bf16.gmra.mxu0 %v3018
      %v3152 = vpop.f32.mrf.mxu0
      %v3153 = vadd.f32 0.0, %v3152
      %v3154 = vpop.f32.mrf.mxu0
      %v3155 = vpop.f32.mrf.mxu0
      %v3156 = vadd.f32 0.0, %v3155
      %v3157 = vpop.f32.mrf.mxu0
      %3158 = vmatprep.mubr.bf16.mxu0 0
      %3159 = vmatmul.mubr.bf16.gmra.mxu0 %v3021
      %v3160 = vpop.f32.mrf.mxu0
      %v3161 = vadd.f32 0.0, %v3160
      %v3162 = vpop.f32.mrf.mxu0
      %v3163 = vpop.f32.mrf.mxu0
      %v3164 = vadd.f32 0.0, %v3163
      %v3165 = vpop.f32.mrf.mxu0
      %3166 = vmatprep.mubr.bf16.mxu0 0
      %3167 = vmatmul.mubr.bf16.gmra.mxu0 %v3024
      %v3168 = vpop.f32.mrf.mxu0
      %v3169 = vadd.f32 0.0, %v3168
      %v3170 = vpop.f32.mrf.mxu0
      %v3171 = vpop.f32.mrf.mxu0
      %v3172 = vadd.f32 0.0, %v3171
      %v3173 = vpop.f32.mrf.mxu0
      %3174 = vmatprep.mubr.bf16.mxu0 0
      %3175 = vmatmul.mubr.bf16.gmra.mxu0 %v3027
      %v3176 = vpop.f32.mrf.mxu0
      %v3177 = vadd.f32 0.0, %v3176
      %v3178 = vpop.f32.mrf.mxu0
      %v3179 = vpop.f32.mrf.mxu0
      %v3180 = vadd.f32 0.0, %v3179
      %v3181 = vpop.f32.mrf.mxu0
      %3182 = vmatprep.mubr.bf16.mxu0 0
      %3183 = vmatmul.mubr.bf16.gmra.mxu0 %v3030
      %v3184 = vpop.f32.mrf.mxu0
      %v3185 = vadd.f32 0.0, %v3184
      %v3186 = vpop.f32.mrf.mxu0
      %v3187 = vpop.f32.mrf.mxu0
      %v3188 = vadd.f32 0.0, %v3187
      %v3189 = vpop.f32.mrf.mxu0
      %3190 = vmatprep.mubr.bf16.mxu0 0
      %3191 = vmatmul.mubr.bf16.gmra.mxu0 %v3033
      %v3192 = vpop.f32.mrf.mxu0
      %v3193 = vadd.f32 0.0, %v3192
      %v3194 = vpop.f32.mrf.mxu0
      %v3195 = vpop.f32.mrf.mxu0
      %v3196 = vadd.f32 0.0, %v3195
      %v3197 = vpop.f32.mrf.mxu0
      %3198 = vdwg.mxu0
      %v3199 = vadd.f32 %v2521, %v3073
      %v3200 = vadd.f32 %v2522, %v3076
      %v3201 = vadd.f32 %v2523, %v3081
      %v3202 = vadd.f32 %v2524, %v3084
      %v3203 = vadd.f32 %v2525, %v3089
      %v3204 = vadd.f32 %v2526, %v3092
      %v3205 = vadd.f32 %v2527, %v3097
      %v3206 = vadd.f32 %v2528, %v3100
      %v3207 = vadd.f32 %v2529, %v3105
      %v3208 = vadd.f32 %v2530, %v3108
      %v3209 = vadd.f32 %v2531, %v3113
      %v3210 = vadd.f32 %v2532, %v3116
      %v3211 = vadd.f32 %v2533, %v3121
      %v3212 = vadd.f32 %v2534, %v3124
      %v3213 = vadd.f32 %v2535, %v3129
      %v3214 = vadd.f32 %v2536, %v3132
      %v3215 = vadd.f32 %v2537, %v3137
      %v3216 = vadd.f32 %v2538, %v3140
      %v3217 = vadd.f32 %v2539, %v3145
      %v3218 = vadd.f32 %v2540, %v3148
      %v3219 = vadd.f32 %v2541, %v3153
      %v3220 = vadd.f32 %v2542, %v3156
      %v3221 = vadd.f32 %v2543, %v3161
      %v3222 = vadd.f32 %v2544, %v3164
      %v3223 = vadd.f32 %v2545, %v3169
      %v3224 = vadd.f32 %v2546, %v3172
      %v3225 = vadd.f32 %v2547, %v3177
      %v3226 = vadd.f32 %v2548, %v3180
      %v3227 = vadd.f32 %v2549, %v3185
      %v3228 = vadd.f32 %v2550, %v3188
      %v3229 = vadd.f32 %v2551, %v3193
      %v3230 = vadd.f32 %v2552, %v3196
      %s3231 = scalar_lea.vmem [#allocation2], 12
      %v3232 = vld [vmem:[%s3231] sm:$0x3]
      %v3235 = vunpack.c.l.b16 %v511
      %v3236 = vunpack.c.l.b16 %v512
      %v3237 = vpack.c.b16 %v3236, %v3235
      %v3239 = vsel %vm714, %v3237, 0
      %v3242 = vsel %vm763, %v3232, 0
      %3244 = vmatprep.subr.bf16.mxu0 0
      %3245 = vmatpush1.bf16.msra.mxu0 0
      %3246 = vmatprep.subr.bf16.mxu0 0
      %3247 = vmatpush1.bf16.msra.mxu0 0
      %3248 = vmatprep.subr.bf16.mxu0 0
      %3249 = vmatpush1.bf16.msra.mxu0 0
      %3250 = vmatprep.subr.bf16.mxu0 0
      %3251 = vmatpush1.bf16.msra.mxu0 0
      %3252 = vmatprep.subr.bf16.mxu0 0
      %3253 = vmatpush1.bf16.msra.mxu0 0
      %3254 = vmatprep.subr.bf16.mxu0 0
      %3255 = vmatpush1.bf16.msra.mxu0 0
      %3256 = vmatprep.subr.bf16.mxu0 0
      %3257 = vmatpush1.bf16.msra.mxu0 0
      %3258 = vmatprep.subr.bf16.mxu0 0
      %3259 = vmatpush1.bf16.msra.mxu0 %v3242
      %3260 = vmatprep.subr.bf16.mxu0 0
      %3261 = vmatpush2.bf16.msra.mxu0 0
      %3262 = vmatprep.subr.bf16.mxu0 0
      %3263 = vmatpush2.bf16.msra.mxu0 0
      %3264 = vmatprep.subr.bf16.mxu0 0
      %3265 = vmatpush2.bf16.msra.mxu0 0
      %3266 = vmatprep.subr.bf16.mxu0 0
      %3267 = vmatpush2.bf16.msra.mxu0 0
      %3268 = vmatprep.subr.bf16.mxu0 0
      %3269 = vmatpush2.bf16.msra.mxu0 0
      %3270 = vmatprep.subr.bf16.mxu0 0
      %3271 = vmatpush2.bf16.msra.mxu0 0
      %3272 = vmatprep.subr.bf16.mxu0 0
      %3273 = vmatpush2.bf16.msra.mxu0 0
      %3274 = vmatprep.subr.bf16.mxu0 0
      %3275 = vmatpush2.bf16.msra.mxu0 0
      %3276 = vmatprep.mubr.bf16.mxu0 0
      %3277 = vmatmul.mubr.bf16.gmra.mxu0 %v1012
      %v3278 = vpop.f32.mrf.mxu0
      %v3279 = vadd.f32 0.0, %v3278
      %v3280 = vpop.f32.mrf.mxu0
      %v3281 = vpop.f32.mrf.mxu0
      %v3282 = vadd.f32 0.0, %v3281
      %v3283 = vpop.f32.mrf.mxu0
      %3284 = vmatprep.mubr.bf16.mxu0 0
      %3285 = vmatmul.mubr.bf16.gmra.mxu0 %v1015
      %v3286 = vpop.f32.mrf.mxu0
      %v3287 = vadd.f32 0.0, %v3286
      %v3288 = vpop.f32.mrf.mxu0
      %v3289 = vpop.f32.mrf.mxu0
      %v3290 = vadd.f32 0.0, %v3289
      %v3291 = vpop.f32.mrf.mxu0
      %3292 = vmatprep.mubr.bf16.mxu0 0
      %3293 = vmatmul.mubr.bf16.gmra.mxu0 %v1018
      %v3294 = vpop.f32.mrf.mxu0
      %v3295 = vadd.f32 0.0, %v3294
      %v3296 = vpop.f32.mrf.mxu0
      %v3297 = vpop.f32.mrf.mxu0
      %v3298 = vadd.f32 0.0, %v3297
      %v3299 = vpop.f32.mrf.mxu0
      %3300 = vmatprep.mubr.bf16.mxu0 0
      %3301 = vmatmul.mubr.bf16.gmra.mxu0 %v1021
      %v3302 = vpop.f32.mrf.mxu0
      %v3303 = vadd.f32 0.0, %v3302
      %v3304 = vpop.f32.mrf.mxu0
      %v3305 = vpop.f32.mrf.mxu0
      %v3306 = vadd.f32 0.0, %v3305
      %v3307 = vpop.f32.mrf.mxu0
      %3308 = vmatprep.mubr.bf16.mxu0 0
      %3309 = vmatmul.mubr.bf16.gmra.mxu0 %v1024
      %v3310 = vpop.f32.mrf.mxu0
      %v3311 = vadd.f32 0.0, %v3310
      %v3312 = vpop.f32.mrf.mxu0
      %v3313 = vpop.f32.mrf.mxu0
      %v3314 = vadd.f32 0.0, %v3313
      %v3315 = vpop.f32.mrf.mxu0
      %3316 = vmatprep.mubr.bf16.mxu0 0
      %3317 = vmatmul.mubr.bf16.gmra.mxu0 %v1027
      %v3318 = vpop.f32.mrf.mxu0
      %v3319 = vadd.f32 0.0, %v3318
      %v3320 = vpop.f32.mrf.mxu0
      %v3321 = vpop.f32.mrf.mxu0
      %v3322 = vadd.f32 0.0, %v3321
      %v3323 = vpop.f32.mrf.mxu0
      %3324 = vmatprep.mubr.bf16.mxu0 0
      %3325 = vmatmul.mubr.bf16.gmra.mxu0 %v1030
      %v3326 = vpop.f32.mrf.mxu0
      %v3327 = vadd.f32 0.0, %v3326
      %v3328 = vpop.f32.mrf.mxu0
      %v3329 = vpop.f32.mrf.mxu0
      %v3330 = vadd.f32 0.0, %v3329
      %v3331 = vpop.f32.mrf.mxu0
      %3332 = vmatprep.mubr.bf16.mxu0 0
      %3333 = vmatmul.mubr.bf16.gmra.mxu0 %v1033
      %v3334 = vpop.f32.mrf.mxu0
      %v3335 = vadd.f32 0.0, %v3334
      %v3336 = vpop.f32.mrf.mxu0
      %v3337 = vpop.f32.mrf.mxu0
      %v3338 = vadd.f32 0.0, %v3337
      %v3339 = vpop.f32.mrf.mxu0
      %3340 = vmatprep.mubr.bf16.mxu0 0
      %3341 = vmatmul.mubr.bf16.gmra.mxu0 %v1036
      %v3342 = vpop.f32.mrf.mxu0
      %v3343 = vadd.f32 0.0, %v3342
      %v3344 = vpop.f32.mrf.mxu0
      %v3345 = vpop.f32.mrf.mxu0
      %v3346 = vadd.f32 0.0, %v3345
      %v3347 = vpop.f32.mrf.mxu0
      %3348 = vmatprep.mubr.bf16.mxu0 0
      %3349 = vmatmul.mubr.bf16.gmra.mxu0 %v1039
      %v3350 = vpop.f32.mrf.mxu0
      %v3351 = vadd.f32 0.0, %v3350
      %v3352 = vpop.f32.mrf.mxu0
      %v3353 = vpop.f32.mrf.mxu0
      %v3354 = vadd.f32 0.0, %v3353
      %v3355 = vpop.f32.mrf.mxu0
      %3356 = vmatprep.mubr.bf16.mxu0 0
      %3357 = vmatmul.mubr.bf16.gmra.mxu0 %v1042
      %v3358 = vpop.f32.mrf.mxu0
      %v3359 = vadd.f32 0.0, %v3358
      %v3360 = vpop.f32.mrf.mxu0
      %v3361 = vpop.f32.mrf.mxu0
      %v3362 = vadd.f32 0.0, %v3361
      %v3363 = vpop.f32.mrf.mxu0
      %3364 = vmatprep.mubr.bf16.mxu0 0
      %3365 = vmatmul.mubr.bf16.gmra.mxu0 %v1045
      %v3366 = vpop.f32.mrf.mxu0
      %v3367 = vadd.f32 0.0, %v3366
      %v3368 = vpop.f32.mrf.mxu0
      %v3369 = vpop.f32.mrf.mxu0
      %v3370 = vadd.f32 0.0, %v3369
      %v3371 = vpop.f32.mrf.mxu0
      %3372 = vmatprep.mubr.bf16.mxu0 0
      %3373 = vmatmul.mubr.bf16.gmra.mxu0 %v1048
      %v3374 = vpop.f32.mrf.mxu0
      %v3375 = vadd.f32 0.0, %v3374
      %v3376 = vpop.f32.mrf.mxu0
      %v3377 = vpop.f32.mrf.mxu0
      %v3378 = vadd.f32 0.0, %v3377
      %v3379 = vpop.f32.mrf.mxu0
      %3380 = vmatprep.mubr.bf16.mxu0 0
      %3381 = vmatmul.mubr.bf16.gmra.mxu0 %v1051
      %v3382 = vpop.f32.mrf.mxu0
      %v3383 = vadd.f32 0.0, %v3382
      %v3384 = vpop.f32.mrf.mxu0
      %v3385 = vpop.f32.mrf.mxu0
      %v3386 = vadd.f32 0.0, %v3385
      %v3387 = vpop.f32.mrf.mxu0
      %3388 = vmatprep.mubr.bf16.mxu0 0
      %3389 = vmatmul.mubr.bf16.gmra.mxu0 %v1054
      %v3390 = vpop.f32.mrf.mxu0
      %v3391 = vadd.f32 0.0, %v3390
      %v3392 = vpop.f32.mrf.mxu0
      %v3393 = vpop.f32.mrf.mxu0
      %v3394 = vadd.f32 0.0, %v3393
      %v3395 = vpop.f32.mrf.mxu0
      %3396 = vmatprep.mubr.bf16.mxu0 0
      %3397 = vmatmul.mubr.bf16.gmra.mxu0 %v3239
      %v3398 = vpop.f32.mrf.mxu0
      %v3399 = vadd.f32 0.0, %v3398
      %v3400 = vpop.f32.mrf.mxu0
      %v3401 = vpop.f32.mrf.mxu0
      %v3402 = vadd.f32 0.0, %v3401
      %v3403 = vpop.f32.mrf.mxu0
      %3404 = vdwg.mxu0
      %v3405 = vadd.f32 %v3199, %v3279
      %v3406 = vadd.f32 %v3200, %v3282
      %v3407 = vadd.f32 %v3201, %v3287
      %v3408 = vadd.f32 %v3202, %v3290
      %v3409 = vadd.f32 %v3203, %v3295
      %v3410 = vadd.f32 %v3204, %v3298
      %v3411 = vadd.f32 %v3205, %v3303
      %v3412 = vadd.f32 %v3206, %v3306
      %v3413 = vadd.f32 %v3207, %v3311
      %v3414 = vadd.f32 %v3208, %v3314
      %v3415 = vadd.f32 %v3209, %v3319
      %v3416 = vadd.f32 %v3210, %v3322
      %v3417 = vadd.f32 %v3211, %v3327
      %v3418 = vadd.f32 %v3212, %v3330
      %v3419 = vadd.f32 %v3213, %v3335
      %v3420 = vadd.f32 %v3214, %v3338
      %v3421 = vadd.f32 %v3215, %v3343
      %v3422 = vadd.f32 %v3216, %v3346
      %v3423 = vadd.f32 %v3217, %v3351
      %v3424 = vadd.f32 %v3218, %v3354
      %v3425 = vadd.f32 %v3219, %v3359
      %v3426 = vadd.f32 %v3220, %v3362
      %v3427 = vadd.f32 %v3221, %v3367
      %v3428 = vadd.f32 %v3222, %v3370
      %v3429 = vadd.f32 %v3223, %v3375
      %v3430 = vadd.f32 %v3224, %v3378
      %v3431 = vadd.f32 %v3225, %v3383
      %v3432 = vadd.f32 %v3226, %v3386
      %v3433 = vadd.f32 %v3227, %v3391
      %v3434 = vadd.f32 %v3228, %v3394
      %v3435 = vadd.f32 %v3229, %v3399
      %v3436 = vadd.f32 %v3230, %v3402
      %s3437 = scalar_lea.vmem [#allocation2], 14
      %v3438 = vld [vmem:[%s3437] sm:$0x3]
      %v3441 = vunpack.c.l.b16 %v547
      %v3442 = vunpack.c.l.b16 %v548
      %v3443 = vpack.c.b16 %v3442, %v3441
      %v3445 = vsel %vm714, %v3443, 0
      %v3448 = vsel %vm763, %v3438, 0
      %3450 = vmatprep.subr.bf16.mxu0 0
      %3451 = vmatpush1.bf16.msra.mxu0 0
      %3452 = vmatprep.subr.bf16.mxu0 0
      %3453 = vmatpush1.bf16.msra.mxu0 0
      %3454 = vmatprep.subr.bf16.mxu0 0
      %3455 = vmatpush1.bf16.msra.mxu0 0
      %3456 = vmatprep.subr.bf16.mxu0 0
      %3457 = vmatpush1.bf16.msra.mxu0 0
      %3458 = vmatprep.subr.bf16.mxu0 0
      %3459 = vmatpush1.bf16.msra.mxu0 0
      %3460 = vmatprep.subr.bf16.mxu0 0
      %3461 = vmatpush1.bf16.msra.mxu0 0
      %3462 = vmatprep.subr.bf16.mxu0 0
      %3463 = vmatpush1.bf16.msra.mxu0 0
      %3464 = vmatprep.subr.bf16.mxu0 0
      %3465 = vmatpush1.bf16.msra.mxu0 %v3448
      %3466 = vmatprep.subr.bf16.mxu0 0
      %3467 = vmatpush2.bf16.msra.mxu0 0
      %3468 = vmatprep.subr.bf16.mxu0 0
      %3469 = vmatpush2.bf16.msra.mxu0 0
      %3470 = vmatprep.subr.bf16.mxu0 0
      %3471 = vmatpush2.bf16.msra.mxu0 0
      %3472 = vmatprep.subr.bf16.mxu0 0
      %3473 = vmatpush2.bf16.msra.mxu0 0
      %3474 = vmatprep.subr.bf16.mxu0 0
      %3475 = vmatpush2.bf16.msra.mxu0 0
      %3476 = vmatprep.subr.bf16.mxu0 0
      %3477 = vmatpush2.bf16.msra.mxu0 0
      %3478 = vmatprep.subr.bf16.mxu0 0
      %3479 = vmatpush2.bf16.msra.mxu0 0
      %3480 = vmatprep.subr.bf16.mxu0 0
      %3481 = vmatpush2.bf16.msra.mxu0 0
      %3482 = vmatprep.mubr.bf16.mxu0 0
      %3483 = vmatmul.mubr.bf16.gmra.mxu0 %v719
      %v3484 = vpop.f32.mrf.mxu0
      %v3485 = vadd.f32 0.0, %v3484
      %v3486 = vpop.f32.mrf.mxu0
      %v3487 = vpop.f32.mrf.mxu0
      %v3488 = vadd.f32 0.0, %v3487
      %v3489 = vpop.f32.mrf.mxu0
      %3490 = vmatprep.mubr.bf16.mxu0 0
      %3491 = vmatmul.mubr.bf16.gmra.mxu0 %v722
      %v3492 = vpop.f32.mrf.mxu0
      %v3493 = vadd.f32 0.0, %v3492
      %v3494 = vpop.f32.mrf.mxu0
      %v3495 = vpop.f32.mrf.mxu0
      %v3496 = vadd.f32 0.0, %v3495
      %v3497 = vpop.f32.mrf.mxu0
      %3498 = vmatprep.mubr.bf16.mxu0 0
      %3499 = vmatmul.mubr.bf16.gmra.mxu0 %v725
      %v3500 = vpop.f32.mrf.mxu0
      %v3501 = vadd.f32 0.0, %v3500
      %v3502 = vpop.f32.mrf.mxu0
      %v3503 = vpop.f32.mrf.mxu0
      %v3504 = vadd.f32 0.0, %v3503
      %v3505 = vpop.f32.mrf.mxu0
      %3506 = vmatprep.mubr.bf16.mxu0 0
      %3507 = vmatmul.mubr.bf16.gmra.mxu0 %v728
      %v3508 = vpop.f32.mrf.mxu0
      %v3509 = vadd.f32 0.0, %v3508
      %v3510 = vpop.f32.mrf.mxu0
      %v3511 = vpop.f32.mrf.mxu0
      %v3512 = vadd.f32 0.0, %v3511
      %v3513 = vpop.f32.mrf.mxu0
      %3514 = vmatprep.mubr.bf16.mxu0 0
      %3515 = vmatmul.mubr.bf16.gmra.mxu0 %v731
      %v3516 = vpop.f32.mrf.mxu0
      %v3517 = vadd.f32 0.0, %v3516
      %v3518 = vpop.f32.mrf.mxu0
      %v3519 = vpop.f32.mrf.mxu0
      %v3520 = vadd.f32 0.0, %v3519
      %v3521 = vpop.f32.mrf.mxu0
      %3522 = vmatprep.mubr.bf16.mxu0 0
      %3523 = vmatmul.mubr.bf16.gmra.mxu0 %v734
      %v3524 = vpop.f32.mrf.mxu0
      %v3525 = vadd.f32 0.0, %v3524
      %v3526 = vpop.f32.mrf.mxu0
      %v3527 = vpop.f32.mrf.mxu0
      %v3528 = vadd.f32 0.0, %v3527
      %v3529 = vpop.f32.mrf.mxu0
      %3530 = vmatprep.mubr.bf16.mxu0 0
      %3531 = vmatmul.mubr.bf16.gmra.mxu0 %v737
      %v3532 = vpop.f32.mrf.mxu0
      %v3533 = vadd.f32 0.0, %v3532
      %v3534 = vpop.f32.mrf.mxu0
      %v3535 = vpop.f32.mrf.mxu0
      %v3536 = vadd.f32 0.0, %v3535
      %v3537 = vpop.f32.mrf.mxu0
      %3538 = vmatprep.mubr.bf16.mxu0 0
      %3539 = vmatmul.mubr.bf16.gmra.mxu0 %v740
      %v3540 = vpop.f32.mrf.mxu0
      %v3541 = vadd.f32 0.0, %v3540
      %v3542 = vpop.f32.mrf.mxu0
      %v3543 = vpop.f32.mrf.mxu0
      %v3544 = vadd.f32 0.0, %v3543
      %v3545 = vpop.f32.mrf.mxu0
      %3546 = vmatprep.mubr.bf16.mxu0 0
      %3547 = vmatmul.mubr.bf16.gmra.mxu0 %v743
      %v3548 = vpop.f32.mrf.mxu0
      %v3549 = vadd.f32 0.0, %v3548
      %v3550 = vpop.f32.mrf.mxu0
      %v3551 = vpop.f32.mrf.mxu0
      %v3552 = vadd.f32 0.0, %v3551
      %v3553 = vpop.f32.mrf.mxu0
      %3554 = vmatprep.mubr.bf16.mxu0 0
      %3555 = vmatmul.mubr.bf16.gmra.mxu0 %v746
      %v3556 = vpop.f32.mrf.mxu0
      %v3557 = vadd.f32 0.0, %v3556
      %v3558 = vpop.f32.mrf.mxu0
      %v3559 = vpop.f32.mrf.mxu0
      %v3560 = vadd.f32 0.0, %v3559
      %v3561 = vpop.f32.mrf.mxu0
      %3562 = vmatprep.mubr.bf16.mxu0 0
      %3563 = vmatmul.mubr.bf16.gmra.mxu0 %v749
      %v3564 = vpop.f32.mrf.mxu0
      %v3565 = vadd.f32 0.0, %v3564
      %v3566 = vpop.f32.mrf.mxu0
      %v3567 = vpop.f32.mrf.mxu0
      %v3568 = vadd.f32 0.0, %v3567
      %v3569 = vpop.f32.mrf.mxu0
      %3570 = vmatprep.mubr.bf16.mxu0 0
      %3571 = vmatmul.mubr.bf16.gmra.mxu0 %v752
      %v3572 = vpop.f32.mrf.mxu0
      %v3573 = vadd.f32 0.0, %v3572
      %v3574 = vpop.f32.mrf.mxu0
      %v3575 = vpop.f32.mrf.mxu0
      %v3576 = vadd.f32 0.0, %v3575
      %v3577 = vpop.f32.mrf.mxu0
      %3578 = vmatprep.mubr.bf16.mxu0 0
      %3579 = vmatmul.mubr.bf16.gmra.mxu0 %v755
      %v3580 = vpop.f32.mrf.mxu0
      %v3581 = vadd.f32 0.0, %v3580
      %v3582 = vpop.f32.mrf.mxu0
      %v3583 = vpop.f32.mrf.mxu0
      %v3584 = vadd.f32 0.0, %v3583
      %v3585 = vpop.f32.mrf.mxu0
      %3586 = vmatprep.mubr.bf16.mxu0 0
      %3587 = vmatmul.mubr.bf16.gmra.mxu0 %v758
      %v3588 = vpop.f32.mrf.mxu0
      %v3589 = vadd.f32 0.0, %v3588
      %v3590 = vpop.f32.mrf.mxu0
      %v3591 = vpop.f32.mrf.mxu0
      %v3592 = vadd.f32 0.0, %v3591
      %v3593 = vpop.f32.mrf.mxu0
      %3594 = vmatprep.mubr.bf16.mxu0 0
      %3595 = vmatmul.mubr.bf16.gmra.mxu0 %v761
      %v3596 = vpop.f32.mrf.mxu0
      %v3597 = vadd.f32 0.0, %v3596
      %v3598 = vpop.f32.mrf.mxu0
      %v3599 = vpop.f32.mrf.mxu0
      %v3600 = vadd.f32 0.0, %v3599
      %v3601 = vpop.f32.mrf.mxu0
      %3602 = vmatprep.mubr.bf16.mxu0 0
      %3603 = vmatmul.mubr.bf16.gmra.mxu0 %v3445
      %v3604 = vpop.f32.mrf.mxu0
      %v3605 = vadd.f32 0.0, %v3604
      %v3606 = vpop.f32.mrf.mxu0
      %v3607 = vpop.f32.mrf.mxu0
      %v3608 = vadd.f32 0.0, %v3607
      %v3609 = vpop.f32.mrf.mxu0
      %3610 = vdwg.mxu0
      %v3611 = vadd.f32 %v3405, %v3485
      %v3612 = vadd.f32 %v3406, %v3488
      %v3613 = vadd.f32 %v3407, %v3493
      %v3614 = vadd.f32 %v3408, %v3496
      %v3615 = vadd.f32 %v3409, %v3501
      %v3616 = vadd.f32 %v3410, %v3504
      %v3617 = vadd.f32 %v3411, %v3509
      %v3618 = vadd.f32 %v3412, %v3512
      %v3619 = vadd.f32 %v3413, %v3517
      %v3620 = vadd.f32 %v3414, %v3520
      %v3621 = vadd.f32 %v3415, %v3525
      %v3622 = vadd.f32 %v3416, %v3528
      %v3623 = vadd.f32 %v3417, %v3533
      %v3624 = vadd.f32 %v3418, %v3536
      %v3625 = vadd.f32 %v3419, %v3541
      %v3626 = vadd.f32 %v3420, %v3544
      %v3627 = vadd.f32 %v3421, %v3549
      %v3628 = vadd.f32 %v3422, %v3552
      %v3629 = vadd.f32 %v3423, %v3557
      %v3630 = vadd.f32 %v3424, %v3560
      %v3631 = vadd.f32 %v3425, %v3565
      %v3632 = vadd.f32 %v3426, %v3568
      %v3633 = vadd.f32 %v3427, %v3573
      %v3634 = vadd.f32 %v3428, %v3576
      %v3635 = vadd.f32 %v3429, %v3581
      %v3636 = vadd.f32 %v3430, %v3584
      %v3637 = vadd.f32 %v3431, %v3589
      %v3638 = vadd.f32 %v3432, %v3592
      %v3639 = vadd.f32 %v3433, %v3597
      %v3640 = vadd.f32 %v3434, %v3600
      %v3641 = vadd.f32 %v3435, %v3605
      %v3642 = vadd.f32 %v3436, %v3608
      %v3644 = vshrl.u32 %v511, 16
      %v3646 = vrot.slane %v3644, 4
      %v3647 = vshll.u32 %v511, 16
      %v3649 = vrot.slane %v3647, 5
      %v3650 = vor.u32 %v3646, %v3649
      %v3651 = vrot.slane %v3650, 4
      %v3653 = vshll.u32 %v512, 16
      %v3655 = vrot.slane %v3653, 5
      %v3656 = vsel %vm1222, %v3651, %v3655
      %v3657 = vshrl.u32 %v512, 16
      %v3659 = vrot.slane %v3657, 4
      %v3660 = vor.u32 %v3659, %v3655
      %v3661 = vrot.slane %v3660, 4
      %v3663 = vshll.u32 %v513, 16
      %v3665 = vrot.slane %v3663, 5
      %v3666 = vsel %vm1222, %v3661, %v3665
      %s3667 = scalar_lea.vmem [#allocation2], 16
      %v3668 = vld [vmem:[%s3667] sm:$0x3]
      %v3669 = vunpack.c.l.b16 %v3656
      %v3670 = vunpack.c.l.b16 %v3666
      %v3671 = vpack.c.b16 %v3670, %v3669
      %v3673 = vsel %vm714, %v3671, 0
      %v3676 = vsel %vm763, %v3668, 0
      %3678 = vmatprep.subr.bf16.mxu0 0
      %3679 = vmatpush1.bf16.msra.mxu0 0
      %3680 = vmatprep.subr.bf16.mxu0 0
      %3681 = vmatpush1.bf16.msra.mxu0 0
      %3682 = vmatprep.subr.bf16.mxu0 0
      %3683 = vmatpush1.bf16.msra.mxu0 0
      %3684 = vmatprep.subr.bf16.mxu0 0
      %3685 = vmatpush1.bf16.msra.mxu0 0
      %3686 = vmatprep.subr.bf16.mxu0 0
      %3687 = vmatpush1.bf16.msra.mxu0 0
      %3688 = vmatprep.subr.bf16.mxu0 0
      %3689 = vmatpush1.bf16.msra.mxu0 0
      %3690 = vmatprep.subr.bf16.mxu0 0
      %3691 = vmatpush1.bf16.msra.mxu0 0
      %3692 = vmatprep.subr.bf16.mxu0 0
      %3693 = vmatpush1.bf16.msra.mxu0 %v3676
      %3694 = vmatprep.subr.bf16.mxu0 0
      %3695 = vmatpush2.bf16.msra.mxu0 0
      %3696 = vmatprep.subr.bf16.mxu0 0
      %3697 = vmatpush2.bf16.msra.mxu0 0
      %3698 = vmatprep.subr.bf16.mxu0 0
      %3699 = vmatpush2.bf16.msra.mxu0 0
      %3700 = vmatprep.subr.bf16.mxu0 0
      %3701 = vmatpush2.bf16.msra.mxu0 0
      %3702 = vmatprep.subr.bf16.mxu0 0
      %3703 = vmatpush2.bf16.msra.mxu0 0
      %3704 = vmatprep.subr.bf16.mxu0 0
      %3705 = vmatpush2.bf16.msra.mxu0 0
      %3706 = vmatprep.subr.bf16.mxu0 0
      %3707 = vmatpush2.bf16.msra.mxu0 0
      %3708 = vmatprep.subr.bf16.mxu0 0
      %3709 = vmatpush2.bf16.msra.mxu0 0
      %3710 = vmatprep.mubr.bf16.mxu0 0
      %3711 = vmatmul.mubr.bf16.gmra.mxu0 %v1661
      %v3712 = vpop.f32.mrf.mxu0
      %v3713 = vadd.f32 0.0, %v3712
      %v3714 = vpop.f32.mrf.mxu0
      %v3715 = vpop.f32.mrf.mxu0
      %v3716 = vadd.f32 0.0, %v3715
      %v3717 = vpop.f32.mrf.mxu0
      %3718 = vmatprep.mubr.bf16.mxu0 0
      %3719 = vmatmul.mubr.bf16.gmra.mxu0 %v1664
      %v3720 = vpop.f32.mrf.mxu0
      %v3721 = vadd.f32 0.0, %v3720
      %v3722 = vpop.f32.mrf.mxu0
      %v3723 = vpop.f32.mrf.mxu0
      %v3724 = vadd.f32 0.0, %v3723
      %v3725 = vpop.f32.mrf.mxu0
      %3726 = vmatprep.mubr.bf16.mxu0 0
      %3727 = vmatmul.mubr.bf16.gmra.mxu0 %v1667
      %v3728 = vpop.f32.mrf.mxu0
      %v3729 = vadd.f32 0.0, %v3728
      %v3730 = vpop.f32.mrf.mxu0
      %v3731 = vpop.f32.mrf.mxu0
      %v3732 = vadd.f32 0.0, %v3731
      %v3733 = vpop.f32.mrf.mxu0
      %3734 = vmatprep.mubr.bf16.mxu0 0
      %3735 = vmatmul.mubr.bf16.gmra.mxu0 %v1670
      %v3736 = vpop.f32.mrf.mxu0
      %v3737 = vadd.f32 0.0, %v3736
      %v3738 = vpop.f32.mrf.mxu0
      %v3739 = vpop.f32.mrf.mxu0
      %v3740 = vadd.f32 0.0, %v3739
      %v3741 = vpop.f32.mrf.mxu0
      %3742 = vmatprep.mubr.bf16.mxu0 0
      %3743 = vmatmul.mubr.bf16.gmra.mxu0 %v1673
      %v3744 = vpop.f32.mrf.mxu0
      %v3745 = vadd.f32 0.0, %v3744
      %v3746 = vpop.f32.mrf.mxu0
      %v3747 = vpop.f32.mrf.mxu0
      %v3748 = vadd.f32 0.0, %v3747
      %v3749 = vpop.f32.mrf.mxu0
      %3750 = vmatprep.mubr.bf16.mxu0 0
      %3751 = vmatmul.mubr.bf16.gmra.mxu0 %v1676
      %v3752 = vpop.f32.mrf.mxu0
      %v3753 = vadd.f32 0.0, %v3752
      %v3754 = vpop.f32.mrf.mxu0
      %v3755 = vpop.f32.mrf.mxu0
      %v3756 = vadd.f32 0.0, %v3755
      %v3757 = vpop.f32.mrf.mxu0
      %3758 = vmatprep.mubr.bf16.mxu0 0
      %3759 = vmatmul.mubr.bf16.gmra.mxu0 %v1679
      %v3760 = vpop.f32.mrf.mxu0
      %v3761 = vadd.f32 0.0, %v3760
      %v3762 = vpop.f32.mrf.mxu0
      %v3763 = vpop.f32.mrf.mxu0
      %v3764 = vadd.f32 0.0, %v3763
      %v3765 = vpop.f32.mrf.mxu0
      %3766 = vmatprep.mubr.bf16.mxu0 0
      %3767 = vmatmul.mubr.bf16.gmra.mxu0 %v1682
      %v3768 = vpop.f32.mrf.mxu0
      %v3769 = vadd.f32 0.0, %v3768
      %v3770 = vpop.f32.mrf.mxu0
      %v3771 = vpop.f32.mrf.mxu0
      %v3772 = vadd.f32 0.0, %v3771
      %v3773 = vpop.f32.mrf.mxu0
      %3774 = vmatprep.mubr.bf16.mxu0 0
      %3775 = vmatmul.mubr.bf16.gmra.mxu0 %v1685
      %v3776 = vpop.f32.mrf.mxu0
      %v3777 = vadd.f32 0.0, %v3776
      %v3778 = vpop.f32.mrf.mxu0
      %v3779 = vpop.f32.mrf.mxu0
      %v3780 = vadd.f32 0.0, %v3779
      %v3781 = vpop.f32.mrf.mxu0
      %3782 = vmatprep.mubr.bf16.mxu0 0
      %3783 = vmatmul.mubr.bf16.gmra.mxu0 %v1688
      %v3784 = vpop.f32.mrf.mxu0
      %v3785 = vadd.f32 0.0, %v3784
      %v3786 = vpop.f32.mrf.mxu0
      %v3787 = vpop.f32.mrf.mxu0
      %v3788 = vadd.f32 0.0, %v3787
      %v3789 = vpop.f32.mrf.mxu0
      %3790 = vmatprep.mubr.bf16.mxu0 0
      %3791 = vmatmul.mubr.bf16.gmra.mxu0 %v1691
      %v3792 = vpop.f32.mrf.mxu0
      %v3793 = vadd.f32 0.0, %v3792
      %v3794 = vpop.f32.mrf.mxu0
      %v3795 = vpop.f32.mrf.mxu0
      %v3796 = vadd.f32 0.0, %v3795
      %v3797 = vpop.f32.mrf.mxu0
      %3798 = vmatprep.mubr.bf16.mxu0 0
      %3799 = vmatmul.mubr.bf16.gmra.mxu0 %v1694
      %v3800 = vpop.f32.mrf.mxu0
      %v3801 = vadd.f32 0.0, %v3800
      %v3802 = vpop.f32.mrf.mxu0
      %v3803 = vpop.f32.mrf.mxu0
      %v3804 = vadd.f32 0.0, %v3803
      %v3805 = vpop.f32.mrf.mxu0
      %3806 = vmatprep.mubr.bf16.mxu0 0
      %3807 = vmatmul.mubr.bf16.gmra.mxu0 %v1697
      %v3808 = vpop.f32.mrf.mxu0
      %v3809 = vadd.f32 0.0, %v3808
      %v3810 = vpop.f32.mrf.mxu0
      %v3811 = vpop.f32.mrf.mxu0
      %v3812 = vadd.f32 0.0, %v3811
      %v3813 = vpop.f32.mrf.mxu0
      %3814 = vmatprep.mubr.bf16.mxu0 0
      %3815 = vmatmul.mubr.bf16.gmra.mxu0 %v1700
      %v3816 = vpop.f32.mrf.mxu0
      %v3817 = vadd.f32 0.0, %v3816
      %v3818 = vpop.f32.mrf.mxu0
      %v3819 = vpop.f32.mrf.mxu0
      %v3820 = vadd.f32 0.0, %v3819
      %v3821 = vpop.f32.mrf.mxu0
      %3822 = vmatprep.mubr.bf16.mxu0 0
      %3823 = vmatmul.mubr.bf16.gmra.mxu0 %v1703
      %v3824 = vpop.f32.mrf.mxu0
      %v3825 = vadd.f32 0.0, %v3824
      %v3826 = vpop.f32.mrf.mxu0
      %v3827 = vpop.f32.mrf.mxu0
      %v3828 = vadd.f32 0.0, %v3827
      %v3829 = vpop.f32.mrf.mxu0
      %3830 = vmatprep.mubr.bf16.mxu0 0
      %3831 = vmatmul.mubr.bf16.gmra.mxu0 %v3673
      %v3832 = vpop.f32.mrf.mxu0
      %v3833 = vadd.f32 0.0, %v3832
      %v3834 = vpop.f32.mrf.mxu0
      %v3835 = vpop.f32.mrf.mxu0
      %v3836 = vadd.f32 0.0, %v3835
      %v3837 = vpop.f32.mrf.mxu0
      %3838 = vdwg.mxu0
      %v3839 = vadd.f32 %v3611, %v3713
      %v3840 = vadd.f32 %v3612, %v3716
      %v3841 = vadd.f32 %v3613, %v3721
      %v3842 = vadd.f32 %v3614, %v3724
      %v3843 = vadd.f32 %v3615, %v3729
      %v3844 = vadd.f32 %v3616, %v3732
      %v3845 = vadd.f32 %v3617, %v3737
      %v3846 = vadd.f32 %v3618, %v3740
      %v3847 = vadd.f32 %v3619, %v3745
      %v3848 = vadd.f32 %v3620, %v3748
      %v3849 = vadd.f32 %v3621, %v3753
      %v3850 = vadd.f32 %v3622, %v3756
      %v3851 = vadd.f32 %v3623, %v3761
      %v3852 = vadd.f32 %v3624, %v3764
      %v3853 = vadd.f32 %v3625, %v3769
      %v3854 = vadd.f32 %v3626, %v3772
      %v3855 = vadd.f32 %v3627, %v3777
      %v3856 = vadd.f32 %v3628, %v3780
      %v3857 = vadd.f32 %v3629, %v3785
      %v3858 = vadd.f32 %v3630, %v3788
      %v3859 = vadd.f32 %v3631, %v3793
      %v3860 = vadd.f32 %v3632, %v3796
      %v3861 = vadd.f32 %v3633, %v3801
      %v3862 = vadd.f32 %v3634, %v3804
      %v3863 = vadd.f32 %v3635, %v3809
      %v3864 = vadd.f32 %v3636, %v3812
      %v3865 = vadd.f32 %v3637, %v3817
      %v3866 = vadd.f32 %v3638, %v3820
      %v3867 = vadd.f32 %v3639, %v3825
      %v3868 = vadd.f32 %v3640, %v3828
      %v3869 = vadd.f32 %v3641, %v3833
      %v3870 = vadd.f32 %v3642, %v3836
      %v3871 = vld [vmem:[#allocation3] sm:$0x1]
      %v3873 = vlaneseq
      %v3874 = vshrl.u32 %v3873, 7
      %v3875 = vsub.s32 0, %v3874
      %v3876 = vrot.slane %v3871, %v3875
      %v3878 = vadd.f32 %v3839, %v3876
      %v3879 = vadd.f32 %v3840, %v3876
      %v3880 = vadd.f32 %v3841, %v3876
      %v3881 = vadd.f32 %v3842, %v3876
      %v3882 = vadd.f32 %v3843, %v3876
      %v3883 = vadd.f32 %v3844, %v3876
      %v3884 = vadd.f32 %v3845, %v3876
      %v3885 = vadd.f32 %v3846, %v3876
      %v3886 = vadd.f32 %v3847, %v3876
      %v3887 = vadd.f32 %v3848, %v3876
      %v3888 = vadd.f32 %v3849, %v3876
      %v3889 = vadd.f32 %v3850, %v3876
      %v3890 = vadd.f32 %v3851, %v3876
      %v3891 = vadd.f32 %v3852, %v3876
      %v3892 = vadd.f32 %v3853, %v3876
      %v3893 = vadd.f32 %v3854, %v3876
      %v3894 = vadd.f32 %v3855, %v3876
      %v3895 = vadd.f32 %v3856, %v3876
      %v3896 = vadd.f32 %v3857, %v3876
      %v3897 = vadd.f32 %v3858, %v3876
      %v3898 = vadd.f32 %v3859, %v3876
      %v3899 = vadd.f32 %v3860, %v3876
      %v3900 = vadd.f32 %v3861, %v3876
      %v3901 = vadd.f32 %v3862, %v3876
      %v3902 = vadd.f32 %v3863, %v3876
      %v3903 = vadd.f32 %v3864, %v3876
      %v3904 = vadd.f32 %v3865, %v3876
      %v3905 = vadd.f32 %v3866, %v3876
      %v3906 = vadd.f32 %v3867, %v3876
      %v3907 = vadd.f32 %v3868, %v3876
      %v3908 = vadd.f32 %v3869, %v3876
      %v3909 = vadd.f32 %v3870, %v3876
      %v3910 = vmax.f32 %v3878, 0.0
      %v3911 = vmax.f32 %v3879, 0.0
      %v3912 = vmax.f32 %v3880, 0.0
      %v3913 = vmax.f32 %v3881, 0.0
      %v3914 = vmax.f32 %v3882, 0.0
      %v3915 = vmax.f32 %v3883, 0.0
      %v3916 = vmax.f32 %v3884, 0.0
      %v3917 = vmax.f32 %v3885, 0.0
      %v3918 = vmax.f32 %v3886, 0.0
      %v3919 = vmax.f32 %v3887, 0.0
      %v3920 = vmax.f32 %v3888, 0.0
      %v3921 = vmax.f32 %v3889, 0.0
      %v3922 = vmax.f32 %v3890, 0.0
      %v3923 = vmax.f32 %v3891, 0.0
      %v3924 = vmax.f32 %v3892, 0.0
      %v3925 = vmax.f32 %v3893, 0.0
      %v3926 = vmax.f32 %v3894, 0.0
      %v3927 = vmax.f32 %v3895, 0.0
      %v3928 = vmax.f32 %v3896, 0.0
      %v3929 = vmax.f32 %v3897, 0.0
      %v3930 = vmax.f32 %v3898, 0.0
      %v3931 = vmax.f32 %v3899, 0.0
      %v3932 = vmax.f32 %v3900, 0.0
      %v3933 = vmax.f32 %v3901, 0.0
      %v3934 = vmax.f32 %v3902, 0.0
      %v3935 = vmax.f32 %v3903, 0.0
      %v3936 = vmax.f32 %v3904, 0.0
      %v3937 = vmax.f32 %v3905, 0.0
      %v3938 = vmax.f32 %v3906, 0.0
      %v3939 = vmax.f32 %v3907, 0.0
      %v3940 = vmax.f32 %v3908, 0.0
      %v3941 = vmax.f32 %v3909, 0.0
      %v3942 = vpack.c.bf16 %v3911, %v3910
      %v3943 = vpack.c.bf16 %v3913, %v3912
      %v3944 = vpack.c.bf16 %v3915, %v3914
      %v3945 = vpack.c.bf16 %v3917, %v3916
      %v3946 = vpack.c.bf16 %v3919, %v3918
      %v3947 = vpack.c.bf16 %v3921, %v3920
      %v3948 = vpack.c.bf16 %v3923, %v3922
      %v3949 = vpack.c.bf16 %v3925, %v3924
      %v3950 = vpack.c.bf16 %v3927, %v3926
      %v3951 = vpack.c.bf16 %v3929, %v3928
      %v3952 = vpack.c.bf16 %v3931, %v3930
      %v3953 = vpack.c.bf16 %v3933, %v3932
      %v3954 = vpack.c.bf16 %v3935, %v3934
      %v3955 = vpack.c.bf16 %v3937, %v3936
      %v3956 = vpack.c.bf16 %v3939, %v3938
      %v3957 = vpack.c.bf16 %v3941, %v3940
      %v3974 = vunpack.c.l.b16 %v3942
      %v3975 = vunpack.c.h.b16 %v3942
      %v3976 = vunpack.c.l.b16 %v3943
      %v3977 = vunpack.c.h.b16 %v3943
      %v3978 = vunpack.c.l.b16 %v3944
      %v3979 = vunpack.c.h.b16 %v3944
      %v3980 = vunpack.c.l.b16 %v3945
      %v3981 = vunpack.c.h.b16 %v3945
      %v3982 = vunpack.c.l.b16 %v3946
      %v3983 = vunpack.c.h.b16 %v3946
      %v3984 = vunpack.c.l.b16 %v3947
      %v3985 = vunpack.c.h.b16 %v3947
      %v3986 = vunpack.c.l.b16 %v3948
      %v3987 = vunpack.c.h.b16 %v3948
      %v3988 = vunpack.c.l.b16 %v3949
      %v3989 = vunpack.c.h.b16 %v3949
      %v3990 = vunpack.c.l.b16 %v3950
      %v3991 = vunpack.c.h.b16 %v3950
      %v3992 = vunpack.c.l.b16 %v3951
      %v3993 = vunpack.c.h.b16 %v3951
      %v3994 = vunpack.c.l.b16 %v3952
      %v3995 = vunpack.c.h.b16 %v3952
      %v3996 = vunpack.c.l.b16 %v3953
      %v3997 = vunpack.c.h.b16 %v3953
      %v3998 = vunpack.c.l.b16 %v3954
      %v3999 = vunpack.c.h.b16 %v3954
      %v4000 = vunpack.c.l.b16 %v3955
      %v4001 = vunpack.c.h.b16 %v3955
      %v4002 = vunpack.c.l.b16 %v3956
      %v4003 = vunpack.c.h.b16 %v3956
      %v4004 = vunpack.c.l.b16 %v3957
      %v4005 = vunpack.c.h.b16 %v3957
      %v4006 = vpack.c.b16 %v3974, %v3974
      %v4007 = vpack.c.b16 %v3975, %v3975
      %v4008 = vpack.c.b16 %v3976, %v3976
      %v4009 = vpack.c.b16 %v3977, %v3977
      %v4010 = vpack.c.b16 %v3978, %v3978
      %v4011 = vpack.c.b16 %v3979, %v3979
      %v4012 = vpack.c.b16 %v3980, %v3980
      %v4013 = vpack.c.b16 %v3981, %v3981
      %v4014 = vpack.c.b16 %v3982, %v3982
      %v4015 = vpack.c.b16 %v3983, %v3983
      %v4016 = vpack.c.b16 %v3984, %v3984
      %v4017 = vpack.c.b16 %v3985, %v3985
      %v4018 = vpack.c.b16 %v3986, %v3986
      %v4019 = vpack.c.b16 %v3987, %v3987
      %v4020 = vpack.c.b16 %v3988, %v3988
      %v4021 = vpack.c.b16 %v3989, %v3989
      %v4022 = vpack.c.b16 %v3990, %v3990
      %v4023 = vpack.c.b16 %v3991, %v3991
      %v4024 = vpack.c.b16 %v3992, %v3992
      %v4025 = vpack.c.b16 %v3993, %v3993
      %v4026 = vpack.c.b16 %v3994, %v3994
      %v4027 = vpack.c.b16 %v3995, %v3995
      %v4028 = vpack.c.b16 %v3996, %v3996
      %v4029 = vpack.c.b16 %v3997, %v3997
      %v4030 = vpack.c.b16 %v3998, %v3998
      %v4031 = vpack.c.b16 %v3999, %v3999
      %v4032 = vpack.c.b16 %v4000, %v4000
      %v4033 = vpack.c.b16 %v4001, %v4001
      %v4034 = vpack.c.b16 %v4002, %v4002
      %v4035 = vpack.c.b16 %v4003, %v4003
      %v4036 = vpack.c.b16 %v4004, %v4004
      %v4037 = vpack.c.b16 %v4005, %v4005
      %vm4070 = vcmask 257024
      %4071 = vst.msk [vmem:[%s320] sm:$0xf] %vm4070, %v4006
      %4072 = vst.msk [vmem:[%s320 + $0x4] sm:$0xf] %vm4070, %v4007
      %4073 = vst.msk [vmem:[%s320 + $0x8] sm:$0xf] %vm4070, %v4008
      %4074 = vst.msk [vmem:[%s320 + $0xc] sm:$0xf] %vm4070, %v4009
      %4075 = vst.msk [vmem:[%s320 + $0x10] sm:$0xf] %vm4070, %v4010
      %4076 = vst.msk [vmem:[%s320 + $0x14] sm:$0xf] %vm4070, %v4011
      %4077 = vst.msk [vmem:[%s320 + $0x18] sm:$0xf] %vm4070, %v4012
      %4078 = vst.msk [vmem:[%s320 + $0x1c] sm:$0xf] %vm4070, %v4013
      %4079 = vst.msk [vmem:[%s320 + $0x20] sm:$0xf] %vm4070, %v4014
      %4080 = vst.msk [vmem:[%s320 + $0x24] sm:$0xf] %vm4070, %v4015
      %4081 = vst.msk [vmem:[%s320 + $0x28] sm:$0xf] %vm4070, %v4016
      %4082 = vst.msk [vmem:[%s320 + $0x2c] sm:$0xf] %vm4070, %v4017
      %4083 = vst.msk [vmem:[%s320 + $0x30] sm:$0xf] %vm4070, %v4018
      %4084 = vst.msk [vmem:[%s320 + $0x34] sm:$0xf] %vm4070, %v4019
      %4085 = vst.msk [vmem:[%s320 + $0x38] sm:$0xf] %vm4070, %v4020
      %4086 = vst.msk [vmem:[%s320 + $0x3c] sm:$0xf] %vm4070, %v4021
      %4087 = vst.msk [vmem:[%s320 + $0x40] sm:$0xf] %vm4070, %v4022
      %4088 = vst.msk [vmem:[%s320 + $0x44] sm:$0xf] %vm4070, %v4023
      %4089 = vst.msk [vmem:[%s320 + $0x48] sm:$0xf] %vm4070, %v4024
      %4090 = vst.msk [vmem:[%s320 + $0x4c] sm:$0xf] %vm4070, %v4025
      %4091 = vst.msk [vmem:[%s320 + $0x50] sm:$0xf] %vm4070, %v4026
      %4092 = vst.msk [vmem:[%s320 + $0x54] sm:$0xf] %vm4070, %v4027
      %4093 = vst.msk [vmem:[%s320 + $0x58] sm:$0xf] %vm4070, %v4028
      %4094 = vst.msk [vmem:[%s320 + $0x5c] sm:$0xf] %vm4070, %v4029
      %4095 = vst.msk [vmem:[%s320 + $0x60] sm:$0xf] %vm4070, %v4030
      %4096 = vst.msk [vmem:[%s320 + $0x64] sm:$0xf] %vm4070, %v4031
      %4097 = vst.msk [vmem:[%s320 + $0x68] sm:$0xf] %vm4070, %v4032
      %4098 = vst.msk [vmem:[%s320 + $0x6c] sm:$0xf] %vm4070, %v4033
      %4099 = vst.msk [vmem:[%s320 + $0x70] sm:$0xf] %vm4070, %v4034
      %4100 = vst.msk [vmem:[%s320 + $0x74] sm:$0xf] %vm4070, %v4035
      %4101 = vst.msk [vmem:[%s320 + $0x78] sm:$0xf] %vm4070, %v4036
      %4102 = vst.msk [vmem:[%s320 + $0x7c] sm:$0xf] %vm4070, %v4037
      %p4103 = scmp.lt.s32.totalorder %s20, 1
      %s4104 = scalar_select %p4103, %s20, 1
      %p4105 = scmp.lt.s32.totalorder %s21, 0
      %s4106 = scalar_select %p4105, %s21, 0
      %s4107 = smul.addr %s4104, 32
      %s4108 = sadd.s32 %s4106, %s4107
      %s4109 = smul.addr %s4108, 4
      %s4110 = scalar_lea.vmem %s5, %s4109
      // Predicated region
      $region45: #{base_backbone_wrapper_forward.5} parent=43 // pred_check
        %p4111 = pneg %p193
      $region46: #{base_backbone_wrapper_forward.5} parent=43 // pred_check_branch
        %4113 = sbr.rel (%p4111) target = $region48
      $region47: #{base_backbone_wrapper_forward.5} parent=43 // pred_region
        _
      $region48: #{base_backbone_wrapper_forward.5} parent=43 // pred_fallthru
        _
    $region44: #{base_backbone_wrapper_forward.5} parent=5 // pred_fallthru
      _
    %p4114 = scmp.le.s32.totalorder 2, %s11
    // Predicated region
    $region49: #{base_backbone_wrapper_forward.5} parent=5 // pred_check
      %p4115 = pneg %p4114
    $region50: #{base_backbone_wrapper_forward.5} parent=5 // pred_check_branch
      %4117 = sbr.rel (%p4115) target = $region52
    $region51: #{base_backbone_wrapper_forward.5} parent=5 // pred_region
      %s4118 = ssub.s32 %s11, 2
      // Predicated region
      $region53: #{base_backbone_wrapper_forward.5} parent=51 // pred_check
        %p4119 = pneg %p199
      $region54: #{base_backbone_wrapper_forward.5} parent=51 // pred_check_branch
        %4121 = sbr.rel (%p4119) target = $region56
      $region55: #{base_backbone_wrapper_forward.5} parent=51 // pred_region
        %p4122 = scmp.lt.s32.totalorder %s22, 1
        %s4123 = scalar_select %p4122, %s22, 1
        %p4124 = scmp.lt.s32.totalorder %s23, 0
        %s4125 = scalar_select %p4124, %s23, 0
        %s4126 = smul.addr %s4123, 32
        %s4127 = sadd.s32 %s4125, %s4126
        %s4128 = smul.addr %s4127, 4
        %s4129 = scalar_lea.vmem %s5, %s4128
      $region56: #{base_backbone_wrapper_forward.5} parent=51 // pred_fallthru
        _
    $region52: #{base_backbone_wrapper_forward.5} parent=5 // pred_fallthru
      _
  $region6: #{base_backbone_wrapper_forward.5} parent=0 // loop_footer
    %s15 = sadd.s32 1, %s11
  $region7: #{base_backbone_wrapper_forward.5} parent=0 // loop_footer_branch
    %10 = sbr.rel target = $region3
  $region8: #{base_backbone_wrapper_forward.5} parent=0 // loop_exit
    _

// kernel: base_backbone_wrapper_forward.4
$region0: #{base_backbone_wrapper_forward.4}
  #allocation0 [shape = 'u32[]', space=smem, size = 0x4, offset = 0x4, fixed_abs, tag = 'smem constant byte address 0x4 - core index']
  #allocation1 [shape = 'u32[144,128]{1,0:T(1,128)}', space=vmem, size = 0x12000, scoped, tag = 'internal scratch']
  %s0 = inlined_call_operand.vmem [shape: bf16[8,9,9,32], index: 0, kind: input, shape index: {}]
  %s1 = inlined_call_operand.vmem [shape: f32[64,32,3,3], index: 1, kind: input, shape index: {}]
  %s2 = inlined_call_operand.vmem [shape: f32[64], index: 2, kind: input, shape index: {}]
  %s3 = inlined_call_operand.vmem [shape: f32[64], index: 3, kind: input, shape index: {}]
  %s4 = inlined_call_operand.vmem [shape: f32[64], index: 4, kind: input, shape index: {}]
  %s5 = inlined_call_operand.vmem [shape: bf16[2,64,64], index: 5, kind: output, shape index: {}]
  %s6 = sld [smem:[#allocation0]]
  $region57: #{base_backbone_wrapper_forward.4} parent=0
    _
  %s8 = ssub.s32 1, %s6
  %s9 = scalar_select 0, %s8, %s6
  loop: start=0, step=1, limit=4
  $region2: #{base_backbone_wrapper_forward.4} parent=0 // loop_pre_header
    _
  $region3: #{base_backbone_wrapper_forward.4} parent=0 // loop_header
    %s11 = sphi 0, %s15
    %p12 = scmp.ge.s32.totalorder %s11, 4
    %s18 = sphi 0, %s30
    %s19 = sphi 0, %s26
    %s20 = sphi 0, %s18
    %s21 = sphi 0, %s19
    %s22 = sphi 0, %s20
    %s23 = sphi 0, %s21
    %s33 = sphi 0, %s35
    %s36 = sphi 0, %s33
    %s37 = sphi 0, %s36
    %s53 = sphi 0, %s37
    %s59 = sphi 0, %s61
    %s62 = sphi 0, %s59
    %s63 = sphi 0, %s62
    %s79 = sphi 0, %s63
    %s89 = sphi 0, %s91
    %s92 = sphi 0, %s89
    %s93 = sphi 0, %s92
    %s109 = sphi 0, %s93
    %s113 = sphi 0, %s113
    %s115 = sphi 0, %s113
    %s116 = sphi 0, %s115
    %s130 = sphi 0, %s116
    %s134 = sphi 0, %s134
    %s136 = sphi 0, %s134
    %s137 = sphi 0, %s136
    %s151 = sphi 0, %s137
    %s155 = sphi 0, %s155
    %s157 = sphi 0, %s155
    %s158 = sphi 0, %s157
    %s172 = sphi 0, %s158
    %s180 = sphi 0, %s182
    %s183 = sphi 0, %s180
    %s184 = sphi 0, %s183
    %s200 = sphi 0, %s184
  $region4: #{base_backbone_wrapper_forward.4} parent=0 // loop_header_branch
    %14 = sbr.rel (%p12) target = $region8
  $region5: #{base_backbone_wrapper_forward.4} parent=0 // loop_body
    %s16 = ssub.s32 %s11, 1
    %s17 = ssub.s32 %s11, 2
    %s24 = sadd.s32 1, %s19
    %p25 = scmp.ge.s32.totalorder %s24, 1
    %s26 = scalar_select %p25, 0, %s24
    %s27 = sadd.s32 1, %s18
    %s28 = scalar_select %p25, %s27, %s18
    %p29 = scmp.ge.s32.totalorder %s28, 2
    %s30 = scalar_select %p29, 0, %s28
    %s31 = ssub.s32 %s18, %s30
    %p32 = scmp.eq.s32.totalorder %s31, 0
    %s34 = sadd.s32 %s33, 1
    %s35 = scalar_select %p32, %s33, %s34
    %p38 = pneg %p32
    %p39 = scmp.eq.s32.totalorder %s11, 1
    %p40 = por %p38, %p39
    %p41 = scmp.ne.s32.totalorder %s33, %s36
    %p42 = scmp.eq.s32.totalorder %s11, 0
    %p43 = por %p41, %p42
    %p44 = scmp.ne.s32.totalorder %s33, %s36
    %p45 = scmp.eq.s32.totalorder %s16, 1
    %p46 = por %p44, %p45
    %p47 = scmp.ne.s32.totalorder %s36, %s37
    %p48 = scmp.eq.s32.totalorder %s16, 0
    %p49 = por %p47, %p48
    %p50 = scmp.ne.s32.totalorder %s36, %s37
    %p51 = scmp.eq.s32.totalorder %s17, 1
    %p52 = por %p50, %p51
    %p54 = scmp.ne.s32.totalorder %s37, %s53
    %p55 = scmp.eq.s32.totalorder %s17, 0
    %p56 = por %p54, %p55
    %s57 = ssub.s32 %s19, %s26
    %p58 = scmp.eq.s32.totalorder %s57, 0
    %s60 = sadd.s32 %s59, 1
    %s61 = scalar_select %p58, %s59, %s60
    %p64 = pneg %p58
    %p65 = scmp.eq.s32.totalorder %s11, 1
    %p66 = por %p64, %p65
    %p67 = scmp.ne.s32.totalorder %s59, %s62
    %p68 = scmp.eq.s32.totalorder %s11, 0
    %p69 = por %p67, %p68
    %p70 = scmp.ne.s32.totalorder %s59, %s62
    %p71 = scmp.eq.s32.totalorder %s16, 1
    %p72 = por %p70, %p71
    %p73 = scmp.ne.s32.totalorder %s62, %s63
    %p74 = scmp.eq.s32.totalorder %s16, 0
    %p75 = por %p73, %p74
    %p76 = scmp.ne.s32.totalorder %s62, %s63
    %p77 = scmp.eq.s32.totalorder %s17, 1
    %p78 = por %p76, %p77
    %p80 = scmp.ne.s32.totalorder %s63, %s79
    %p81 = scmp.eq.s32.totalorder %s17, 0
    %p82 = por %p80, %p81
    %s83 = smul.addr %s19, 128
    %s84 = sshrl.u32 %s83, 7
    %s85 = smul.addr %s26, 128
    %s86 = sshrl.u32 %s85, 7
    %s87 = ssub.s32 %s84, %s86
    %p88 = scmp.eq.s32.totalorder %s87, 0
    %s90 = sadd.s32 %s89, 1
    %s91 = scalar_select %p88, %s89, %s90
    %p94 = pneg %p88
    %p95 = scmp.eq.s32.totalorder %s11, 1
    %p96 = por %p94, %p95
    %p97 = scmp.ne.s32.totalorder %s89, %s92
    %p98 = scmp.eq.s32.totalorder %s11, 0
    %p99 = por %p97, %p98
    %p100 = scmp.ne.s32.totalorder %s89, %s92
    %p101 = scmp.eq.s32.totalorder %s16, 1
    %p102 = por %p100, %p101
    %p103 = scmp.ne.s32.totalorder %s92, %s93
    %p104 = scmp.eq.s32.totalorder %s16, 0
    %p105 = por %p103, %p104
    %p106 = scmp.ne.s32.totalorder %s92, %s93
    %p107 = scmp.eq.s32.totalorder %s17, 1
    %p108 = por %p106, %p107
    %p110 = scmp.ne.s32.totalorder %s93, %s109
    %p111 = scmp.eq.s32.totalorder %s17, 0
    %p112 = por %p110, %p111
    %s114 = sadd.s32 %s113, 1
    %p117 = scmp.eq.s32.totalorder %s11, 1
    %p118 = scmp.ne.s32.totalorder %s113, %s115
    %p119 = scmp.eq.s32.totalorder %s11, 0
    %p120 = por %p118, %p119
    %p121 = scmp.ne.s32.totalorder %s113, %s115
    %p122 = scmp.eq.s32.totalorder %s16, 1
    %p123 = por %p121, %p122
    %p124 = scmp.ne.s32.totalorder %s115, %s116
    %p125 = scmp.eq.s32.totalorder %s16, 0
    %p126 = por %p124, %p125
    %p127 = scmp.ne.s32.totalorder %s115, %s116
    %p128 = scmp.eq.s32.totalorder %s17, 1
    %p129 = por %p127, %p128
    %p131 = scmp.ne.s32.totalorder %s116, %s130
    %p132 = scmp.eq.s32.totalorder %s17, 0
    %p133 = por %p131, %p132
    %s135 = sadd.s32 %s134, 1
    %p138 = scmp.eq.s32.totalorder %s11, 1
    %p139 = scmp.ne.s32.totalorder %s134, %s136
    %p140 = scmp.eq.s32.totalorder %s11, 0
    %p141 = por %p139, %p140
    %p142 = scmp.ne.s32.totalorder %s134, %s136
    %p143 = scmp.eq.s32.totalorder %s16, 1
    %p144 = por %p142, %p143
    %p145 = scmp.ne.s32.totalorder %s136, %s137
    %p146 = scmp.eq.s32.totalorder %s16, 0
    %p147 = por %p145, %p146
    %p148 = scmp.ne.s32.totalorder %s136, %s137
    %p149 = scmp.eq.s32.totalorder %s17, 1
    %p150 = por %p148, %p149
    %p152 = scmp.ne.s32.totalorder %s137, %s151
    %p153 = scmp.eq.s32.totalorder %s17, 0
    %p154 = por %p152, %p153
    %s156 = sadd.s32 %s155, 1
    %p159 = scmp.eq.s32.totalorder %s11, 1
    %p160 = scmp.ne.s32.totalorder %s155, %s157
    %p161 = scmp.eq.s32.totalorder %s11, 0
    %p162 = por %p160, %p161
    %p163 = scmp.ne.s32.totalorder %s155, %s157
    %p164 = scmp.eq.s32.totalorder %s16, 1
    %p165 = por %p163, %p164
    %p166 = scmp.ne.s32.totalorder %s157, %s158
    %p167 = scmp.eq.s32.totalorder %s16, 0
    %p168 = por %p166, %p167
    %p169 = scmp.ne.s32.totalorder %s157, %s158
    %p170 = scmp.eq.s32.totalorder %s17, 1
    %p171 = por %p169, %p170
    %p173 = scmp.ne.s32.totalorder %s158, %s172
    %p174 = scmp.eq.s32.totalorder %s17, 0
    %p175 = por %p173, %p174
    %s176 = ssub.s32 %s18, %s30
    %s177 = ssub.s32 %s19, %s26
    %s178 = sor.u32 %s176, %s177
    %p179 = scmp.eq.s32.totalorder %s178, 0
    %s181 = sadd.s32 %s180, 1
    %s182 = scalar_select %p179, %s180, %s181
    %p185 = pneg %p179
    %p186 = scmp.eq.s32.totalorder %s11, 1
    %p187 = por %p185, %p186
    %p188 = scmp.ne.s32.totalorder %s180, %s183
    %p189 = scmp.eq.s32.totalorder %s11, 0
    %p190 = por %p188, %p189
    %p191 = scmp.ne.s32.totalorder %s180, %s183
    %p192 = scmp.eq.s32.totalorder %s16, 1
    %p193 = por %p191, %p192
    %p194 = scmp.ne.s32.totalorder %s183, %s184
    %p195 = scmp.eq.s32.totalorder %s16, 0
    %p196 = por %p194, %p195
    %p197 = scmp.ne.s32.totalorder %s183, %s184
    %p198 = scmp.eq.s32.totalorder %s17, 1
    %p199 = por %p197, %p198
    %p201 = scmp.ne.s32.totalorder %s184, %s200
    %p202 = scmp.eq.s32.totalorder %s17, 0
    %p203 = por %p201, %p202
    %p204 = scmp.le.s32.totalorder 1, %s11
    %p205 = scmp.lt.s32.totalorder %s11, 3
    %p206 = pnand %p204, %p205
    %p207 = pneg %p206
    // Predicated region
    $region9: #{base_backbone_wrapper_forward.4} parent=5 // pred_check
      _
    $region10: #{base_backbone_wrapper_forward.4} parent=5 // pred_check_branch
      %209 = sbr.rel (%p206) target = $region12
    $region11: #{base_backbone_wrapper_forward.4} parent=5 // pred_region
      %s210 = ssub.s32 %s11, 1
      // Predicated region
      $region13: #{base_backbone_wrapper_forward.4} parent=11 // pred_check
        %p211 = pneg %p75
      $region14: #{base_backbone_wrapper_forward.4} parent=11 // pred_check_branch
        %213 = sbr.rel (%p211) target = $region16
      $region15: #{base_backbone_wrapper_forward.4} parent=11 // pred_region
        %p214 = scmp.lt.s32.totalorder %s21, 0
        %s215 = scalar_select %p214, %s21, 0
        %s216 = smul.addr %s215, 8
        %s217 = scalar_lea.vmem %s1, %s216
      $region16: #{base_backbone_wrapper_forward.4} parent=11 // pred_fallthru
        _
      // Predicated region
      $region17: #{base_backbone_wrapper_forward.4} parent=11 // pred_check
        %p218 = pneg %p105
      $region18: #{base_backbone_wrapper_forward.4} parent=11 // pred_check_branch
        %220 = sbr.rel (%p218) target = $region20
      $region19: #{base_backbone_wrapper_forward.4} parent=11 // pred_region
        %s221 = smul.addr %s21, 128
        %s222 = sshrl.u32 %s221, 7
        %p223 = scmp.lt.s32.totalorder %s222, 0
        %s224 = scalar_select %p223, %s222, 0
        %s225 = scalar_lea.vmem %s2, %s224
        %s226 = smul.addr %s21, 128
        %s227 = sshrl.u32 %s226, 7
      $region20: #{base_backbone_wrapper_forward.4} parent=11 // pred_fallthru
        _
      // Predicated region
      $region21: #{base_backbone_wrapper_forward.4} parent=11 // pred_check
        %p228 = pneg %p126
      $region22: #{base_backbone_wrapper_forward.4} parent=11 // pred_check_branch
        %230 = sbr.rel (%p228) target = $region24
      $region23: #{base_backbone_wrapper_forward.4} parent=11 // pred_region
        _
      $region24: #{base_backbone_wrapper_forward.4} parent=11 // pred_fallthru
        _
      // Predicated region
      $region25: #{base_backbone_wrapper_forward.4} parent=11 // pred_check
        %p231 = pneg %p147
      $region26: #{base_backbone_wrapper_forward.4} parent=11 // pred_check_branch
        %233 = sbr.rel (%p231) target = $region28
      $region27: #{base_backbone_wrapper_forward.4} parent=11 // pred_region
        _
      $region28: #{base_backbone_wrapper_forward.4} parent=11 // pred_fallthru
        _
      // Predicated region
      $region29: #{base_backbone_wrapper_forward.4} parent=11 // pred_check
        %p234 = pneg %p168
      $region30: #{base_backbone_wrapper_forward.4} parent=11 // pred_check_branch
        %236 = sbr.rel (%p234) target = $region32
      $region31: #{base_backbone_wrapper_forward.4} parent=11 // pred_region
        _
      $region32: #{base_backbone_wrapper_forward.4} parent=11 // pred_fallthru
        _
    $region12: #{base_backbone_wrapper_forward.4} parent=5 // pred_fallthru
      _
    %p237 = scmp.lt.s32.totalorder %s11, 2
    // Predicated region
    $region33: #{base_backbone_wrapper_forward.4} parent=5 // pred_check
      %p238 = pneg %p237
    $region34: #{base_backbone_wrapper_forward.4} parent=5 // pred_check_branch
      %240 = sbr.rel (%p238) target = $region36
    $region35: #{base_backbone_wrapper_forward.4} parent=5 // pred_region
      // Predicated region
      $region37: #{base_backbone_wrapper_forward.4} parent=35 // pred_check
        %p241 = pneg %p43
      $region38: #{base_backbone_wrapper_forward.4} parent=35 // pred_check_branch
        %243 = sbr.rel (%p241) target = $region40
      $region39: #{base_backbone_wrapper_forward.4} parent=35 // pred_region
        %s244 = smul.u32 4, %s18
        %p245 = scmp.lt.s32.totalorder %s244, 7
        %s246 = scalar_select %p245, %s244, 7
        %s247 = smul.addr %s246, 18
        %s248 = smul.addr %s247, 4
        %s249 = scalar_lea.vmem %s0, %s248
        %s250 = smul.u32 4, %s18
      $region40: #{base_backbone_wrapper_forward.4} parent=35 // pred_fallthru
        _
    $region36: #{base_backbone_wrapper_forward.4} parent=5 // pred_fallthru
      _
    %p251 = scmp.le.s32.totalorder 1, %s11
    %p252 = scmp.lt.s32.totalorder %s11, 3
    %p253 = pnand %p251, %p252
    %p254 = pneg %p253
    // Predicated region
    $region41: #{base_backbone_wrapper_forward.4} parent=5 // pred_check
      _
    $region42: #{base_backbone_wrapper_forward.4} parent=5 // pred_check_branch
      %256 = sbr.rel (%p253) target = $region44
    $region43: #{base_backbone_wrapper_forward.4} parent=5 // pred_region
      #allocation2 [shape = 'u8[73728]{0}', space=vmem, size = 0x12000, dematerialized = true, scoped, tag = 'FusionAdapter Buffer %fusion.2 = bf16[3,3,32,64]{3,2,1,0:T(8,128)(2,1)} fusion(%param_1.14, %param_2.4), kind=kLoop, calls=%fused_computation.2.clone.clone, metadata={op_name="jit(base_backbone_wrapper_forward)/convert_element_type" stack_frame_id=41}']
      #allocation3 [shape = 'u8[512]{0}', space=vmem, size = 0x400, dematerialized = true, scoped, tag = 'FusionAdapter Buffer %fusion.8 = f32[1,64]{1,0:T(1,128)} fusion(%param_3.6, %param_4.1, %param_2.4), kind=kLoop, calls=%fused_computation.11.clone, metadata={op_name="jit(base_backbone_wrapper_forward)/reshape" stack_frame_id=39}']
      %s257 = ssub.s32 %s11, 1
      %s258 = smul.u32 4, %s20
      %p259 = scmp.lt.s32.totalorder %s258, 7
      %s260 = scalar_select %p259, %s258, 7
      %s261 = smul.addr %s260, 18
      %s262 = smul.addr %s261, 4
      %s263 = scalar_lea.vmem %s0, %s262
      %p264 = pneg %p49
      %p265 = pneg %p46
      %p266 = scmp.lt.s32.totalorder %s21, 0
      %s267 = scalar_select %p266, %s21, 0
      %s268 = smul.addr %s267, 8
      %s269 = scalar_lea.vmem %s1, %s268
      %p270 = pneg %p75
      %p271 = pneg %p72
      %s272 = smul.addr %s21, 128
      %s273 = sshrl.u32 %s272, 7
      %p274 = scmp.lt.s32.totalorder %s273, 0
      %s275 = scalar_select %p274, %s273, 0
      %s276 = scalar_lea.vmem %s2, %s275
      %p277 = pneg %p105
      %p278 = pneg %p102
      %p279 = pneg %p126
      %p280 = pneg %p123
      %p281 = pneg %p147
      %p282 = pneg %p144
      %p283 = pneg %p168
      %p284 = pneg %p165
      %p285 = pneg %p196
      %p286 = pneg %p193
      %p287 = scmp.lt.s32.totalorder %s20, 1
      %s288 = scalar_select %p287, %s20, 1
      %p289 = scmp.lt.s32.totalorder %s21, 0
      %s290 = scalar_select %p289, %s21, 0
      %s291 = smul.addr %s288, 8
      %s292 = sadd.s32 %s290, %s291
      %s293 = smul.addr %s292, 4
      %s294 = scalar_lea.vmem %s5, %s293
      %s295 = smul.u32 4, %s20
      %p296 = scmp.lt.s32.totalorder %s295, 7
      %s297 = scalar_select %p296, %s295, 7
      %s298 = smul.addr %s297, 18
      %s299 = smul.addr %s298, 4
      %s300 = scalar_lea.vmem %s0, %s299
      %s301 = smul.u32 4, %s20
      %p302 = scmp.lt.s32.totalorder %s21, 0
      %s303 = scalar_select %p302, %s21, 0
      %s304 = smul.addr %s303, 8
      %s305 = scalar_lea.vmem %s1, %s304
      %s306 = smul.addr %s21, 128
      %s307 = sshrl.u32 %s306, 7
      %p308 = scmp.lt.s32.totalorder %s307, 0
      %s309 = scalar_select %p308, %s307, 0
      %s310 = scalar_lea.vmem %s2, %s309
      %s311 = smul.addr %s21, 128
      %s312 = sshrl.u32 %s311, 7
      %p313 = scmp.lt.s32.totalorder %s20, 1
      %s314 = scalar_select %p313, %s20, 1
      %p315 = scmp.lt.s32.totalorder %s21, 0
      %s316 = scalar_select %p315, %s21, 0
      %s317 = smul.addr %s314, 8
      %s318 = sadd.s32 %s316, %s317
      %s319 = smul.addr %s318, 4
      %s320 = scalar_lea.vmem %s5, %s319
      %s321 = smul.addr %s21, 128
      %v322 = vld [vmem:[%s305] sm:$0xff]
      %s323 = scalar_lea.vmem %s2, %s312
      %v324 = vld [vmem:[%s323] ss:$0 sm:$0xff]
      %325 = xla_tuple %v322, %v324
      %326 = xla_tuple %325
      %v327 = vmul.f32 %v322, %v324
      %328 = xla_tuple %v327
      %329 = xla_tuple %v327
      %330 = xla_tuple %329
      %331 = xla_tuple %v327
      %v332 = vpack.c.bf16 0.0, %v327
      %s334 = ssub.s32 16, 1
      %335 = vst [vmem:[#allocation2] sm:%s334] %v332
      %s336 = scalar_lea.vmem %s305, 8
      %v337 = vld [vmem:[%s336] sm:$0xff]
      %338 = xla_tuple %v337, %v324
      %339 = xla_tuple %338
      %v340 = vmul.f32 %v337, %v324
      %341 = xla_tuple %v340
      %342 = xla_tuple %v340
      %343 = xla_tuple %342
      %344 = xla_tuple %v340
      %s345 = scalar_lea.vmem [#allocation2], 4
      %v346 = vpack.c.bf16 0.0, %v340
      %s348 = ssub.s32 16, 1
      %349 = vst [vmem:[%s345] sm:%s348] %v346
      %s350 = scalar_lea.vmem %s305, 16
      %v351 = vld [vmem:[%s350] sm:$0xff]
      %352 = xla_tuple %v351, %v324
      %353 = xla_tuple %352
      %v354 = vmul.f32 %v351, %v324
      %355 = xla_tuple %v354
      %356 = xla_tuple %v354
      %357 = xla_tuple %356
      %358 = xla_tuple %v354
      %s359 = scalar_lea.vmem [#allocation2], 8
      %v360 = vpack.c.bf16 0.0, %v354
      %s362 = ssub.s32 16, 1
      %363 = vst [vmem:[%s359] sm:%s362] %v360
      %s364 = scalar_lea.vmem %s305, 24
      %v365 = vld [vmem:[%s364] sm:$0xff]
      %366 = xla_tuple %v365, %v324
      %367 = xla_tuple %366
      %v368 = vmul.f32 %v365, %v324
      %369 = xla_tuple %v368
      %370 = xla_tuple %v368
      %371 = xla_tuple %370
      %372 = xla_tuple %v368
      %s373 = scalar_lea.vmem [#allocation2], 12
      %v374 = vpack.c.bf16 0.0, %v368
      %s376 = ssub.s32 16, 1
      %377 = vst [vmem:[%s373] sm:%s376] %v374
      %s378 = scalar_lea.vmem %s305, 32
      %v379 = vld [vmem:[%s378] sm:$0xff]
      %380 = xla_tuple %v379, %v324
      %381 = xla_tuple %380
      %v382 = vmul.f32 %v379, %v324
      %383 = xla_tuple %v382
      %384 = xla_tuple %v382
      %385 = xla_tuple %384
      %386 = xla_tuple %v382
      %s387 = scalar_lea.vmem [#allocation2], 16
      %v388 = vpack.c.bf16 0.0, %v382
      %s390 = ssub.s32 16, 1
      %391 = vst [vmem:[%s387] sm:%s390] %v388
      %s392 = scalar_lea.vmem %s305, 40
      %v393 = vld [vmem:[%s392] sm:$0xff]
      %394 = xla_tuple %v393, %v324
      %395 = xla_tuple %394
      %v396 = vmul.f32 %v393, %v324
      %397 = xla_tuple %v396
      %398 = xla_tuple %v396
      %399 = xla_tuple %398
      %400 = xla_tuple %v396
      %s401 = scalar_lea.vmem [#allocation2], 20
      %v402 = vpack.c.bf16 0.0, %v396
      %s404 = ssub.s32 16, 1
      %405 = vst [vmem:[%s401] sm:%s404] %v402
      %s406 = scalar_lea.vmem %s305, 48
      %v407 = vld [vmem:[%s406] sm:$0xff]
      %408 = xla_tuple %v407, %v324
      %409 = xla_tuple %408
      %v410 = vmul.f32 %v407, %v324
      %411 = xla_tuple %v410
      %412 = xla_tuple %v410
      %413 = xla_tuple %412
      %414 = xla_tuple %v410
      %s415 = scalar_lea.vmem [#allocation2], 24
      %v416 = vpack.c.bf16 0.0, %v410
      %s418 = ssub.s32 16, 1
      %419 = vst [vmem:[%s415] sm:%s418] %v416
      %s420 = scalar_lea.vmem %s305, 56
      %v421 = vld [vmem:[%s420] sm:$0xff]
      %422 = xla_tuple %v421, %v324
      %423 = xla_tuple %422
      %v424 = vmul.f32 %v421, %v324
      %425 = xla_tuple %v424
      %426 = xla_tuple %v424
      %427 = xla_tuple %426
      %428 = xla_tuple %v424
      %s429 = scalar_lea.vmem [#allocation2], 28
      %v430 = vpack.c.bf16 0.0, %v424
      %s432 = ssub.s32 16, 1
      %433 = vst [vmem:[%s429] sm:%s432] %v430
      %s434 = scalar_lea.vmem %s305, 64
      %v435 = vld [vmem:[%s434] sm:$0xff]
      %436 = xla_tuple %v435, %v324
      %437 = xla_tuple %436
      %v438 = vmul.f32 %v435, %v324
      %439 = xla_tuple %v438
      %440 = xla_tuple %v438
      %441 = xla_tuple %440
      %442 = xla_tuple %v438
      %s443 = scalar_lea.vmem [#allocation2], 32
      %v444 = vpack.c.bf16 0.0, %v438
      %s446 = ssub.s32 16, 1
      %447 = vst [vmem:[%s443] sm:%s446] %v444
      %s448 = scalar_lea.vmem %s305, 72
      %v449 = vld [vmem:[%s448] sm:$0xff]
      %450 = xla_tuple %v449, %v324
      %451 = xla_tuple %450
      %v452 = vmul.f32 %v449, %v324
      %453 = xla_tuple %v452
      %454 = xla_tuple %v452
      %455 = xla_tuple %454
      %456 = xla_tuple %v452
      %s457 = scalar_lea.vmem [#allocation2], 36
      %v458 = vpack.c.bf16 0.0, %v452
      %s460 = ssub.s32 16, 1
      %461 = vst [vmem:[%s457] sm:%s460] %v458
      %s462 = scalar_lea.vmem %s305, 80
      %v463 = vld [vmem:[%s462] sm:$0xff]
      %464 = xla_tuple %v463, %v324
      %465 = xla_tuple %464
      %v466 = vmul.f32 %v463, %v324
      %467 = xla_tuple %v466
      %468 = xla_tuple %v466
      %469 = xla_tuple %468
      %470 = xla_tuple %v466
      %s471 = scalar_lea.vmem [#allocation2], 40
      %v472 = vpack.c.bf16 0.0, %v466
      %s474 = ssub.s32 16, 1
      %475 = vst [vmem:[%s471] sm:%s474] %v472
      %s476 = scalar_lea.vmem %s305, 88
      %v477 = vld [vmem:[%s476] sm:$0xff]
      %478 = xla_tuple %v477, %v324
      %479 = xla_tuple %478
      %v480 = vmul.f32 %v477, %v324
      %481 = xla_tuple %v480
      %482 = xla_tuple %v480
      %483 = xla_tuple %482
      %484 = xla_tuple %v480
      %s485 = scalar_lea.vmem [#allocation2], 44
      %v486 = vpack.c.bf16 0.0, %v480
      %s488 = ssub.s32 16, 1
      %489 = vst [vmem:[%s485] sm:%s488] %v486
      %s490 = scalar_lea.vmem %s305, 96
      %v491 = vld [vmem:[%s490] sm:$0xff]
      %492 = xla_tuple %v491, %v324
      %493 = xla_tuple %492
      %v494 = vmul.f32 %v491, %v324
      %495 = xla_tuple %v494
      %496 = xla_tuple %v494
      %497 = xla_tuple %496
      %498 = xla_tuple %v494
      %s499 = scalar_lea.vmem [#allocation2], 48
      %v500 = vpack.c.bf16 0.0, %v494
      %s502 = ssub.s32 16, 1
      %503 = vst [vmem:[%s499] sm:%s502] %v500
      %s504 = scalar_lea.vmem %s305, 104
      %v505 = vld [vmem:[%s504] sm:$0xff]
      %506 = xla_tuple %v505, %v324
      %507 = xla_tuple %506
      %v508 = vmul.f32 %v505, %v324
      %509 = xla_tuple %v508
      %510 = xla_tuple %v508
      %511 = xla_tuple %510
      %512 = xla_tuple %v508
      %s513 = scalar_lea.vmem [#allocation2], 52
      %v514 = vpack.c.bf16 0.0, %v508
      %s516 = ssub.s32 16, 1
      %517 = vst [vmem:[%s513] sm:%s516] %v514
      %s518 = scalar_lea.vmem %s305, 112
      %v519 = vld [vmem:[%s518] sm:$0xff]
      %520 = xla_tuple %v519, %v324
      %521 = xla_tuple %520
      %v522 = vmul.f32 %v519, %v324
      %523 = xla_tuple %v522
      %524 = xla_tuple %v522
      %525 = xla_tuple %524
      %526 = xla_tuple %v522
      %s527 = scalar_lea.vmem [#allocation2], 56
      %v528 = vpack.c.bf16 0.0, %v522
      %s530 = ssub.s32 16, 1
      %531 = vst [vmem:[%s527] sm:%s530] %v528
      %s532 = scalar_lea.vmem %s305, 120
      %v533 = vld [vmem:[%s532] sm:$0xff]
      %534 = xla_tuple %v533, %v324
      %535 = xla_tuple %534
      %v536 = vmul.f32 %v533, %v324
      %537 = xla_tuple %v536
      %538 = xla_tuple %v536
      %539 = xla_tuple %538
      %540 = xla_tuple %v536
      %s541 = scalar_lea.vmem [#allocation2], 60
      %v542 = vpack.c.bf16 0.0, %v536
      %s544 = ssub.s32 16, 1
      %545 = vst [vmem:[%s541] sm:%s544] %v542
      %s546 = scalar_lea.vmem %s305, 128
      %v547 = vld [vmem:[%s546] sm:$0xff]
      %548 = xla_tuple %v547, %v324
      %549 = xla_tuple %548
      %v550 = vmul.f32 %v547, %v324
      %551 = xla_tuple %v550
      %552 = xla_tuple %v550
      %553 = xla_tuple %552
      %554 = xla_tuple %v550
      %s555 = scalar_lea.vmem [#allocation2], 64
      %v556 = vpack.c.bf16 0.0, %v550
      %s558 = ssub.s32 16, 1
      %559 = vst [vmem:[%s555] sm:%s558] %v556
      %s560 = scalar_lea.vmem %s305, 136
      %v561 = vld [vmem:[%s560] sm:$0xff]
      %562 = xla_tuple %v561, %v324
      %563 = xla_tuple %562
      %v564 = vmul.f32 %v561, %v324
      %565 = xla_tuple %v564
      %566 = xla_tuple %v564
      %567 = xla_tuple %566
      %568 = xla_tuple %v564
      %s569 = scalar_lea.vmem [#allocation2], 68
      %v570 = vpack.c.bf16 0.0, %v564
      %s572 = ssub.s32 16, 1
      %573 = vst [vmem:[%s569] sm:%s572] %v570
      %s574 = scalar_lea.vmem %s305, 144
      %v575 = vld [vmem:[%s574] sm:$0xff]
      %576 = xla_tuple %v575, %v324
      %577 = xla_tuple %576
      %v578 = vmul.f32 %v575, %v324
      %579 = xla_tuple %v578
      %580 = xla_tuple %v578
      %581 = xla_tuple %580
      %582 = xla_tuple %v578
      %s583 = scalar_lea.vmem [#allocation2], 72
      %v584 = vpack.c.bf16 0.0, %v578
      %s586 = ssub.s32 16, 1
      %587 = vst [vmem:[%s583] sm:%s586] %v584
      %s588 = scalar_lea.vmem %s305, 152
      %v589 = vld [vmem:[%s588] sm:$0xff]
      %590 = xla_tuple %v589, %v324
      %591 = xla_tuple %590
      %v592 = vmul.f32 %v589, %v324
      %593 = xla_tuple %v592
      %594 = xla_tuple %v592
      %595 = xla_tuple %594
      %596 = xla_tuple %v592
      %s597 = scalar_lea.vmem [#allocation2], 76
      %v598 = vpack.c.bf16 0.0, %v592
      %s600 = ssub.s32 16, 1
      %601 = vst [vmem:[%s597] sm:%s600] %v598
      %s602 = scalar_lea.vmem %s305, 160
      %v603 = vld [vmem:[%s602] sm:$0xff]
      %604 = xla_tuple %v603, %v324
      %605 = xla_tuple %604
      %v606 = vmul.f32 %v603, %v324
      %607 = xla_tuple %v606
      %608 = xla_tuple %v606
      %609 = xla_tuple %608
      %610 = xla_tuple %v606
      %s611 = scalar_lea.vmem [#allocation2], 80
      %v612 = vpack.c.bf16 0.0, %v606
      %s614 = ssub.s32 16, 1
      %615 = vst [vmem:[%s611] sm:%s614] %v612
      %s616 = scalar_lea.vmem %s305, 168
      %v617 = vld [vmem:[%s616] sm:$0xff]
      %618 = xla_tuple %v617, %v324
      %619 = xla_tuple %618
      %v620 = vmul.f32 %v617, %v324
      %621 = xla_tuple %v620
      %622 = xla_tuple %v620
      %623 = xla_tuple %622
      %624 = xla_tuple %v620
      %s625 = scalar_lea.vmem [#allocation2], 84
      %v626 = vpack.c.bf16 0.0, %v620
      %s628 = ssub.s32 16, 1
      %629 = vst [vmem:[%s625] sm:%s628] %v626
      %s630 = scalar_lea.vmem %s305, 176
      %v631 = vld [vmem:[%s630] sm:$0xff]
      %632 = xla_tuple %v631, %v324
      %633 = xla_tuple %632
      %v634 = vmul.f32 %v631, %v324
      %635 = xla_tuple %v634
      %636 = xla_tuple %v634
      %637 = xla_tuple %636
      %638 = xla_tuple %v634
      %s639 = scalar_lea.vmem [#allocation2], 88
      %v640 = vpack.c.bf16 0.0, %v634
      %s642 = ssub.s32 16, 1
      %643 = vst [vmem:[%s639] sm:%s642] %v640
      %s644 = scalar_lea.vmem %s305, 184
      %v645 = vld [vmem:[%s644] sm:$0xff]
      %646 = xla_tuple %v645, %v324
      %647 = xla_tuple %646
      %v648 = vmul.f32 %v645, %v324
      %649 = xla_tuple %v648
      %650 = xla_tuple %v648
      %651 = xla_tuple %650
      %652 = xla_tuple %v648
      %s653 = scalar_lea.vmem [#allocation2], 92
      %v654 = vpack.c.bf16 0.0, %v648
      %s656 = ssub.s32 16, 1
      %657 = vst [vmem:[%s653] sm:%s656] %v654
      %s658 = scalar_lea.vmem %s305, 192
      %v659 = vld [vmem:[%s658] sm:$0xff]
      %660 = xla_tuple %v659, %v324
      %661 = xla_tuple %660
      %v662 = vmul.f32 %v659, %v324
      %663 = xla_tuple %v662
      %664 = xla_tuple %v662
      %665 = xla_tuple %664
      %666 = xla_tuple %v662
      %s667 = scalar_lea.vmem [#allocation2], 96
      %v668 = vpack.c.bf16 0.0, %v662
      %s670 = ssub.s32 16, 1
      %671 = vst [vmem:[%s667] sm:%s670] %v668
      %s672 = scalar_lea.vmem %s305, 200
      %v673 = vld [vmem:[%s672] sm:$0xff]
      %674 = xla_tuple %v673, %v324
      %675 = xla_tuple %674
      %v676 = vmul.f32 %v673, %v324
      %677 = xla_tuple %v676
      %678 = xla_tuple %v676
      %679 = xla_tuple %678
      %680 = xla_tuple %v676
      %s681 = scalar_lea.vmem [#allocation2], 100
      %v682 = vpack.c.bf16 0.0, %v676
      %s684 = ssub.s32 16, 1
      %685 = vst [vmem:[%s681] sm:%s684] %v682
      %s686 = scalar_lea.vmem %s305, 208
      %v687 = vld [vmem:[%s686] sm:$0xff]
      %688 = xla_tuple %v687, %v324
      %689 = xla_tuple %688
      %v690 = vmul.f32 %v687, %v324
      %691 = xla_tuple %v690
      %692 = xla_tuple %v690
      %693 = xla_tuple %692
      %694 = xla_tuple %v690
      %s695 = scalar_lea.vmem [#allocation2], 104
      %v696 = vpack.c.bf16 0.0, %v690
      %s698 = ssub.s32 16, 1
      %699 = vst [vmem:[%s695] sm:%s698] %v696
      %s700 = scalar_lea.vmem %s305, 216
      %v701 = vld [vmem:[%s700] sm:$0xff]
      %702 = xla_tuple %v701, %v324
      %703 = xla_tuple %702
      %v704 = vmul.f32 %v701, %v324
      %705 = xla_tuple %v704
      %706 = xla_tuple %v704
      %707 = xla_tuple %706
      %708 = xla_tuple %v704
      %s709 = scalar_lea.vmem [#allocation2], 108
      %v710 = vpack.c.bf16 0.0, %v704
      %s712 = ssub.s32 16, 1
      %713 = vst [vmem:[%s709] sm:%s712] %v710
      %s714 = scalar_lea.vmem %s305, 224
      %v715 = vld [vmem:[%s714] sm:$0xff]
      %716 = xla_tuple %v715, %v324
      %717 = xla_tuple %716
      %v718 = vmul.f32 %v715, %v324
      %719 = xla_tuple %v718
      %720 = xla_tuple %v718
      %721 = xla_tuple %720
      %722 = xla_tuple %v718
      %s723 = scalar_lea.vmem [#allocation2], 112
      %v724 = vpack.c.bf16 0.0, %v718
      %s726 = ssub.s32 16, 1
      %727 = vst [vmem:[%s723] sm:%s726] %v724
      %s728 = scalar_lea.vmem %s305, 232
      %v729 = vld [vmem:[%s728] sm:$0xff]
      %730 = xla_tuple %v729, %v324
      %731 = xla_tuple %730
      %v732 = vmul.f32 %v729, %v324
      %733 = xla_tuple %v732
      %734 = xla_tuple %v732
      %735 = xla_tuple %734
      %736 = xla_tuple %v732
      %s737 = scalar_lea.vmem [#allocation2], 116
      %v738 = vpack.c.bf16 0.0, %v732
      %s740 = ssub.s32 16, 1
      %741 = vst [vmem:[%s737] sm:%s740] %v738
      %s742 = scalar_lea.vmem %s305, 240
      %v743 = vld [vmem:[%s742] sm:$0xff]
      %744 = xla_tuple %v743, %v324
      %745 = xla_tuple %744
      %v746 = vmul.f32 %v743, %v324
      %747 = xla_tuple %v746
      %748 = xla_tuple %v746
      %749 = xla_tuple %748
      %750 = xla_tuple %v746
      %s751 = scalar_lea.vmem [#allocation2], 120
      %v752 = vpack.c.bf16 0.0, %v746
      %s754 = ssub.s32 16, 1
      %755 = vst [vmem:[%s751] sm:%s754] %v752
      %s756 = scalar_lea.vmem %s305, 248
      %v757 = vld [vmem:[%s756] sm:$0xff]
      %758 = xla_tuple %v757, %v324
      %759 = xla_tuple %758
      %v760 = vmul.f32 %v757, %v324
      %761 = xla_tuple %v760
      %762 = xla_tuple %v760
      %763 = xla_tuple %762
      %764 = xla_tuple %v760
      %s765 = scalar_lea.vmem [#allocation2], 124
      %v766 = vpack.c.bf16 0.0, %v760
      %s768 = ssub.s32 16, 1
      %769 = vst [vmem:[%s765] sm:%s768] %v766
      %s770 = scalar_lea.vmem %s305, 256
      %v771 = vld [vmem:[%s770] sm:$0xff]
      %772 = xla_tuple %v771, %v324
      %773 = xla_tuple %772
      %v774 = vmul.f32 %v771, %v324
      %775 = xla_tuple %v774
      %776 = xla_tuple %v774
      %777 = xla_tuple %776
      %778 = xla_tuple %v774
      %s779 = scalar_lea.vmem [#allocation2], 128
      %v780 = vpack.c.bf16 0.0, %v774
      %s782 = ssub.s32 16, 1
      %783 = vst [vmem:[%s779] sm:%s782] %v780
      %s784 = scalar_lea.vmem %s305, 264
      %v785 = vld [vmem:[%s784] sm:$0xff]
      %786 = xla_tuple %v785, %v324
      %787 = xla_tuple %786
      %v788 = vmul.f32 %v785, %v324
      %789 = xla_tuple %v788
      %790 = xla_tuple %v788
      %791 = xla_tuple %790
      %792 = xla_tuple %v788
      %s793 = scalar_lea.vmem [#allocation2], 132
      %v794 = vpack.c.bf16 0.0, %v788
      %s796 = ssub.s32 16, 1
      %797 = vst [vmem:[%s793] sm:%s796] %v794
      %s798 = scalar_lea.vmem %s305, 272
      %v799 = vld [vmem:[%s798] sm:$0xff]
      %800 = xla_tuple %v799, %v324
      %801 = xla_tuple %800
      %v802 = vmul.f32 %v799, %v324
      %803 = xla_tuple %v802
      %804 = xla_tuple %v802
      %805 = xla_tuple %804
      %806 = xla_tuple %v802
      %s807 = scalar_lea.vmem [#allocation2], 136
      %v808 = vpack.c.bf16 0.0, %v802
      %s810 = ssub.s32 16, 1
      %811 = vst [vmem:[%s807] sm:%s810] %v808
      %s812 = scalar_lea.vmem %s305, 280
      %v813 = vld [vmem:[%s812] sm:$0xff]
      %814 = xla_tuple %v813, %v324
      %815 = xla_tuple %814
      %v816 = vmul.f32 %v813, %v324
      %817 = xla_tuple %v816
      %818 = xla_tuple %v816
      %819 = xla_tuple %818
      %820 = xla_tuple %v816
      %s821 = scalar_lea.vmem [#allocation2], 140
      %v822 = vpack.c.bf16 0.0, %v816
      %s824 = ssub.s32 16, 1
      %825 = vst [vmem:[%s821] sm:%s824] %v822
      %v826 = vld [vmem:[%s3] sm:$0x1]
      %v827 = vld [vmem:[%s4] sm:$0x1]
      %v828 = vld [vmem:[%s2] sm:$0x1]
      %829 = xla_tuple %v827, %v828
      %830 = xla_tuple %829
      %v831 = vmul.f32 %v827, %v828
      %832 = xla_tuple %v831
      %833 = xla_tuple %v826, %v831
      %834 = xla_tuple %833
      %v835 = vsub.f32 %v826, %v831
      %836 = xla_tuple %v835
      %s838 = ssub.s32 2, 1
      %839 = vst [vmem:[#allocation3] sm:%s838] %v835
      %v841 = vld [vmem:[%s300] sm:$0xf]
      %v842 = vld [vmem:[%s300 + $0x4] sm:$0x1]
      %v843 = vld [vmem:[%s300 + $0x8] sm:$0xf]
      %v844 = vld [vmem:[%s300 + $0xc] sm:$0x1]
      %v845 = vld [vmem:[%s300 + $0x10] sm:$0xf]
      %v846 = vld [vmem:[%s300 + $0x14] sm:$0x1]
      %v847 = vld [vmem:[%s300 + $0x18] sm:$0xf]
      %v848 = vld [vmem:[%s300 + $0x1c] sm:$0x1]
      %v849 = vld [vmem:[%s300 + $0x20] sm:$0xf]
      %v850 = vld [vmem:[%s300 + $0x24] sm:$0x1]
      %v851 = vld [vmem:[%s300 + $0x28] sm:$0xf]
      %v852 = vld [vmem:[%s300 + $0x2c] sm:$0x1]
      %v853 = vld [vmem:[%s300 + $0x30] sm:$0xf]
      %v854 = vld [vmem:[%s300 + $0x34] sm:$0x1]
      %v855 = vld [vmem:[%s300 + $0x38] sm:$0xf]
      %v856 = vld [vmem:[%s300 + $0x3c] sm:$0x1]
      %v857 = vld [vmem:[%s300 + $0x40] sm:$0xf]
      %v858 = vld [vmem:[%s300 + $0x44] sm:$0x1]
      %s859 = scalar_lea.vmem %s300, 72
      %v860 = vld [vmem:[%s859] sm:$0xf]
      %v861 = vld [vmem:[%s859 + $0x8] sm:$0xf]
      %v862 = vld [vmem:[%s859 + $0x10] sm:$0xf]
      %v863 = vld [vmem:[%s859 + $0x18] sm:$0xf]
      %v864 = vld [vmem:[%s859 + $0x20] sm:$0xf]
      %v865 = vld [vmem:[%s859 + $0x28] sm:$0xf]
      %v866 = vld [vmem:[%s859 + $0x30] sm:$0xf]
      %v867 = vld [vmem:[%s859 + $0x38] sm:$0xf]
      %v868 = vld [vmem:[%s859 + $0x40] sm:$0xf]
      %s869 = scalar_lea.vmem %s300, 144
      %v870 = vld [vmem:[%s869] sm:$0xf]
      %v871 = vld [vmem:[%s869 + $0x4] sm:$0x1]
      %v872 = vld [vmem:[%s869 + $0x8] sm:$0xf]
      %v873 = vld [vmem:[%s869 + $0xc] sm:$0x1]
      %v874 = vld [vmem:[%s869 + $0x10] sm:$0xf]
      %v875 = vld [vmem:[%s869 + $0x14] sm:$0x1]
      %v876 = vld [vmem:[%s869 + $0x18] sm:$0xf]
      %v877 = vld [vmem:[%s869 + $0x1c] sm:$0x1]
      %v878 = vld [vmem:[%s869 + $0x20] sm:$0xf]
      %v879 = vld [vmem:[%s869 + $0x24] sm:$0x1]
      %v880 = vld [vmem:[%s869 + $0x28] sm:$0xf]
      %v881 = vld [vmem:[%s869 + $0x2c] sm:$0x1]
      %v882 = vld [vmem:[%s869 + $0x30] sm:$0xf]
      %v883 = vld [vmem:[%s869 + $0x34] sm:$0x1]
      %v884 = vld [vmem:[%s869 + $0x38] sm:$0xf]
      %v885 = vld [vmem:[%s869 + $0x3c] sm:$0x1]
      %s886 = scalar_lea.vmem %s300, 216
      %v887 = vld [vmem:[%s886] sm:$0xf]
      %v888 = vld [vmem:[%s886 + $0x8] sm:$0xf]
      %v889 = vld [vmem:[%s886 + $0x10] sm:$0xf]
      %v890 = vld [vmem:[%s886 + $0x18] sm:$0xf]
      %v891 = vld [vmem:[%s886 + $0x20] sm:$0xf]
      %v892 = vld [vmem:[%s886 + $0x28] sm:$0xf]
      %v893 = vld [vmem:[%s886 + $0x30] sm:$0xf]
      %v894 = vld [vmem:[%s886 + $0x38] sm:$0xf]
      %v895 = vld [vmem:[#allocation2] sm:$0xf]
      %v896 = vld [vmem:[#allocation2 + $0x4] sm:$0xf]
      %v897 = vld [vmem:[#allocation2 + $0x8] sm:$0xf]
      %v898 = vld [vmem:[#allocation2 + $0xc] sm:$0xf]
      %s899 = scalar_lea.vmem [#allocation2], 16
      %v900 = vld [vmem:[%s899] sm:$0xf]
      %v901 = vld [vmem:[%s899 + $0x4] sm:$0xf]
      %v902 = vld [vmem:[%s899 + $0x8] sm:$0xf]
      %v903 = vld [vmem:[%s899 + $0xc] sm:$0xf]
      %v912 = vunpack.c.l.b16 %v860
      %v913 = vunpack.c.l.b16 %v861
      %v914 = vunpack.c.l.b16 %v862
      %v915 = vunpack.c.l.b16 %v863
      %v916 = vunpack.c.l.b16 %v864
      %v917 = vunpack.c.l.b16 %v865
      %v918 = vunpack.c.l.b16 %v866
      %v919 = vunpack.c.l.b16 %v867
      %v920 = vpack.c.b16 %v913, %v912
      %v921 = vpack.c.b16 %v915, %v914
      %v922 = vpack.c.b16 %v917, %v916
      %v923 = vpack.c.b16 %v919, %v918
      %v928 = vunpack.c.l.b16 %v900
      %v929 = vunpack.c.l.b16 %v901
      %v930 = vunpack.c.l.b16 %v902
      %v931 = vunpack.c.l.b16 %v903
      %v932 = vpack.c.b16 %v929, %v928
      %v933 = vpack.c.b16 %v931, %v930
      %vm936 = vcmask 261120
      %v938 = vsel %vm936, %v920, 0
      %v941 = vsel %vm936, %v921, 0
      %v944 = vsel %vm936, %v922, 0
      %v947 = vsel %vm936, %v923, 0
      %949 = vmatprep.subr.bf16.mxu0 0
      %950 = vmatpush1.bf16.msra.mxu0 0
      %951 = vmatprep.subr.bf16.mxu0 0
      %952 = vmatpush1.bf16.msra.mxu0 0
      %953 = vmatprep.subr.bf16.mxu0 0
      %954 = vmatpush1.bf16.msra.mxu0 0
      %955 = vmatprep.subr.bf16.mxu0 0
      %956 = vmatpush1.bf16.msra.mxu0 0
      %957 = vmatprep.subr.bf16.mxu0 0
      %958 = vmatpush1.bf16.msra.mxu0 0
      %959 = vmatprep.subr.bf16.mxu0 0
      %960 = vmatpush1.bf16.msra.mxu0 0
      %961 = vmatprep.subr.bf16.mxu0 0
      %962 = vmatpush1.bf16.msra.mxu0 %v933
      %963 = vmatprep.subr.bf16.mxu0 0
      %964 = vmatpush1.bf16.msra.mxu0 %v932
      %965 = vmatprep.subr.bf16.mxu0 0
      %966 = vmatpush2.bf16.msra.mxu0 0
      %967 = vmatprep.subr.bf16.mxu0 0
      %968 = vmatpush2.bf16.msra.mxu0 0
      %969 = vmatprep.subr.bf16.mxu0 0
      %970 = vmatpush2.bf16.msra.mxu0 0
      %971 = vmatprep.subr.bf16.mxu0 0
      %972 = vmatpush2.bf16.msra.mxu0 0
      %973 = vmatprep.subr.bf16.mxu0 0
      %974 = vmatpush2.bf16.msra.mxu0 0
      %975 = vmatprep.subr.bf16.mxu0 0
      %976 = vmatpush2.bf16.msra.mxu0 0
      %977 = vmatprep.subr.bf16.mxu0 0
      %978 = vmatpush2.bf16.msra.mxu0 0
      %979 = vmatprep.subr.bf16.mxu0 0
      %980 = vmatpush2.bf16.msra.mxu0 0
      %981 = vmatprep.mubr.bf16.mxu0 0
      %982 = vmatmul.mubr.bf16.gmra.mxu0 %v938
      %v983 = vpop.f32.mrf.mxu0
      %v984 = vadd.f32 0.0, %v983
      %v985 = vpop.f32.mrf.mxu0
      %v986 = vpop.f32.mrf.mxu0
      %v987 = vadd.f32 0.0, %v986
      %v988 = vpop.f32.mrf.mxu0
      %989 = vmatprep.mubr.bf16.mxu0 0
      %990 = vmatmul.mubr.bf16.gmra.mxu0 %v941
      %v991 = vpop.f32.mrf.mxu0
      %v992 = vadd.f32 0.0, %v991
      %v993 = vpop.f32.mrf.mxu0
      %v994 = vpop.f32.mrf.mxu0
      %v995 = vadd.f32 0.0, %v994
      %v996 = vpop.f32.mrf.mxu0
      %997 = vmatprep.mubr.bf16.mxu0 0
      %998 = vmatmul.mubr.bf16.gmra.mxu0 %v944
      %v999 = vpop.f32.mrf.mxu0
      %v1000 = vadd.f32 0.0, %v999
      %v1001 = vpop.f32.mrf.mxu0
      %v1002 = vpop.f32.mrf.mxu0
      %v1003 = vadd.f32 0.0, %v1002
      %v1004 = vpop.f32.mrf.mxu0
      %1005 = vmatprep.mubr.bf16.mxu0 0
      %1006 = vmatmul.mubr.bf16.gmra.mxu0 %v947
      %v1007 = vpop.f32.mrf.mxu0
      %v1008 = vadd.f32 0.0, %v1007
      %v1009 = vpop.f32.mrf.mxu0
      %v1010 = vpop.f32.mrf.mxu0
      %v1011 = vadd.f32 0.0, %v1010
      %v1012 = vpop.f32.mrf.mxu0
      %1013 = vdwg.mxu0
      %v1022 = vunpack.c.l.b16 %v841
      %v1023 = vunpack.c.l.b16 %v843
      %v1024 = vunpack.c.l.b16 %v845
      %v1025 = vunpack.c.l.b16 %v847
      %v1026 = vunpack.c.l.b16 %v849
      %v1027 = vunpack.c.l.b16 %v851
      %v1028 = vunpack.c.l.b16 %v853
      %v1029 = vunpack.c.l.b16 %v855
      %v1030 = vpack.c.b16 %v1023, %v1022
      %v1031 = vpack.c.b16 %v1025, %v1024
      %v1032 = vpack.c.b16 %v1027, %v1026
      %v1033 = vpack.c.b16 %v1029, %v1028
      %v1038 = vunpack.c.l.b16 %v895
      %v1039 = vunpack.c.l.b16 %v896
      %v1040 = vunpack.c.l.b16 %v897
      %v1041 = vunpack.c.l.b16 %v898
      %v1042 = vpack.c.b16 %v1039, %v1038
      %v1043 = vpack.c.b16 %v1041, %v1040
      %v1047 = vsel %vm936, %v1030, 0
      %v1050 = vsel %vm936, %v1031, 0
      %v1053 = vsel %vm936, %v1032, 0
      %v1056 = vsel %vm936, %v1033, 0
      %1058 = vmatprep.subr.bf16.mxu0 0
      %1059 = vmatpush1.bf16.msra.mxu0 0
      %1060 = vmatprep.subr.bf16.mxu0 0
      %1061 = vmatpush1.bf16.msra.mxu0 0
      %1062 = vmatprep.subr.bf16.mxu0 0
      %1063 = vmatpush1.bf16.msra.mxu0 0
      %1064 = vmatprep.subr.bf16.mxu0 0
      %1065 = vmatpush1.bf16.msra.mxu0 0
      %1066 = vmatprep.subr.bf16.mxu0 0
      %1067 = vmatpush1.bf16.msra.mxu0 0
      %1068 = vmatprep.subr.bf16.mxu0 0
      %1069 = vmatpush1.bf16.msra.mxu0 0
      %1070 = vmatprep.subr.bf16.mxu0 0
      %1071 = vmatpush1.bf16.msra.mxu0 %v1043
      %1072 = vmatprep.subr.bf16.mxu0 0
      %1073 = vmatpush1.bf16.msra.mxu0 %v1042
      %1074 = vmatprep.subr.bf16.mxu0 0
      %1075 = vmatpush2.bf16.msra.mxu0 0
      %1076 = vmatprep.subr.bf16.mxu0 0
      %1077 = vmatpush2.bf16.msra.mxu0 0
      %1078 = vmatprep.subr.bf16.mxu0 0
      %1079 = vmatpush2.bf16.msra.mxu0 0
      %1080 = vmatprep.subr.bf16.mxu0 0
      %1081 = vmatpush2.bf16.msra.mxu0 0
      %1082 = vmatprep.subr.bf16.mxu0 0
      %1083 = vmatpush2.bf16.msra.mxu0 0
      %1084 = vmatprep.subr.bf16.mxu0 0
      %1085 = vmatpush2.bf16.msra.mxu0 0
      %1086 = vmatprep.subr.bf16.mxu0 0
      %1087 = vmatpush2.bf16.msra.mxu0 0
      %1088 = vmatprep.subr.bf16.mxu0 0
      %1089 = vmatpush2.bf16.msra.mxu0 0
      %1090 = vmatprep.mubr.bf16.mxu0 0
      %1091 = vmatmul.mubr.bf16.gmra.mxu0 %v1047
      %v1092 = vpop.f32.mrf.mxu0
      %v1093 = vadd.f32 %v984, %v1092
      %v1094 = vpop.f32.mrf.mxu0
      %v1095 = vpop.f32.mrf.mxu0
      %v1096 = vadd.f32 %v987, %v1095
      %v1097 = vpop.f32.mrf.mxu0
      %1098 = vmatprep.mubr.bf16.mxu0 0
      %1099 = vmatmul.mubr.bf16.gmra.mxu0 %v1050
      %v1100 = vpop.f32.mrf.mxu0
      %v1101 = vadd.f32 %v992, %v1100
      %v1102 = vpop.f32.mrf.mxu0
      %v1103 = vpop.f32.mrf.mxu0
      %v1104 = vadd.f32 %v995, %v1103
      %v1105 = vpop.f32.mrf.mxu0
      %1106 = vmatprep.mubr.bf16.mxu0 0
      %1107 = vmatmul.mubr.bf16.gmra.mxu0 %v1053
      %v1108 = vpop.f32.mrf.mxu0
      %v1109 = vadd.f32 %v1000, %v1108
      %v1110 = vpop.f32.mrf.mxu0
      %v1111 = vpop.f32.mrf.mxu0
      %v1112 = vadd.f32 %v1003, %v1111
      %v1113 = vpop.f32.mrf.mxu0
      %1114 = vmatprep.mubr.bf16.mxu0 0
      %1115 = vmatmul.mubr.bf16.gmra.mxu0 %v1056
      %v1116 = vpop.f32.mrf.mxu0
      %v1117 = vadd.f32 %v1008, %v1116
      %v1118 = vpop.f32.mrf.mxu0
      %v1119 = vpop.f32.mrf.mxu0
      %v1120 = vadd.f32 %v1011, %v1119
      %v1121 = vpop.f32.mrf.mxu0
      %1122 = vdwg.mxu0
      %vm1123 = vsmask.f32 3328
      %vm1124 = vsmask.f32 7440
      %vm1125 = vmor %vm1123, %vm1124
      %v1127 = vshrl.u32 %v841, 16
      %v1129 = vrot.slane %v1127, 4
      %v1130 = vshll.u32 %v841, 16
      %v1132 = vrot.slane %v1130, 5
      %v1133 = vor.u32 %v1129, %v1132
      %v1134 = vrot.slane %v1133, 4
      %v1136 = vshll.u32 %v842, 16
      %v1138 = vrot.slane %v1136, 5
      %v1139 = vsel %vm1125, %v1134, %v1138
      %v1141 = vshrl.u32 %v843, 16
      %v1143 = vrot.slane %v1141, 4
      %v1144 = vshll.u32 %v843, 16
      %v1146 = vrot.slane %v1144, 5
      %v1147 = vor.u32 %v1143, %v1146
      %v1148 = vrot.slane %v1147, 4
      %v1150 = vshll.u32 %v844, 16
      %v1152 = vrot.slane %v1150, 5
      %v1153 = vsel %vm1125, %v1148, %v1152
      %v1155 = vshrl.u32 %v845, 16
      %v1157 = vrot.slane %v1155, 4
      %v1158 = vshll.u32 %v845, 16
      %v1160 = vrot.slane %v1158, 5
      %v1161 = vor.u32 %v1157, %v1160
      %v1162 = vrot.slane %v1161, 4
      %v1164 = vshll.u32 %v846, 16
      %v1166 = vrot.slane %v1164, 5
      %v1167 = vsel %vm1125, %v1162, %v1166
      %v1169 = vshrl.u32 %v847, 16
      %v1171 = vrot.slane %v1169, 4
      %v1172 = vshll.u32 %v847, 16
      %v1174 = vrot.slane %v1172, 5
      %v1175 = vor.u32 %v1171, %v1174
      %v1176 = vrot.slane %v1175, 4
      %v1178 = vshll.u32 %v848, 16
      %v1180 = vrot.slane %v1178, 5
      %v1181 = vsel %vm1125, %v1176, %v1180
      %v1183 = vshrl.u32 %v849, 16
      %v1185 = vrot.slane %v1183, 4
      %v1186 = vshll.u32 %v849, 16
      %v1188 = vrot.slane %v1186, 5
      %v1189 = vor.u32 %v1185, %v1188
      %v1190 = vrot.slane %v1189, 4
      %v1192 = vshll.u32 %v850, 16
      %v1194 = vrot.slane %v1192, 5
      %v1195 = vsel %vm1125, %v1190, %v1194
      %v1197 = vshrl.u32 %v851, 16
      %v1199 = vrot.slane %v1197, 4
      %v1200 = vshll.u32 %v851, 16
      %v1202 = vrot.slane %v1200, 5
      %v1203 = vor.u32 %v1199, %v1202
      %v1204 = vrot.slane %v1203, 4
      %v1206 = vshll.u32 %v852, 16
      %v1208 = vrot.slane %v1206, 5
      %v1209 = vsel %vm1125, %v1204, %v1208
      %v1211 = vshrl.u32 %v853, 16
      %v1213 = vrot.slane %v1211, 4
      %v1214 = vshll.u32 %v853, 16
      %v1216 = vrot.slane %v1214, 5
      %v1217 = vor.u32 %v1213, %v1216
      %v1218 = vrot.slane %v1217, 4
      %v1220 = vshll.u32 %v854, 16
      %v1222 = vrot.slane %v1220, 5
      %v1223 = vsel %vm1125, %v1218, %v1222
      %v1225 = vshrl.u32 %v855, 16
      %v1227 = vrot.slane %v1225, 4
      %v1228 = vshll.u32 %v855, 16
      %v1230 = vrot.slane %v1228, 5
      %v1231 = vor.u32 %v1227, %v1230
      %v1232 = vrot.slane %v1231, 4
      %v1234 = vshll.u32 %v856, 16
      %v1236 = vrot.slane %v1234, 5
      %v1237 = vsel %vm1125, %v1232, %v1236
      %s1238 = scalar_lea.vmem [#allocation2], 32
      %v1239 = vld [vmem:[%s1238] sm:$0xf]
      %v1240 = vld [vmem:[%s1238 + $0x4] sm:$0xf]
      %v1241 = vld [vmem:[%s1238 + $0x8] sm:$0xf]
      %v1242 = vld [vmem:[%s1238 + $0xc] sm:$0xf]
      %v1243 = vunpack.c.l.b16 %v1139
      %v1244 = vunpack.c.l.b16 %v1153
      %v1245 = vunpack.c.l.b16 %v1167
      %v1246 = vunpack.c.l.b16 %v1181
      %v1247 = vunpack.c.l.b16 %v1195
      %v1248 = vunpack.c.l.b16 %v1209
      %v1249 = vunpack.c.l.b16 %v1223
      %v1250 = vunpack.c.l.b16 %v1237
      %v1251 = vpack.c.b16 %v1244, %v1243
      %v1252 = vpack.c.b16 %v1246, %v1245
      %v1253 = vpack.c.b16 %v1248, %v1247
      %v1254 = vpack.c.b16 %v1250, %v1249
      %v1259 = vunpack.c.l.b16 %v1239
      %v1260 = vunpack.c.l.b16 %v1240
      %v1261 = vunpack.c.l.b16 %v1241
      %v1262 = vunpack.c.l.b16 %v1242
      %v1263 = vpack.c.b16 %v1260, %v1259
      %v1264 = vpack.c.b16 %v1262, %v1261
      %v1268 = vsel %vm936, %v1251, 0
      %v1271 = vsel %vm936, %v1252, 0
      %v1274 = vsel %vm936, %v1253, 0
      %v1277 = vsel %vm936, %v1254, 0
      %1279 = vmatprep.subr.bf16.mxu0 0
      %1280 = vmatpush1.bf16.msra.mxu0 0
      %1281 = vmatprep.subr.bf16.mxu0 0
      %1282 = vmatpush1.bf16.msra.mxu0 0
      %1283 = vmatprep.subr.bf16.mxu0 0
      %1284 = vmatpush1.bf16.msra.mxu0 0
      %1285 = vmatprep.subr.bf16.mxu0 0
      %1286 = vmatpush1.bf16.msra.mxu0 0
      %1287 = vmatprep.subr.bf16.mxu0 0
      %1288 = vmatpush1.bf16.msra.mxu0 0
      %1289 = vmatprep.subr.bf16.mxu0 0
      %1290 = vmatpush1.bf16.msra.mxu0 0
      %1291 = vmatprep.subr.bf16.mxu0 0
      %1292 = vmatpush1.bf16.msra.mxu0 %v1264
      %1293 = vmatprep.subr.bf16.mxu0 0
      %1294 = vmatpush1.bf16.msra.mxu0 %v1263
      %1295 = vmatprep.subr.bf16.mxu0 0
      %1296 = vmatpush2.bf16.msra.mxu0 0
      %1297 = vmatprep.subr.bf16.mxu0 0
      %1298 = vmatpush2.bf16.msra.mxu0 0
      %1299 = vmatprep.subr.bf16.mxu0 0
      %1300 = vmatpush2.bf16.msra.mxu0 0
      %1301 = vmatprep.subr.bf16.mxu0 0
      %1302 = vmatpush2.bf16.msra.mxu0 0
      %1303 = vmatprep.subr.bf16.mxu0 0
      %1304 = vmatpush2.bf16.msra.mxu0 0
      %1305 = vmatprep.subr.bf16.mxu0 0
      %1306 = vmatpush2.bf16.msra.mxu0 0
      %1307 = vmatprep.subr.bf16.mxu0 0
      %1308 = vmatpush2.bf16.msra.mxu0 0
      %1309 = vmatprep.subr.bf16.mxu0 0
      %1310 = vmatpush2.bf16.msra.mxu0 0
      %1311 = vmatprep.mubr.bf16.mxu0 0
      %1312 = vmatmul.mubr.bf16.gmra.mxu0 %v1268
      %v1313 = vpop.f32.mrf.mxu0
      %v1314 = vadd.f32 0.0, %v1313
      %v1315 = vpop.f32.mrf.mxu0
      %v1316 = vpop.f32.mrf.mxu0
      %v1317 = vadd.f32 0.0, %v1316
      %v1318 = vpop.f32.mrf.mxu0
      %1319 = vmatprep.mubr.bf16.mxu0 0
      %1320 = vmatmul.mubr.bf16.gmra.mxu0 %v1271
      %v1321 = vpop.f32.mrf.mxu0
      %v1322 = vadd.f32 0.0, %v1321
      %v1323 = vpop.f32.mrf.mxu0
      %v1324 = vpop.f32.mrf.mxu0
      %v1325 = vadd.f32 0.0, %v1324
      %v1326 = vpop.f32.mrf.mxu0
      %1327 = vmatprep.mubr.bf16.mxu0 0
      %1328 = vmatmul.mubr.bf16.gmra.mxu0 %v1274
      %v1329 = vpop.f32.mrf.mxu0
      %v1330 = vadd.f32 0.0, %v1329
      %v1331 = vpop.f32.mrf.mxu0
      %v1332 = vpop.f32.mrf.mxu0
      %v1333 = vadd.f32 0.0, %v1332
      %v1334 = vpop.f32.mrf.mxu0
      %1335 = vmatprep.mubr.bf16.mxu0 0
      %1336 = vmatmul.mubr.bf16.gmra.mxu0 %v1277
      %v1337 = vpop.f32.mrf.mxu0
      %v1338 = vadd.f32 0.0, %v1337
      %v1339 = vpop.f32.mrf.mxu0
      %v1340 = vpop.f32.mrf.mxu0
      %v1341 = vadd.f32 0.0, %v1340
      %v1342 = vpop.f32.mrf.mxu0
      %1343 = vdwg.mxu0
      %v1344 = vadd.f32 %v1093, %v1314
      %v1345 = vadd.f32 %v1096, %v1317
      %v1346 = vadd.f32 %v1101, %v1322
      %v1347 = vadd.f32 %v1104, %v1325
      %v1348 = vadd.f32 %v1109, %v1330
      %v1349 = vadd.f32 %v1112, %v1333
      %v1350 = vadd.f32 %v1117, %v1338
      %v1351 = vadd.f32 %v1120, %v1341
      %s1352 = scalar_lea.vmem [#allocation2], 48
      %v1353 = vld [vmem:[%s1352] sm:$0xf]
      %v1354 = vld [vmem:[%s1352 + $0x4] sm:$0xf]
      %v1355 = vld [vmem:[%s1352 + $0x8] sm:$0xf]
      %v1356 = vld [vmem:[%s1352 + $0xc] sm:$0xf]
      %v1365 = vunpack.c.l.b16 %v870
      %v1366 = vunpack.c.l.b16 %v872
      %v1367 = vunpack.c.l.b16 %v874
      %v1368 = vunpack.c.l.b16 %v876
      %v1369 = vunpack.c.l.b16 %v878
      %v1370 = vunpack.c.l.b16 %v880
      %v1371 = vunpack.c.l.b16 %v882
      %v1372 = vunpack.c.l.b16 %v884
      %v1373 = vpack.c.b16 %v1366, %v1365
      %v1374 = vpack.c.b16 %v1368, %v1367
      %v1375 = vpack.c.b16 %v1370, %v1369
      %v1376 = vpack.c.b16 %v1372, %v1371
      %v1381 = vunpack.c.l.b16 %v1353
      %v1382 = vunpack.c.l.b16 %v1354
      %v1383 = vunpack.c.l.b16 %v1355
      %v1384 = vunpack.c.l.b16 %v1356
      %v1385 = vpack.c.b16 %v1382, %v1381
      %v1386 = vpack.c.b16 %v1384, %v1383
      %v1390 = vsel %vm936, %v1373, 0
      %v1393 = vsel %vm936, %v1374, 0
      %v1396 = vsel %vm936, %v1375, 0
      %v1399 = vsel %vm936, %v1376, 0
      %1401 = vmatprep.subr.bf16.mxu0 0
      %1402 = vmatpush1.bf16.msra.mxu0 0
      %1403 = vmatprep.subr.bf16.mxu0 0
      %1404 = vmatpush1.bf16.msra.mxu0 0
      %1405 = vmatprep.subr.bf16.mxu0 0
      %1406 = vmatpush1.bf16.msra.mxu0 0
      %1407 = vmatprep.subr.bf16.mxu0 0
      %1408 = vmatpush1.bf16.msra.mxu0 0
      %1409 = vmatprep.subr.bf16.mxu0 0
      %1410 = vmatpush1.bf16.msra.mxu0 0
      %1411 = vmatprep.subr.bf16.mxu0 0
      %1412 = vmatpush1.bf16.msra.mxu0 0
      %1413 = vmatprep.subr.bf16.mxu0 0
      %1414 = vmatpush1.bf16.msra.mxu0 %v1386
      %1415 = vmatprep.subr.bf16.mxu0 0
      %1416 = vmatpush1.bf16.msra.mxu0 %v1385
      %1417 = vmatprep.subr.bf16.mxu0 0
      %1418 = vmatpush2.bf16.msra.mxu0 0
      %1419 = vmatprep.subr.bf16.mxu0 0
      %1420 = vmatpush2.bf16.msra.mxu0 0
      %1421 = vmatprep.subr.bf16.mxu0 0
      %1422 = vmatpush2.bf16.msra.mxu0 0
      %1423 = vmatprep.subr.bf16.mxu0 0
      %1424 = vmatpush2.bf16.msra.mxu0 0
      %1425 = vmatprep.subr.bf16.mxu0 0
      %1426 = vmatpush2.bf16.msra.mxu0 0
      %1427 = vmatprep.subr.bf16.mxu0 0
      %1428 = vmatpush2.bf16.msra.mxu0 0
      %1429 = vmatprep.subr.bf16.mxu0 0
      %1430 = vmatpush2.bf16.msra.mxu0 0
      %1431 = vmatprep.subr.bf16.mxu0 0
      %1432 = vmatpush2.bf16.msra.mxu0 0
      %1433 = vmatprep.mubr.bf16.mxu0 0
      %1434 = vmatmul.mubr.bf16.gmra.mxu0 %v1390
      %v1435 = vpop.f32.mrf.mxu0
      %v1436 = vadd.f32 0.0, %v1435
      %v1437 = vpop.f32.mrf.mxu0
      %v1438 = vpop.f32.mrf.mxu0
      %v1439 = vadd.f32 0.0, %v1438
      %v1440 = vpop.f32.mrf.mxu0
      %1441 = vmatprep.mubr.bf16.mxu0 0
      %1442 = vmatmul.mubr.bf16.gmra.mxu0 %v1393
      %v1443 = vpop.f32.mrf.mxu0
      %v1444 = vadd.f32 0.0, %v1443
      %v1445 = vpop.f32.mrf.mxu0
      %v1446 = vpop.f32.mrf.mxu0
      %v1447 = vadd.f32 0.0, %v1446
      %v1448 = vpop.f32.mrf.mxu0
      %1449 = vmatprep.mubr.bf16.mxu0 0
      %1450 = vmatmul.mubr.bf16.gmra.mxu0 %v1396
      %v1451 = vpop.f32.mrf.mxu0
      %v1452 = vadd.f32 0.0, %v1451
      %v1453 = vpop.f32.mrf.mxu0
      %v1454 = vpop.f32.mrf.mxu0
      %v1455 = vadd.f32 0.0, %v1454
      %v1456 = vpop.f32.mrf.mxu0
      %1457 = vmatprep.mubr.bf16.mxu0 0
      %1458 = vmatmul.mubr.bf16.gmra.mxu0 %v1399
      %v1459 = vpop.f32.mrf.mxu0
      %v1460 = vadd.f32 0.0, %v1459
      %v1461 = vpop.f32.mrf.mxu0
      %v1462 = vpop.f32.mrf.mxu0
      %v1463 = vadd.f32 0.0, %v1462
      %v1464 = vpop.f32.mrf.mxu0
      %1465 = vdwg.mxu0
      %v1466 = vadd.f32 %v1344, %v1436
      %v1467 = vadd.f32 %v1345, %v1439
      %v1468 = vadd.f32 %v1346, %v1444
      %v1469 = vadd.f32 %v1347, %v1447
      %v1470 = vadd.f32 %v1348, %v1452
      %v1471 = vadd.f32 %v1349, %v1455
      %v1472 = vadd.f32 %v1350, %v1460
      %v1473 = vadd.f32 %v1351, %v1463
      %s1474 = scalar_lea.vmem [#allocation2], 64
      %v1475 = vld [vmem:[%s1474] sm:$0xf]
      %v1476 = vld [vmem:[%s1474 + $0x4] sm:$0xf]
      %v1477 = vld [vmem:[%s1474 + $0x8] sm:$0xf]
      %v1478 = vld [vmem:[%s1474 + $0xc] sm:$0xf]
      %v1487 = vunpack.c.l.b16 %v887
      %v1488 = vunpack.c.l.b16 %v888
      %v1489 = vunpack.c.l.b16 %v889
      %v1490 = vunpack.c.l.b16 %v890
      %v1491 = vunpack.c.l.b16 %v891
      %v1492 = vunpack.c.l.b16 %v892
      %v1493 = vunpack.c.l.b16 %v893
      %v1494 = vunpack.c.l.b16 %v894
      %v1495 = vpack.c.b16 %v1488, %v1487
      %v1496 = vpack.c.b16 %v1490, %v1489
      %v1497 = vpack.c.b16 %v1492, %v1491
      %v1498 = vpack.c.b16 %v1494, %v1493
      %v1503 = vunpack.c.l.b16 %v1475
      %v1504 = vunpack.c.l.b16 %v1476
      %v1505 = vunpack.c.l.b16 %v1477
      %v1506 = vunpack.c.l.b16 %v1478
      %v1507 = vpack.c.b16 %v1504, %v1503
      %v1508 = vpack.c.b16 %v1506, %v1505
      %v1512 = vsel %vm936, %v1495, 0
      %v1515 = vsel %vm936, %v1496, 0
      %v1518 = vsel %vm936, %v1497, 0
      %v1521 = vsel %vm936, %v1498, 0
      %1523 = vmatprep.subr.bf16.mxu0 0
      %1524 = vmatpush1.bf16.msra.mxu0 0
      %1525 = vmatprep.subr.bf16.mxu0 0
      %1526 = vmatpush1.bf16.msra.mxu0 0
      %1527 = vmatprep.subr.bf16.mxu0 0
      %1528 = vmatpush1.bf16.msra.mxu0 0
      %1529 = vmatprep.subr.bf16.mxu0 0
      %1530 = vmatpush1.bf16.msra.mxu0 0
      %1531 = vmatprep.subr.bf16.mxu0 0
      %1532 = vmatpush1.bf16.msra.mxu0 0
      %1533 = vmatprep.subr.bf16.mxu0 0
      %1534 = vmatpush1.bf16.msra.mxu0 0
      %1535 = vmatprep.subr.bf16.mxu0 0
      %1536 = vmatpush1.bf16.msra.mxu0 %v1508
      %1537 = vmatprep.subr.bf16.mxu0 0
      %1538 = vmatpush1.bf16.msra.mxu0 %v1507
      %1539 = vmatprep.subr.bf16.mxu0 0
      %1540 = vmatpush2.bf16.msra.mxu0 0
      %1541 = vmatprep.subr.bf16.mxu0 0
      %1542 = vmatpush2.bf16.msra.mxu0 0
      %1543 = vmatprep.subr.bf16.mxu0 0
      %1544 = vmatpush2.bf16.msra.mxu0 0
      %1545 = vmatprep.subr.bf16.mxu0 0
      %1546 = vmatpush2.bf16.msra.mxu0 0
      %1547 = vmatprep.subr.bf16.mxu0 0
      %1548 = vmatpush2.bf16.msra.mxu0 0
      %1549 = vmatprep.subr.bf16.mxu0 0
      %1550 = vmatpush2.bf16.msra.mxu0 0
      %1551 = vmatprep.subr.bf16.mxu0 0
      %1552 = vmatpush2.bf16.msra.mxu0 0
      %1553 = vmatprep.subr.bf16.mxu0 0
      %1554 = vmatpush2.bf16.msra.mxu0 0
      %1555 = vmatprep.mubr.bf16.mxu0 0
      %1556 = vmatmul.mubr.bf16.gmra.mxu0 %v1512
      %v1557 = vpop.f32.mrf.mxu0
      %v1558 = vadd.f32 0.0, %v1557
      %v1559 = vpop.f32.mrf.mxu0
      %v1560 = vpop.f32.mrf.mxu0
      %v1561 = vadd.f32 0.0, %v1560
      %v1562 = vpop.f32.mrf.mxu0
      %1563 = vmatprep.mubr.bf16.mxu0 0
      %1564 = vmatmul.mubr.bf16.gmra.mxu0 %v1515
      %v1565 = vpop.f32.mrf.mxu0
      %v1566 = vadd.f32 0.0, %v1565
      %v1567 = vpop.f32.mrf.mxu0
      %v1568 = vpop.f32.mrf.mxu0
      %v1569 = vadd.f32 0.0, %v1568
      %v1570 = vpop.f32.mrf.mxu0
      %1571 = vmatprep.mubr.bf16.mxu0 0
      %1572 = vmatmul.mubr.bf16.gmra.mxu0 %v1518
      %v1573 = vpop.f32.mrf.mxu0
      %v1574 = vadd.f32 0.0, %v1573
      %v1575 = vpop.f32.mrf.mxu0
      %v1576 = vpop.f32.mrf.mxu0
      %v1577 = vadd.f32 0.0, %v1576
      %v1578 = vpop.f32.mrf.mxu0
      %1579 = vmatprep.mubr.bf16.mxu0 0
      %1580 = vmatmul.mubr.bf16.gmra.mxu0 %v1521
      %v1581 = vpop.f32.mrf.mxu0
      %v1582 = vadd.f32 0.0, %v1581
      %v1583 = vpop.f32.mrf.mxu0
      %v1584 = vpop.f32.mrf.mxu0
      %v1585 = vadd.f32 0.0, %v1584
      %v1586 = vpop.f32.mrf.mxu0
      %1587 = vdwg.mxu0
      %v1588 = vadd.f32 %v1466, %v1558
      %v1589 = vadd.f32 %v1467, %v1561
      %v1590 = vadd.f32 %v1468, %v1566
      %v1591 = vadd.f32 %v1469, %v1569
      %v1592 = vadd.f32 %v1470, %v1574
      %v1593 = vadd.f32 %v1471, %v1577
      %v1594 = vadd.f32 %v1472, %v1582
      %v1595 = vadd.f32 %v1473, %v1585
      %v1597 = vshrl.u32 %v870, 16
      %v1599 = vrot.slane %v1597, 4
      %v1600 = vshll.u32 %v870, 16
      %v1602 = vrot.slane %v1600, 5
      %v1603 = vor.u32 %v1599, %v1602
      %v1604 = vrot.slane %v1603, 4
      %v1606 = vshll.u32 %v871, 16
      %v1608 = vrot.slane %v1606, 5
      %v1609 = vsel %vm1125, %v1604, %v1608
      %v1611 = vshrl.u32 %v872, 16
      %v1613 = vrot.slane %v1611, 4
      %v1614 = vshll.u32 %v872, 16
      %v1616 = vrot.slane %v1614, 5
      %v1617 = vor.u32 %v1613, %v1616
      %v1618 = vrot.slane %v1617, 4
      %v1620 = vshll.u32 %v873, 16
      %v1622 = vrot.slane %v1620, 5
      %v1623 = vsel %vm1125, %v1618, %v1622
      %v1625 = vshrl.u32 %v874, 16
      %v1627 = vrot.slane %v1625, 4
      %v1628 = vshll.u32 %v874, 16
      %v1630 = vrot.slane %v1628, 5
      %v1631 = vor.u32 %v1627, %v1630
      %v1632 = vrot.slane %v1631, 4
      %v1634 = vshll.u32 %v875, 16
      %v1636 = vrot.slane %v1634, 5
      %v1637 = vsel %vm1125, %v1632, %v1636
      %v1639 = vshrl.u32 %v876, 16
      %v1641 = vrot.slane %v1639, 4
      %v1642 = vshll.u32 %v876, 16
      %v1644 = vrot.slane %v1642, 5
      %v1645 = vor.u32 %v1641, %v1644
      %v1646 = vrot.slane %v1645, 4
      %v1648 = vshll.u32 %v877, 16
      %v1650 = vrot.slane %v1648, 5
      %v1651 = vsel %vm1125, %v1646, %v1650
      %v1653 = vshrl.u32 %v878, 16
      %v1655 = vrot.slane %v1653, 4
      %v1656 = vshll.u32 %v878, 16
      %v1658 = vrot.slane %v1656, 5
      %v1659 = vor.u32 %v1655, %v1658
      %v1660 = vrot.slane %v1659, 4
      %v1662 = vshll.u32 %v879, 16
      %v1664 = vrot.slane %v1662, 5
      %v1665 = vsel %vm1125, %v1660, %v1664
      %v1667 = vshrl.u32 %v880, 16
      %v1669 = vrot.slane %v1667, 4
      %v1670 = vshll.u32 %v880, 16
      %v1672 = vrot.slane %v1670, 5
      %v1673 = vor.u32 %v1669, %v1672
      %v1674 = vrot.slane %v1673, 4
      %v1676 = vshll.u32 %v881, 16
      %v1678 = vrot.slane %v1676, 5
      %v1679 = vsel %vm1125, %v1674, %v1678
      %v1681 = vshrl.u32 %v882, 16
      %v1683 = vrot.slane %v1681, 4
      %v1684 = vshll.u32 %v882, 16
      %v1686 = vrot.slane %v1684, 5
      %v1687 = vor.u32 %v1683, %v1686
      %v1688 = vrot.slane %v1687, 4
      %v1690 = vshll.u32 %v883, 16
      %v1692 = vrot.slane %v1690, 5
      %v1693 = vsel %vm1125, %v1688, %v1692
      %v1695 = vshrl.u32 %v884, 16
      %v1697 = vrot.slane %v1695, 4
      %v1698 = vshll.u32 %v884, 16
      %v1700 = vrot.slane %v1698, 5
      %v1701 = vor.u32 %v1697, %v1700
      %v1702 = vrot.slane %v1701, 4
      %v1704 = vshll.u32 %v885, 16
      %v1706 = vrot.slane %v1704, 5
      %v1707 = vsel %vm1125, %v1702, %v1706
      %s1708 = scalar_lea.vmem [#allocation2], 80
      %v1709 = vld [vmem:[%s1708] sm:$0xf]
      %v1710 = vld [vmem:[%s1708 + $0x4] sm:$0xf]
      %v1711 = vld [vmem:[%s1708 + $0x8] sm:$0xf]
      %v1712 = vld [vmem:[%s1708 + $0xc] sm:$0xf]
      %v1713 = vunpack.c.l.b16 %v1609
      %v1714 = vunpack.c.l.b16 %v1623
      %v1715 = vunpack.c.l.b16 %v1637
      %v1716 = vunpack.c.l.b16 %v1651
      %v1717 = vunpack.c.l.b16 %v1665
      %v1718 = vunpack.c.l.b16 %v1679
      %v1719 = vunpack.c.l.b16 %v1693
      %v1720 = vunpack.c.l.b16 %v1707
      %v1721 = vpack.c.b16 %v1714, %v1713
      %v1722 = vpack.c.b16 %v1716, %v1715
      %v1723 = vpack.c.b16 %v1718, %v1717
      %v1724 = vpack.c.b16 %v1720, %v1719
      %v1729 = vunpack.c.l.b16 %v1709
      %v1730 = vunpack.c.l.b16 %v1710
      %v1731 = vunpack.c.l.b16 %v1711
      %v1732 = vunpack.c.l.b16 %v1712
      %v1733 = vpack.c.b16 %v1730, %v1729
      %v1734 = vpack.c.b16 %v1732, %v1731
      %v1738 = vsel %vm936, %v1721, 0
      %v1741 = vsel %vm936, %v1722, 0
      %v1744 = vsel %vm936, %v1723, 0
      %v1747 = vsel %vm936, %v1724, 0
      %1749 = vmatprep.subr.bf16.mxu0 0
      %1750 = vmatpush1.bf16.msra.mxu0 0
      %1751 = vmatprep.subr.bf16.mxu0 0
      %1752 = vmatpush1.bf16.msra.mxu0 0
      %1753 = vmatprep.subr.bf16.mxu0 0
      %1754 = vmatpush1.bf16.msra.mxu0 0
      %1755 = vmatprep.subr.bf16.mxu0 0
      %1756 = vmatpush1.bf16.msra.mxu0 0
      %1757 = vmatprep.subr.bf16.mxu0 0
      %1758 = vmatpush1.bf16.msra.mxu0 0
      %1759 = vmatprep.subr.bf16.mxu0 0
      %1760 = vmatpush1.bf16.msra.mxu0 0
      %1761 = vmatprep.subr.bf16.mxu0 0
      %1762 = vmatpush1.bf16.msra.mxu0 %v1734
      %1763 = vmatprep.subr.bf16.mxu0 0
      %1764 = vmatpush1.bf16.msra.mxu0 %v1733
      %1765 = vmatprep.subr.bf16.mxu0 0
      %1766 = vmatpush2.bf16.msra.mxu0 0
      %1767 = vmatprep.subr.bf16.mxu0 0
      %1768 = vmatpush2.bf16.msra.mxu0 0
      %1769 = vmatprep.subr.bf16.mxu0 0
      %1770 = vmatpush2.bf16.msra.mxu0 0
      %1771 = vmatprep.subr.bf16.mxu0 0
      %1772 = vmatpush2.bf16.msra.mxu0 0
      %1773 = vmatprep.subr.bf16.mxu0 0
      %1774 = vmatpush2.bf16.msra.mxu0 0
      %1775 = vmatprep.subr.bf16.mxu0 0
      %1776 = vmatpush2.bf16.msra.mxu0 0
      %1777 = vmatprep.subr.bf16.mxu0 0
      %1778 = vmatpush2.bf16.msra.mxu0 0
      %1779 = vmatprep.subr.bf16.mxu0 0
      %1780 = vmatpush2.bf16.msra.mxu0 0
      %1781 = vmatprep.mubr.bf16.mxu0 0
      %1782 = vmatmul.mubr.bf16.gmra.mxu0 %v1738
      %v1783 = vpop.f32.mrf.mxu0
      %v1784 = vadd.f32 0.0, %v1783
      %v1785 = vpop.f32.mrf.mxu0
      %v1786 = vpop.f32.mrf.mxu0
      %v1787 = vadd.f32 0.0, %v1786
      %v1788 = vpop.f32.mrf.mxu0
      %1789 = vmatprep.mubr.bf16.mxu0 0
      %1790 = vmatmul.mubr.bf16.gmra.mxu0 %v1741
      %v1791 = vpop.f32.mrf.mxu0
      %v1792 = vadd.f32 0.0, %v1791
      %v1793 = vpop.f32.mrf.mxu0
      %v1794 = vpop.f32.mrf.mxu0
      %v1795 = vadd.f32 0.0, %v1794
      %v1796 = vpop.f32.mrf.mxu0
      %1797 = vmatprep.mubr.bf16.mxu0 0
      %1798 = vmatmul.mubr.bf16.gmra.mxu0 %v1744
      %v1799 = vpop.f32.mrf.mxu0
      %v1800 = vadd.f32 0.0, %v1799
      %v1801 = vpop.f32.mrf.mxu0
      %v1802 = vpop.f32.mrf.mxu0
      %v1803 = vadd.f32 0.0, %v1802
      %v1804 = vpop.f32.mrf.mxu0
      %1805 = vmatprep.mubr.bf16.mxu0 0
      %1806 = vmatmul.mubr.bf16.gmra.mxu0 %v1747
      %v1807 = vpop.f32.mrf.mxu0
      %v1808 = vadd.f32 0.0, %v1807
      %v1809 = vpop.f32.mrf.mxu0
      %v1810 = vpop.f32.mrf.mxu0
      %v1811 = vadd.f32 0.0, %v1810
      %v1812 = vpop.f32.mrf.mxu0
      %1813 = vdwg.mxu0
      %v1814 = vadd.f32 %v1588, %v1784
      %v1815 = vadd.f32 %v1589, %v1787
      %v1816 = vadd.f32 %v1590, %v1792
      %v1817 = vadd.f32 %v1591, %v1795
      %v1818 = vadd.f32 %v1592, %v1800
      %v1819 = vadd.f32 %v1593, %v1803
      %v1820 = vadd.f32 %v1594, %v1808
      %v1821 = vadd.f32 %v1595, %v1811
      %s1822 = scalar_lea.vmem [#allocation2], 96
      %v1823 = vld [vmem:[%s1822] sm:$0xf]
      %v1824 = vld [vmem:[%s1822 + $0x4] sm:$0xf]
      %v1825 = vld [vmem:[%s1822 + $0x8] sm:$0xf]
      %v1826 = vld [vmem:[%s1822 + $0xc] sm:$0xf]
      %v1828 = vunpack.c.l.b16 %v857
      %v1829 = vpack.c.b16 %v1024, %v1023
      %v1830 = vpack.c.b16 %v1026, %v1025
      %v1831 = vpack.c.b16 %v1028, %v1027
      %v1832 = vpack.c.b16 %v1828, %v1029
      %v1837 = vunpack.c.l.b16 %v1823
      %v1838 = vunpack.c.l.b16 %v1824
      %v1839 = vunpack.c.l.b16 %v1825
      %v1840 = vunpack.c.l.b16 %v1826
      %v1841 = vpack.c.b16 %v1838, %v1837
      %v1842 = vpack.c.b16 %v1840, %v1839
      %v1846 = vsel %vm936, %v1829, 0
      %v1849 = vsel %vm936, %v1830, 0
      %v1852 = vsel %vm936, %v1831, 0
      %v1855 = vsel %vm936, %v1832, 0
      %1857 = vmatprep.subr.bf16.mxu0 0
      %1858 = vmatpush1.bf16.msra.mxu0 0
      %1859 = vmatprep.subr.bf16.mxu0 0
      %1860 = vmatpush1.bf16.msra.mxu0 0
      %1861 = vmatprep.subr.bf16.mxu0 0
      %1862 = vmatpush1.bf16.msra.mxu0 0
      %1863 = vmatprep.subr.bf16.mxu0 0
      %1864 = vmatpush1.bf16.msra.mxu0 0
      %1865 = vmatprep.subr.bf16.mxu0 0
      %1866 = vmatpush1.bf16.msra.mxu0 0
      %1867 = vmatprep.subr.bf16.mxu0 0
      %1868 = vmatpush1.bf16.msra.mxu0 0
      %1869 = vmatprep.subr.bf16.mxu0 0
      %1870 = vmatpush1.bf16.msra.mxu0 %v1842
      %1871 = vmatprep.subr.bf16.mxu0 0
      %1872 = vmatpush1.bf16.msra.mxu0 %v1841
      %1873 = vmatprep.subr.bf16.mxu0 0
      %1874 = vmatpush2.bf16.msra.mxu0 0
      %1875 = vmatprep.subr.bf16.mxu0 0
      %1876 = vmatpush2.bf16.msra.mxu0 0
      %1877 = vmatprep.subr.bf16.mxu0 0
      %1878 = vmatpush2.bf16.msra.mxu0 0
      %1879 = vmatprep.subr.bf16.mxu0 0
      %1880 = vmatpush2.bf16.msra.mxu0 0
      %1881 = vmatprep.subr.bf16.mxu0 0
      %1882 = vmatpush2.bf16.msra.mxu0 0
      %1883 = vmatprep.subr.bf16.mxu0 0
      %1884 = vmatpush2.bf16.msra.mxu0 0
      %1885 = vmatprep.subr.bf16.mxu0 0
      %1886 = vmatpush2.bf16.msra.mxu0 0
      %1887 = vmatprep.subr.bf16.mxu0 0
      %1888 = vmatpush2.bf16.msra.mxu0 0
      %1889 = vmatprep.mubr.bf16.mxu0 0
      %1890 = vmatmul.mubr.bf16.gmra.mxu0 %v1846
      %v1891 = vpop.f32.mrf.mxu0
      %v1892 = vadd.f32 0.0, %v1891
      %v1893 = vpop.f32.mrf.mxu0
      %v1894 = vpop.f32.mrf.mxu0
      %v1895 = vadd.f32 0.0, %v1894
      %v1896 = vpop.f32.mrf.mxu0
      %1897 = vmatprep.mubr.bf16.mxu0 0
      %1898 = vmatmul.mubr.bf16.gmra.mxu0 %v1849
      %v1899 = vpop.f32.mrf.mxu0
      %v1900 = vadd.f32 0.0, %v1899
      %v1901 = vpop.f32.mrf.mxu0
      %v1902 = vpop.f32.mrf.mxu0
      %v1903 = vadd.f32 0.0, %v1902
      %v1904 = vpop.f32.mrf.mxu0
      %1905 = vmatprep.mubr.bf16.mxu0 0
      %1906 = vmatmul.mubr.bf16.gmra.mxu0 %v1852
      %v1907 = vpop.f32.mrf.mxu0
      %v1908 = vadd.f32 0.0, %v1907
      %v1909 = vpop.f32.mrf.mxu0
      %v1910 = vpop.f32.mrf.mxu0
      %v1911 = vadd.f32 0.0, %v1910
      %v1912 = vpop.f32.mrf.mxu0
      %1913 = vmatprep.mubr.bf16.mxu0 0
      %1914 = vmatmul.mubr.bf16.gmra.mxu0 %v1855
      %v1915 = vpop.f32.mrf.mxu0
      %v1916 = vadd.f32 0.0, %v1915
      %v1917 = vpop.f32.mrf.mxu0
      %v1918 = vpop.f32.mrf.mxu0
      %v1919 = vadd.f32 0.0, %v1918
      %v1920 = vpop.f32.mrf.mxu0
      %1921 = vdwg.mxu0
      %v1922 = vadd.f32 %v1814, %v1892
      %v1923 = vadd.f32 %v1815, %v1895
      %v1924 = vadd.f32 %v1816, %v1900
      %v1925 = vadd.f32 %v1817, %v1903
      %v1926 = vadd.f32 %v1818, %v1908
      %v1927 = vadd.f32 %v1819, %v1911
      %v1928 = vadd.f32 %v1820, %v1916
      %v1929 = vadd.f32 %v1821, %v1919
      %s1930 = scalar_lea.vmem [#allocation2], 112
      %v1931 = vld [vmem:[%s1930] sm:$0xf]
      %v1932 = vld [vmem:[%s1930 + $0x4] sm:$0xf]
      %v1933 = vld [vmem:[%s1930 + $0x8] sm:$0xf]
      %v1934 = vld [vmem:[%s1930 + $0xc] sm:$0xf]
      %v1936 = vunpack.c.l.b16 %v868
      %v1937 = vpack.c.b16 %v914, %v913
      %v1938 = vpack.c.b16 %v916, %v915
      %v1939 = vpack.c.b16 %v918, %v917
      %v1940 = vpack.c.b16 %v1936, %v919
      %v1945 = vunpack.c.l.b16 %v1931
      %v1946 = vunpack.c.l.b16 %v1932
      %v1947 = vunpack.c.l.b16 %v1933
      %v1948 = vunpack.c.l.b16 %v1934
      %v1949 = vpack.c.b16 %v1946, %v1945
      %v1950 = vpack.c.b16 %v1948, %v1947
      %v1954 = vsel %vm936, %v1937, 0
      %v1957 = vsel %vm936, %v1938, 0
      %v1960 = vsel %vm936, %v1939, 0
      %v1963 = vsel %vm936, %v1940, 0
      %1965 = vmatprep.subr.bf16.mxu0 0
      %1966 = vmatpush1.bf16.msra.mxu0 0
      %1967 = vmatprep.subr.bf16.mxu0 0
      %1968 = vmatpush1.bf16.msra.mxu0 0
      %1969 = vmatprep.subr.bf16.mxu0 0
      %1970 = vmatpush1.bf16.msra.mxu0 0
      %1971 = vmatprep.subr.bf16.mxu0 0
      %1972 = vmatpush1.bf16.msra.mxu0 0
      %1973 = vmatprep.subr.bf16.mxu0 0
      %1974 = vmatpush1.bf16.msra.mxu0 0
      %1975 = vmatprep.subr.bf16.mxu0 0
      %1976 = vmatpush1.bf16.msra.mxu0 0
      %1977 = vmatprep.subr.bf16.mxu0 0
      %1978 = vmatpush1.bf16.msra.mxu0 %v1950
      %1979 = vmatprep.subr.bf16.mxu0 0
      %1980 = vmatpush1.bf16.msra.mxu0 %v1949
      %1981 = vmatprep.subr.bf16.mxu0 0
      %1982 = vmatpush2.bf16.msra.mxu0 0
      %1983 = vmatprep.subr.bf16.mxu0 0
      %1984 = vmatpush2.bf16.msra.mxu0 0
      %1985 = vmatprep.subr.bf16.mxu0 0
      %1986 = vmatpush2.bf16.msra.mxu0 0
      %1987 = vmatprep.subr.bf16.mxu0 0
      %1988 = vmatpush2.bf16.msra.mxu0 0
      %1989 = vmatprep.subr.bf16.mxu0 0
      %1990 = vmatpush2.bf16.msra.mxu0 0
      %1991 = vmatprep.subr.bf16.mxu0 0
      %1992 = vmatpush2.bf16.msra.mxu0 0
      %1993 = vmatprep.subr.bf16.mxu0 0
      %1994 = vmatpush2.bf16.msra.mxu0 0
      %1995 = vmatprep.subr.bf16.mxu0 0
      %1996 = vmatpush2.bf16.msra.mxu0 0
      %1997 = vmatprep.mubr.bf16.mxu0 0
      %1998 = vmatmul.mubr.bf16.gmra.mxu0 %v1954
      %v1999 = vpop.f32.mrf.mxu0
      %v2000 = vadd.f32 0.0, %v1999
      %v2001 = vpop.f32.mrf.mxu0
      %v2002 = vpop.f32.mrf.mxu0
      %v2003 = vadd.f32 0.0, %v2002
      %v2004 = vpop.f32.mrf.mxu0
      %2005 = vmatprep.mubr.bf16.mxu0 0
      %2006 = vmatmul.mubr.bf16.gmra.mxu0 %v1957
      %v2007 = vpop.f32.mrf.mxu0
      %v2008 = vadd.f32 0.0, %v2007
      %v2009 = vpop.f32.mrf.mxu0
      %v2010 = vpop.f32.mrf.mxu0
      %v2011 = vadd.f32 0.0, %v2010
      %v2012 = vpop.f32.mrf.mxu0
      %2013 = vmatprep.mubr.bf16.mxu0 0
      %2014 = vmatmul.mubr.bf16.gmra.mxu0 %v1960
      %v2015 = vpop.f32.mrf.mxu0
      %v2016 = vadd.f32 0.0, %v2015
      %v2017 = vpop.f32.mrf.mxu0
      %v2018 = vpop.f32.mrf.mxu0
      %v2019 = vadd.f32 0.0, %v2018
      %v2020 = vpop.f32.mrf.mxu0
      %2021 = vmatprep.mubr.bf16.mxu0 0
      %2022 = vmatmul.mubr.bf16.gmra.mxu0 %v1963
      %v2023 = vpop.f32.mrf.mxu0
      %v2024 = vadd.f32 0.0, %v2023
      %v2025 = vpop.f32.mrf.mxu0
      %v2026 = vpop.f32.mrf.mxu0
      %v2027 = vadd.f32 0.0, %v2026
      %v2028 = vpop.f32.mrf.mxu0
      %2029 = vdwg.mxu0
      %v2030 = vadd.f32 %v1922, %v2000
      %v2031 = vadd.f32 %v1923, %v2003
      %v2032 = vadd.f32 %v1924, %v2008
      %v2033 = vadd.f32 %v1925, %v2011
      %v2034 = vadd.f32 %v1926, %v2016
      %v2035 = vadd.f32 %v1927, %v2019
      %v2036 = vadd.f32 %v1928, %v2024
      %v2037 = vadd.f32 %v1929, %v2027
      %v2039 = vshrl.u32 %v857, 16
      %v2041 = vrot.slane %v2039, 4
      %v2042 = vshll.u32 %v857, 16
      %v2044 = vrot.slane %v2042, 5
      %v2045 = vor.u32 %v2041, %v2044
      %v2046 = vrot.slane %v2045, 4
      %v2048 = vshll.u32 %v858, 16
      %v2050 = vrot.slane %v2048, 5
      %v2051 = vsel %vm1125, %v2046, %v2050
      %s2052 = scalar_lea.vmem [#allocation2], 128
      %v2053 = vld [vmem:[%s2052] sm:$0xf]
      %v2054 = vld [vmem:[%s2052 + $0x4] sm:$0xf]
      %v2055 = vld [vmem:[%s2052 + $0x8] sm:$0xf]
      %v2056 = vld [vmem:[%s2052 + $0xc] sm:$0xf]
      %v2057 = vunpack.c.l.b16 %v2051
      %v2058 = vpack.c.b16 %v1245, %v1244
      %v2059 = vpack.c.b16 %v1247, %v1246
      %v2060 = vpack.c.b16 %v1249, %v1248
      %v2061 = vpack.c.b16 %v2057, %v1250
      %v2066 = vunpack.c.l.b16 %v2053
      %v2067 = vunpack.c.l.b16 %v2054
      %v2068 = vunpack.c.l.b16 %v2055
      %v2069 = vunpack.c.l.b16 %v2056
      %v2070 = vpack.c.b16 %v2067, %v2066
      %v2071 = vpack.c.b16 %v2069, %v2068
      %v2075 = vsel %vm936, %v2058, 0
      %v2078 = vsel %vm936, %v2059, 0
      %v2081 = vsel %vm936, %v2060, 0
      %v2084 = vsel %vm936, %v2061, 0
      %2086 = vmatprep.subr.bf16.mxu0 0
      %2087 = vmatpush1.bf16.msra.mxu0 0
      %2088 = vmatprep.subr.bf16.mxu0 0
      %2089 = vmatpush1.bf16.msra.mxu0 0
      %2090 = vmatprep.subr.bf16.mxu0 0
      %2091 = vmatpush1.bf16.msra.mxu0 0
      %2092 = vmatprep.subr.bf16.mxu0 0
      %2093 = vmatpush1.bf16.msra.mxu0 0
      %2094 = vmatprep.subr.bf16.mxu0 0
      %2095 = vmatpush1.bf16.msra.mxu0 0
      %2096 = vmatprep.subr.bf16.mxu0 0
      %2097 = vmatpush1.bf16.msra.mxu0 0
      %2098 = vmatprep.subr.bf16.mxu0 0
      %2099 = vmatpush1.bf16.msra.mxu0 %v2071
      %2100 = vmatprep.subr.bf16.mxu0 0
      %2101 = vmatpush1.bf16.msra.mxu0 %v2070
      %2102 = vmatprep.subr.bf16.mxu0 0
      %2103 = vmatpush2.bf16.msra.mxu0 0
      %2104 = vmatprep.subr.bf16.mxu0 0
      %2105 = vmatpush2.bf16.msra.mxu0 0
      %2106 = vmatprep.subr.bf16.mxu0 0
      %2107 = vmatpush2.bf16.msra.mxu0 0
      %2108 = vmatprep.subr.bf16.mxu0 0
      %2109 = vmatpush2.bf16.msra.mxu0 0
      %2110 = vmatprep.subr.bf16.mxu0 0
      %2111 = vmatpush2.bf16.msra.mxu0 0
      %2112 = vmatprep.subr.bf16.mxu0 0
      %2113 = vmatpush2.bf16.msra.mxu0 0
      %2114 = vmatprep.subr.bf16.mxu0 0
      %2115 = vmatpush2.bf16.msra.mxu0 0
      %2116 = vmatprep.subr.bf16.mxu0 0
      %2117 = vmatpush2.bf16.msra.mxu0 0
      %2118 = vmatprep.mubr.bf16.mxu0 0
      %2119 = vmatmul.mubr.bf16.gmra.mxu0 %v2075
      %v2120 = vpop.f32.mrf.mxu0
      %v2121 = vadd.f32 0.0, %v2120
      %v2122 = vpop.f32.mrf.mxu0
      %v2123 = vpop.f32.mrf.mxu0
      %v2124 = vadd.f32 0.0, %v2123
      %v2125 = vpop.f32.mrf.mxu0
      %2126 = vmatprep.mubr.bf16.mxu0 0
      %2127 = vmatmul.mubr.bf16.gmra.mxu0 %v2078
      %v2128 = vpop.f32.mrf.mxu0
      %v2129 = vadd.f32 0.0, %v2128
      %v2130 = vpop.f32.mrf.mxu0
      %v2131 = vpop.f32.mrf.mxu0
      %v2132 = vadd.f32 0.0, %v2131
      %v2133 = vpop.f32.mrf.mxu0
      %2134 = vmatprep.mubr.bf16.mxu0 0
      %2135 = vmatmul.mubr.bf16.gmra.mxu0 %v2081
      %v2136 = vpop.f32.mrf.mxu0
      %v2137 = vadd.f32 0.0, %v2136
      %v2138 = vpop.f32.mrf.mxu0
      %v2139 = vpop.f32.mrf.mxu0
      %v2140 = vadd.f32 0.0, %v2139
      %v2141 = vpop.f32.mrf.mxu0
      %2142 = vmatprep.mubr.bf16.mxu0 0
      %2143 = vmatmul.mubr.bf16.gmra.mxu0 %v2084
      %v2144 = vpop.f32.mrf.mxu0
      %v2145 = vadd.f32 0.0, %v2144
      %v2146 = vpop.f32.mrf.mxu0
      %v2147 = vpop.f32.mrf.mxu0
      %v2148 = vadd.f32 0.0, %v2147
      %v2149 = vpop.f32.mrf.mxu0
      %2150 = vdwg.mxu0
      %v2151 = vadd.f32 %v2030, %v2121
      %v2152 = vadd.f32 %v2031, %v2124
      %v2153 = vadd.f32 %v2032, %v2129
      %v2154 = vadd.f32 %v2033, %v2132
      %v2155 = vadd.f32 %v2034, %v2137
      %v2156 = vadd.f32 %v2035, %v2140
      %v2157 = vadd.f32 %v2036, %v2145
      %v2158 = vadd.f32 %v2037, %v2148
      %v2159 = vld [vmem:[#allocation3] sm:$0x1]
      %v2161 = vlaneseq
      %v2162 = vshrl.u32 %v2161, 7
      %v2163 = vsub.s32 0, %v2162
      %v2164 = vrot.slane %v2159, %v2163
      %v2166 = vadd.f32 %v2151, %v2164
      %v2167 = vadd.f32 %v2152, %v2164
      %v2168 = vadd.f32 %v2153, %v2164
      %v2169 = vadd.f32 %v2154, %v2164
      %v2170 = vadd.f32 %v2155, %v2164
      %v2171 = vadd.f32 %v2156, %v2164
      %v2172 = vadd.f32 %v2157, %v2164
      %v2173 = vadd.f32 %v2158, %v2164
      %v2174 = vmax.f32 %v2166, 0.0
      %v2175 = vmax.f32 %v2167, 0.0
      %v2176 = vmax.f32 %v2168, 0.0
      %v2177 = vmax.f32 %v2169, 0.0
      %v2178 = vmax.f32 %v2170, 0.0
      %v2179 = vmax.f32 %v2171, 0.0
      %v2180 = vmax.f32 %v2172, 0.0
      %v2181 = vmax.f32 %v2173, 0.0
      %v2182 = vpack.c.bf16 %v2175, %v2174
      %v2183 = vpack.c.bf16 %v2177, %v2176
      %v2184 = vpack.c.bf16 %v2179, %v2178
      %v2185 = vpack.c.bf16 %v2181, %v2180
      %v2190 = vunpack.c.l.b16 %v2182
      %v2191 = vunpack.c.h.b16 %v2182
      %v2192 = vunpack.c.l.b16 %v2183
      %v2193 = vunpack.c.h.b16 %v2183
      %v2194 = vunpack.c.l.b16 %v2184
      %v2195 = vunpack.c.h.b16 %v2184
      %v2196 = vunpack.c.l.b16 %v2185
      %v2197 = vunpack.c.h.b16 %v2185
      %v2198 = vpack.c.b16 %v2190, %v2190
      %v2199 = vpack.c.b16 %v2191, %v2191
      %v2200 = vpack.c.b16 %v2192, %v2192
      %v2201 = vpack.c.b16 %v2193, %v2193
      %v2202 = vpack.c.b16 %v2194, %v2194
      %v2203 = vpack.c.b16 %v2195, %v2195
      %v2204 = vpack.c.b16 %v2196, %v2196
      %v2205 = vpack.c.b16 %v2197, %v2197
      %vm2214 = vcmask 519168
      %2215 = vst.msk [vmem:[%s320] sm:$0xf] %vm2214, %v2198
      %2216 = vst.msk [vmem:[%s320 + $0x4] sm:$0xf] %vm2214, %v2199
      %2217 = vst.msk [vmem:[%s320 + $0x8] sm:$0xf] %vm2214, %v2200
      %2218 = vst.msk [vmem:[%s320 + $0xc] sm:$0xf] %vm2214, %v2201
      %2219 = vst.msk [vmem:[%s320 + $0x10] sm:$0xf] %vm2214, %v2202
      %2220 = vst.msk [vmem:[%s320 + $0x14] sm:$0xf] %vm2214, %v2203
      %2221 = vst.msk [vmem:[%s320 + $0x18] sm:$0xf] %vm2214, %v2204
      %2222 = vst.msk [vmem:[%s320 + $0x1c] sm:$0xf] %vm2214, %v2205
      %p2223 = scmp.lt.s32.totalorder %s20, 1
      %s2224 = scalar_select %p2223, %s20, 1
      %p2225 = scmp.lt.s32.totalorder %s21, 0
      %s2226 = scalar_select %p2225, %s21, 0
      %s2227 = smul.addr %s2224, 8
      %s2228 = sadd.s32 %s2226, %s2227
      %s2229 = smul.addr %s2228, 4
      %s2230 = scalar_lea.vmem %s5, %s2229
      // Predicated region
      $region45: #{base_backbone_wrapper_forward.4} parent=43 // pred_check
        %p2231 = pneg %p193
      $region46: #{base_backbone_wrapper_forward.4} parent=43 // pred_check_branch
        %2233 = sbr.rel (%p2231) target = $region48
      $region47: #{base_backbone_wrapper_forward.4} parent=43 // pred_region
        _
      $region48: #{base_backbone_wrapper_forward.4} parent=43 // pred_fallthru
        _
    $region44: #{base_backbone_wrapper_forward.4} parent=5 // pred_fallthru
      _
    %p2234 = scmp.le.s32.totalorder 2, %s11
    // Predicated region
    $region49: #{base_backbone_wrapper_forward.4} parent=5 // pred_check
      %p2235 = pneg %p2234
    $region50: #{base_backbone_wrapper_forward.4} parent=5 // pred_check_branch
      %2237 = sbr.rel (%p2235) target = $region52
    $region51: #{base_backbone_wrapper_forward.4} parent=5 // pred_region
      %s2238 = ssub.s32 %s11, 2
      // Predicated region
      $region53: #{base_backbone_wrapper_forward.4} parent=51 // pred_check
        %p2239 = pneg %p199
      $region54: #{base_backbone_wrapper_forward.4} parent=51 // pred_check_branch
        %2241 = sbr.rel (%p2239) target = $region56
      $region55: #{base_backbone_wrapper_forward.4} parent=51 // pred_region
        %p2242 = scmp.lt.s32.totalorder %s22, 1
        %s2243 = scalar_select %p2242, %s22, 1
        %p2244 = scmp.lt.s32.totalorder %s23, 0
        %s2245 = scalar_select %p2244, %s23, 0
        %s2246 = smul.addr %s2243, 8
        %s2247 = sadd.s32 %s2245, %s2246
        %s2248 = smul.addr %s2247, 4
        %s2249 = scalar_lea.vmem %s5, %s2248
      $region56: #{base_backbone_wrapper_forward.4} parent=51 // pred_fallthru
        _
    $region52: #{base_backbone_wrapper_forward.4} parent=5 // pred_fallthru
      _
  $region6: #{base_backbone_wrapper_forward.4} parent=0 // loop_footer
    %s15 = sadd.s32 1, %s11
  $region7: #{base_backbone_wrapper_forward.4} parent=0 // loop_footer_branch
    %10 = sbr.rel target = $region3
  $region8: #{base_backbone_wrapper_forward.4} parent=0 // loop_exit
    _

</llo_original>
